<compile_context>
chip_gen: v7x
topology: tpu7x:2x2x1
jax: 0.10.0
libtpu: 0.0.40
codegen_flags: <defaults>
</compile_context>

<pallas_src>
import math

import jax
import jax.numpy as jnp
from jax import lax
from jax.experimental import pallas as pl
from jax.experimental.pallas import tpu as pltpu


# ----------------------------------------------------------------------------
# Kernel factory
# ----------------------------------------------------------------------------
def _make_kernel(num_types, n_heads, out_dim, n_src, tile_n, etypes, inv_cnt):
    f32 = jnp.float32
    bf16 = jnp.bfloat16
    T, H, D, N, TILE = num_types, n_heads, out_dim, n_src, tile_n

    def kernel(alpha_ref, x_ref, qw_ref, qb_ref, kw_ref, kb_ref, vw_ref, vb_ref,
               aw_ref, ab_ref, attm_ref, msgm_ref, pri_ref, out_ref):
        row0 = pl.multiple_of(pl.program_id(0) * TILE, TILE)

        # ---- src-side k/v projections for every node type (hoisted), with the
        #      per-head broadcast done once (heads become the matmul batch dim).
        k_b3, v_b3 = [], []
        for u in range(T):
            x_u = x_ref[u]                                          # [N, IN_PAD] bf16
            k_u = jnp.dot(x_u, kw_ref[u],
                          preferred_element_type=f32) + kb_ref[u]   # [N, D] f32
            v_u = jnp.dot(x_u, vw_ref[u],
                          preferred_element_type=f32) + vb_ref[u]
            k_b3.append(jnp.broadcast_to(k_u.astype(bf16)[None], (H, N, D)))
            v_b3.append(jnp.broadcast_to(v_u.astype(bf16)[None], (H, N, D)))

        # ---- per dst type: q for this dst tile, attention over all relations
        #      that target it (statically known), mean, a-linear, skip mix.
        for t in range(T):
            x_dst = x_ref[t, pl.ds(row0, TILE), :]                  # [TILE, IN_PAD] bf16
            q_t = jnp.dot(x_dst, qw_ref[t],
                          preferred_element_type=f32) + qb_ref[t]   # [TILE, D] f32
            q_b3 = jnp.broadcast_to(q_t.astype(bf16)[None], (H, TILE, D))

            acc = jnp.zeros((TILE, D), f32)
            for (src_t, r, dst_t) in etypes:
                if dst_t != t:
                    continue
                # Head-block-masked relation matrices: one batched MXU einsum
                # per step, contraction depth D, no per-head lane slicing.
                key3 = jnp.einsum('hse,hed->hsd', k_b3[src_t], attm_ref[r],
                                  preferred_element_type=f32)        # [H, N, D]
                val3 = jnp.einsum('hse,hed->hsd', v_b3[src_t], msgm_ref[r],
                                  preferred_element_type=f32)        # [H, N, D]
                s3 = jnp.einsum('hnd,hsd->hns', q_b3, key3.astype(bf16),
                                preferred_element_type=f32)          # [H, TILE, N]
                # relation_pri / sqrt(d_k) applied to f32 scores (post-matmul).
                s3 = s3 * pri_ref[r]
                s3 = s3 - jnp.max(s3, axis=-1, keepdims=True)
                p = jnp.exp(s3)
                # approx reciprocal on the EUP slot (documented accuracy trade)
                p = p * pl.reciprocal(jnp.sum(p, axis=-1, keepdims=True),
                                      approx=True)
                o3 = jnp.einsum('hns,hsd->hnd', p.astype(bf16),
                                val3.astype(bf16),
                                preferred_element_type=f32)          # [H, TILE, D]
                # masked heads: only the owning head contributes to each column
                acc = acc + jnp.sum(o3, axis=0)                      # [TILE, D]

            t_mean = acc * inv_cnt[t]                                # cross_reducer='mean'
            trans = jnp.dot(t_mean.astype(bf16), aw_ref[t],
                            preferred_element_type=f32) + ab_ref[t]  # [TILE, OUT_PAD]
            alpha = alpha_ref[t]                                     # SMEM scalar
            # lane-dense [TILE, 128] unmasked store (padded cols are exact zeros)
            out_ref[t] = trans * alpha + x_dst.astype(f32) * (1.0 - alpha)

    return kernel


# ----------------------------------------------------------------------------
# Host-side wrapper (layout plumbing only)
# ----------------------------------------------------------------------------
def _head_masked(rel, n_heads, d_k, D):
    # [R, H, dk, dk] -> [R, H, D, D]: head h's dk x dk block sits at
    # (h*dk, h*dk); everything else is zero (masks the full-D contraction).
    R = rel.shape[0]
    out = jnp.zeros((R, n_heads, D, D), rel.dtype)
    for h in range(n_heads):
        out = out.at[:, h, h * d_k:(h + 1) * d_k, h * d_k:(h + 1) * d_k].set(rel[:, h])
    return out


def _full_block(a):
    # whole-array VMEM block (constant index map; stays resident across steps)
    return pl.BlockSpec(a.shape, lambda *_: (0,) * a.ndim)


def hgt_forward(node_feats, params, canonical_etypes, n_heads, d_k, out_dim,
                *, dst_tile=8):
    T = len(node_feats)
    N, in_dim = node_feats[0].shape
    assert all(x.shape == (N, in_dim) for x in node_feats)
    assert in_dim == out_dim, "residual skip mix requires in_dim == out_dim"
    D, H = out_dim, n_heads
    R = params["relation_att"].shape[0]
    LANE = 128
    IN_PAD = -(-in_dim // LANE) * LANE
    OUT_PAD = -(-out_dim // LANE) * LANE
    assert IN_PAD == OUT_PAD
    TILE = min(dst_tile, N)
    assert TILE % 8 == 0 and N % TILE == 0
    steps = N // TILE

    bf16 = jnp.bfloat16
    # bf16 node features, zero-padded to 128 lanes (lane-dense loads + residual)
    x_p = jnp.pad(jnp.stack(node_feats),
                  ((0, 0), (0, 0), (0, IN_PAD - in_dim))).astype(bf16)

    def pad_in_rows(w):  # [T, in, D] -> [T, IN_PAD, D] bf16
        return jnp.pad(w, ((0, 0), (0, IN_PAD - in_dim), (0, 0))).astype(bf16)

    q_w, k_w, v_w = (pad_in_rows(params[n + "_w"]) for n in ("q", "k", "v"))
    q_b = params["q_b"][:, None, :].astype(jnp.float32)
    k_b = params["k_b"][:, None, :].astype(jnp.float32)
    v_b = params["v_b"][:, None, :].astype(jnp.float32)
    a_w = jnp.pad(params["a_w"],
                  ((0, 0), (0, 0), (0, OUT_PAD - out_dim))).astype(bf16)
    a_b = jnp.pad(params["a_b"],
                  ((0, 0), (0, OUT_PAD - out_dim)))[:, None, :].astype(jnp.float32)
    att_m = _head_masked(params["relation_att"], H, d_k, D).astype(bf16)
    msg_m = _head_masked(params["relation_msg"], H, d_k, D).astype(bf16)
    # pri / sqrt(d_k) precomputed host-side; applied to f32 scores in-kernel
    pri = (params["relation_pri"] / math.sqrt(d_k)).astype(jnp.float32)
    pri = pri.reshape(R, H, 1, 1)
    alpha = jax.nn.sigmoid(params["skip"]).astype(jnp.float32)       # [T] SMEM

    cnt = [0] * T
    for (_s, _r, d) in canonical_etypes:
        cnt[d] += 1
    assert all(c > 0 for c in cnt), "every node type must receive messages"
    inv_cnt = tuple(1.0 / c for c in cnt)

    kernel = _make_kernel(T, H, D, N, TILE, tuple(canonical_etypes), inv_cnt)

    vmem_args = (x_p, q_w, q_b, k_w, k_b, v_w, v_b, a_w, a_b, att_m, msg_m, pri)

    # advisory cost estimate for the XLA scheduler
    n_rel = len(canonical_etypes)
    flops = 0
    flops += steps * T * 2 * (2 * N * IN_PAD * D)          # src k, v projections
    flops += steps * T * (2 * TILE * IN_PAD * D)           # dst q projection
    flops += steps * n_rel * (2 * (2 * H * N * D * D)      # key/val transforms
                              + 2 * H * TILE * N * D       # scores
                              + 2 * H * TILE * N * D)      # attn @ val
    flops += steps * T * (2 * TILE * D * OUT_PAD)          # a-linear
    transcendentals = steps * n_rel * H * TILE * N
    bytes_accessed = int(sum(int(a.size) * a.dtype.itemsize
                             for a in (alpha,) + vmem_args)
                         + T * N * OUT_PAD * 4)

    out = pl.pallas_call(
        kernel,
        out_shape=jax.ShapeDtypeStruct((T, N, OUT_PAD), jnp.float32),
        grid=(steps,),
        in_specs=[pl.BlockSpec(memory_space=pltpu.MemorySpace.SMEM)]
                 + [_full_block(a) for a in vmem_args],
        out_specs=pl.BlockSpec((T, TILE, OUT_PAD), lambda i: (0, i, 0)),
        compiler_params=pltpu.CompilerParams(
            dimension_semantics=("parallel",),
            # generous but v7x-safe (64 MiB physical per TC); usage here is tiny
            vmem_limit_bytes=48 * 1024 * 1024),
        cost_estimate=pl.CostEstimate(flops=int(flops),
                                      transcendentals=int(transcendentals),
                                      bytes_accessed=bytes_accessed),
    )(alpha, *vmem_args)

    return [out[t, :, :out_dim] for t in range(T)]


# ----------------------------------------------------------------------------
# Parameters (deterministic synthetic init mirroring HGTLayer.__init__ shapes)
# ----------------------------------------------------------------------------
def init_params(key, in_dim, out_dim, num_types, num_relations, n_heads):
    d_k = out_dim // n_heads

    def lin_init(k, din, dout):
        bound = 1.0 / math.sqrt(din)
        kw, kb = jax.random.split(k)
        w = jax.random.uniform(kw, (din, dout), jnp.float32, -bound, bound)
        b = jax.random.uniform(kb, (dout,), jnp.float32, -bound, bound)
        return w, b

    keys = jax.random.split(key, 4 * num_types + 2)
    params = {"k_w": [], "k_b": [], "q_w": [], "q_b": [],
              "v_w": [], "v_b": [], "a_w": [], "a_b": []}
    ki = 0
    for _ in range(num_types):
        for name, din in (("k", in_dim), ("q", in_dim), ("v", in_dim), ("a", out_dim)):
            w, b = lin_init(keys[ki], din, out_dim)
            ki += 1
            params[name + "_w"].append(w)
            params[name + "_b"].append(b)
    for name in ("k", "q", "v", "a"):
        params[name + "_w"] = jnp.stack(params[name + "_w"])
        params[name + "_b"] = jnp.stack(params[name + "_b"])

    fan_in = n_heads * d_k * d_k
    fan_out = num_relations * d_k * d_k
    bound = math.sqrt(6.0 / (fan_in + fan_out))
    params["relation_att"] = jax.random.uniform(
        keys[ki], (num_relations, n_heads, d_k, d_k), jnp.float32, -bound, bound)
    params["relation_msg"] = jax.random.uniform(
        keys[ki + 1], (num_relations, n_heads, d_k, d_k), jnp.float32, -bound, bound)
    params["relation_pri"] = jnp.ones((num_relations, n_heads), jnp.float32)
    params["skip"] = jnp.ones((num_types,), jnp.float32)
    return params


# ----------------------------------------------------------------------------
# Pure-JAX f32 reference (same math, highest precision) for verification
# ----------------------------------------------------------------------------
def reference_forward(node_feats, params, canonical_etypes, n_heads, d_k, out_dim):
    hi = lax.Precision.HIGHEST
    sqrt_dk = math.sqrt(d_k)
    proj = []
    for t, x in enumerate(node_feats):
        n = x.shape[0]
        k = (jnp.dot(x, params["k_w"][t], precision=hi)
             + params["k_b"][t]).reshape(n, n_heads, d_k)
        q = (jnp.dot(x, params["q_w"][t], precision=hi)
             + params["q_b"][t]).reshape(n, n_heads, d_k)
        v = (jnp.dot(x, params["v_w"][t], precision=hi)
             + params["v_b"][t]).reshape(n, n_heads, d_k)
        proj.append((k, q, v))
    t_acc = {t: [] for t in range(len(node_feats))}
    for (src_t, r, dst_t) in canonical_etypes:
        k_src, _, v_src = proj[src_t]
        _, q_dst, _ = proj[dst_t]
        key = jnp.einsum("shd,hde->she", k_src, params["relation_att"][r], precision=hi)
        val = jnp.einsum("shd,hde->she", v_src, params["relation_msg"][r], precision=hi)
        scores = jnp.einsum("nhd,shd->nhs", q_dst, key, precision=hi)
        scores = scores * params["relation_pri"][r][None, :, None] / sqrt_dk
        att = jax.nn.softmax(scores, axis=-1)
        h = jnp.einsum("nhs,shd->nhd", att, val, precision=hi)
        t_acc[dst_t].append(h.reshape(-1, out_dim))
    outs = []
    for t, x in enumerate(node_feats):
        t_mean = jnp.mean(jnp.stack(t_acc[t], axis=0), axis=0)  # cross_reducer='mean'
        alpha = jax.nn.sigmoid(params["skip"][t])
        trans = jnp.dot(t_mean, params["a_w"][t], precision=hi) + params["a_b"][t]
        outs.append(trans * alpha + x * (1.0 - alpha))
    return outs


# ----------------------------------------------------------------------------
if __name__ == "__main__":
    in_dim = 32
    out_dim = 32          # must equal in_dim for the residual skip mix
    num_types = 2
    num_relations = 3
    n_heads = 4
    d_k = out_dim // n_heads
    n_nodes = 16          # nodes per type (2 dst tiles of 8 -> exercises grid)

    # synthetic heterograph: (src_type, relation_id, dst_type), fully connected
    canonical_etypes = [(0, 0, 1), (1, 1, 0), (0, 2, 0)]

    root = jax.random.PRNGKey(0)
    kp, kx0, kx1 = jax.random.split(root, 3)
    params = init_params(kp, in_dim, out_dim, num_types, num_relations, n_heads)
    node_feats = [
        jax.random.normal(kx0, (n_nodes, in_dim), jnp.float32),
        jax.random.normal(kx1, (n_nodes, in_dim), jnp.float32),
    ]

    outs = hgt_forward(node_feats, params, canonical_etypes, n_heads, d_k, out_dim)
    outs = [jax.block_until_ready(o) for o in outs]

    refs = reference_forward(node_feats, params, canonical_etypes, n_heads, d_k, out_dim)
    for o, r in zip(outs, refs):
        assert o.shape == r.shape and o.dtype == jnp.float32
        # kernel uses bf16 matmul operands / bf16 features (f32 accumulation)
        assert jnp.allclose(o, r, rtol=2e-2, atol=2e-2), "mismatch vs pure-JAX reference"

    print("KERNEL_OK")
</pallas_src>

<mosaic_0001>
module attributes {stable_mosaic.version = 11 : i64} {
  func.func @kernel(%arg0: i32, %arg1: memref<2xf32, #tpu.memory_space<smem>>, %arg2: memref<2x16x128xbf16, #tpu.memory_space<vmem>>, %arg3: memref<2x128x32xbf16, #tpu.memory_space<vmem>>, %arg4: memref<2x1x32xf32, #tpu.memory_space<vmem>>, %arg5: memref<2x128x32xbf16, #tpu.memory_space<vmem>>, %arg6: memref<2x1x32xf32, #tpu.memory_space<vmem>>, %arg7: memref<2x128x32xbf16, #tpu.memory_space<vmem>>, %arg8: memref<2x1x32xf32, #tpu.memory_space<vmem>>, %arg9: memref<2x32x128xbf16, #tpu.memory_space<vmem>>, %arg10: memref<2x1x128xf32, #tpu.memory_space<vmem>>, %arg11: memref<3x4x32x32xbf16, #tpu.memory_space<vmem>>, %arg12: memref<3x4x32x32xbf16, #tpu.memory_space<vmem>>, %arg13: memref<3x4x1x1xf32, #tpu.memory_space<vmem>>, %arg14: memref<2x8x128xf32, #tpu.memory_space<vmem>>) attributes {dimension_semantics = [#tpu.dimension_semantics<parallel>], iteration_bounds = array<i64: 2>, scalar_prefetch = 0 : i64, scratch_operands = 0 : i64, tpu.core_type = #tpu.core_type<tc>, window_params = [{transform_indices = @transform_0, window_bounds = array<i64: 2>}, {pipeline_mode = #tpu.pipeline_mode<synchronous>, transform_indices = @transform_1, window_bounds = array<i64: 2, 16, 128>}, {pipeline_mode = #tpu.pipeline_mode<synchronous>, transform_indices = @transform_2, window_bounds = array<i64: 2, 128, 32>}, {pipeline_mode = #tpu.pipeline_mode<synchronous>, transform_indices = @transform_3, window_bounds = array<i64: 2, 1, 32>}, {pipeline_mode = #tpu.pipeline_mode<synchronous>, transform_indices = @transform_4, window_bounds = array<i64: 2, 128, 32>}, {pipeline_mode = #tpu.pipeline_mode<synchronous>, transform_indices = @transform_5, window_bounds = array<i64: 2, 1, 32>}, {pipeline_mode = #tpu.pipeline_mode<synchronous>, transform_indices = @transform_6, window_bounds = array<i64: 2, 128, 32>}, {pipeline_mode = #tpu.pipeline_mode<synchronous>, transform_indices = @transform_7, window_bounds = array<i64: 2, 1, 32>}, {pipeline_mode = #tpu.pipeline_mode<synchronous>, transform_indices = @transform_8, window_bounds = array<i64: 2, 32, 128>}, {pipeline_mode = #tpu.pipeline_mode<synchronous>, transform_indices = @transform_9, window_bounds = array<i64: 2, 1, 128>}, {pipeline_mode = #tpu.pipeline_mode<synchronous>, transform_indices = @transform_10, window_bounds = array<i64: 3, 4, 32, 32>}, {pipeline_mode = #tpu.pipeline_mode<synchronous>, transform_indices = @transform_11, window_bounds = array<i64: 3, 4, 32, 32>}, {pipeline_mode = #tpu.pipeline_mode<synchronous>, transform_indices = @transform_12, window_bounds = array<i64: 3, 4, 1, 1>}, {transform_indices = @transform_13, window_bounds = array<i64: 2, 8, 128>}]} {
    %c8_i32 = arith.constant 8 : i32
    %0 = arith.muli %arg0, %c8_i32 : i32
    %1 = tpu.assume_multiple %0, 8 : i32
    %c0 = arith.constant 0 : index
    %c0_0 = arith.constant 0 : index
    %c0_1 = arith.constant 0 : index
    %2 = vector.load %arg2[%c0, %c0_0, %c0_1] : memref<2x16x128xbf16, #tpu.memory_space<vmem>>, vector<1x16x128xbf16>
    %3 = vector.shape_cast %2 : vector<1x16x128xbf16> to vector<16x128xbf16>
    %c0_2 = arith.constant 0 : index
    %c0_3 = arith.constant 0 : index
    %c0_4 = arith.constant 0 : index
    %4 = vector.load %arg5[%c0_2, %c0_3, %c0_4] : memref<2x128x32xbf16, #tpu.memory_space<vmem>>, vector<1x128x32xbf16>
    %5 = vector.shape_cast %4 : vector<1x128x32xbf16> to vector<128x32xbf16>
    %cst = arith.constant dense<0.000000e+00> : vector<16x32xf32>
    %6 = tpu.matmul %3, %5, %cst {dimension_numbers = #tpu.dot_dimension_numbers<[1], [0], [0], [1], [0, 0, 1, 1], [], []>} : vector<16x128xbf16>, vector<128x32xbf16>, vector<16x32xf32> -> vector<16x32xf32>
    %c0_5 = arith.constant 0 : index
    %c0_6 = arith.constant 0 : index
    %c0_7 = arith.constant 0 : index
    %7 = vector.load %arg6[%c0_5, %c0_6, %c0_7] : memref<2x1x32xf32, #tpu.memory_space<vmem>>, vector<1x1x32xf32>
    %8 = vector.shape_cast %7 : vector<1x1x32xf32> to vector<1x32xf32>
    %9 = vector.broadcast %8 : vector<1x32xf32> to vector<16x32xf32>
    %10 = arith.addf %6, %9 : vector<16x32xf32>
    %c0_8 = arith.constant 0 : index
    %c0_9 = arith.constant 0 : index
    %c0_10 = arith.constant 0 : index
    %11 = vector.load %arg7[%c0_8, %c0_9, %c0_10] : memref<2x128x32xbf16, #tpu.memory_space<vmem>>, vector<1x128x32xbf16>
    %12 = vector.shape_cast %11 : vector<1x128x32xbf16> to vector<128x32xbf16>
    %cst_11 = arith.constant dense<0.000000e+00> : vector<16x32xf32>
    %13 = tpu.matmul %3, %12, %cst_11 {dimension_numbers = #tpu.dot_dimension_numbers<[1], [0], [0], [1], [0, 0, 1, 1], [], []>} : vector<16x128xbf16>, vector<128x32xbf16>, vector<16x32xf32> -> vector<16x32xf32>
    %c0_12 = arith.constant 0 : index
    %c0_13 = arith.constant 0 : index
    %c0_14 = arith.constant 0 : index
    %14 = vector.load %arg8[%c0_12, %c0_13, %c0_14] : memref<2x1x32xf32, #tpu.memory_space<vmem>>, vector<1x1x32xf32>
    %15 = vector.shape_cast %14 : vector<1x1x32xf32> to vector<1x32xf32>
    %16 = vector.broadcast %15 : vector<1x32xf32> to vector<16x32xf32>
    %17 = arith.addf %13, %16 : vector<16x32xf32>
    %18 = arith.truncf %10 : vector<16x32xf32> to vector<16x32xbf16>
    %19 = vector.shape_cast %18 : vector<16x32xbf16> to vector<1x16x32xbf16>
    %20 = vector.shape_cast %19 : vector<1x16x32xbf16> to vector<1x16x32xbf16>
    %21 = vector.broadcast %20 : vector<1x16x32xbf16> to vector<4x16x32xbf16>
    %22 = arith.truncf %17 : vector<16x32xf32> to vector<16x32xbf16>
    %23 = vector.shape_cast %22 : vector<16x32xbf16> to vector<1x16x32xbf16>
    %24 = vector.shape_cast %23 : vector<1x16x32xbf16> to vector<1x16x32xbf16>
    %25 = vector.broadcast %24 : vector<1x16x32xbf16> to vector<4x16x32xbf16>
    %c1 = arith.constant 1 : index
    %c0_15 = arith.constant 0 : index
    %c0_16 = arith.constant 0 : index
    %26 = vector.load %arg2[%c1, %c0_15, %c0_16] : memref<2x16x128xbf16, #tpu.memory_space<vmem>>, vector<1x16x128xbf16>
    %27 = vector.shape_cast %26 : vector<1x16x128xbf16> to vector<16x128xbf16>
    %c1_17 = arith.constant 1 : index
    %c0_18 = arith.constant 0 : index
    %c0_19 = arith.constant 0 : index
    %28 = vector.load %arg5[%c1_17, %c0_18, %c0_19] : memref<2x128x32xbf16, #tpu.memory_space<vmem>>, vector<1x128x32xbf16>
    %29 = vector.shape_cast %28 : vector<1x128x32xbf16> to vector<128x32xbf16>
    %cst_20 = arith.constant dense<0.000000e+00> : vector<16x32xf32>
    %30 = tpu.matmul %27, %29, %cst_20 {dimension_numbers = #tpu.dot_dimension_numbers<[1], [0], [0], [1], [0, 0, 1, 1], [], []>} : vector<16x128xbf16>, vector<128x32xbf16>, vector<16x32xf32> -> vector<16x32xf32>
    %c1_21 = arith.constant 1 : index
    %c0_22 = arith.constant 0 : index
    %c0_23 = arith.constant 0 : index
    %31 = vector.load %arg6[%c1_21, %c0_22, %c0_23] : memref<2x1x32xf32, #tpu.memory_space<vmem>>, vector<1x1x32xf32>
    %32 = vector.shape_cast %31 : vector<1x1x32xf32> to vector<1x32xf32>
    %33 = vector.broadcast %32 : vector<1x32xf32> to vector<16x32xf32>
    %34 = arith.addf %30, %33 : vector<16x32xf32>
    %c1_24 = arith.constant 1 : index
    %c0_25 = arith.constant 0 : index
    %c0_26 = arith.constant 0 : index
    %35 = vector.load %arg7[%c1_24, %c0_25, %c0_26] : memref<2x128x32xbf16, #tpu.memory_space<vmem>>, vector<1x128x32xbf16>
    %36 = vector.shape_cast %35 : vector<1x128x32xbf16> to vector<128x32xbf16>
    %cst_27 = arith.constant dense<0.000000e+00> : vector<16x32xf32>
    %37 = tpu.matmul %27, %36, %cst_27 {dimension_numbers = #tpu.dot_dimension_numbers<[1], [0], [0], [1], [0, 0, 1, 1], [], []>} : vector<16x128xbf16>, vector<128x32xbf16>, vector<16x32xf32> -> vector<16x32xf32>
    %c1_28 = arith.constant 1 : index
    %c0_29 = arith.constant 0 : index
    %c0_30 = arith.constant 0 : index
    %38 = vector.load %arg8[%c1_28, %c0_29, %c0_30] : memref<2x1x32xf32, #tpu.memory_space<vmem>>, vector<1x1x32xf32>
    %39 = vector.shape_cast %38 : vector<1x1x32xf32> to vector<1x32xf32>
    %40 = vector.broadcast %39 : vector<1x32xf32> to vector<16x32xf32>
    %41 = arith.addf %37, %40 : vector<16x32xf32>
    %42 = arith.truncf %34 : vector<16x32xf32> to vector<16x32xbf16>
    %43 = vector.shape_cast %42 : vector<16x32xbf16> to vector<1x16x32xbf16>
    %44 = vector.shape_cast %43 : vector<1x16x32xbf16> to vector<1x16x32xbf16>
    %45 = vector.broadcast %44 : vector<1x16x32xbf16> to vector<4x16x32xbf16>
    %46 = arith.truncf %41 : vector<16x32xf32> to vector<16x32xbf16>
    %47 = vector.shape_cast %46 : vector<16x32xbf16> to vector<1x16x32xbf16>
    %48 = vector.shape_cast %47 : vector<1x16x32xbf16> to vector<1x16x32xbf16>
    %49 = vector.broadcast %48 : vector<1x16x32xbf16> to vector<4x16x32xbf16>
    %c0_31 = arith.constant 0 : index
    %50 = arith.index_cast %1 : i32 to index
    %c0_32 = arith.constant 0 : index
    %51 = vector.load %arg2[%c0_31, %50, %c0_32] : memref<2x16x128xbf16, #tpu.memory_space<vmem>>, vector<1x8x128xbf16>
    %52 = vector.shape_cast %51 : vector<1x8x128xbf16> to vector<8x128xbf16>
    %c0_33 = arith.constant 0 : index
    %c0_34 = arith.constant 0 : index
    %c0_35 = arith.constant 0 : index
    %53 = vector.load %arg3[%c0_33, %c0_34, %c0_35] : memref<2x128x32xbf16, #tpu.memory_space<vmem>>, vector<1x128x32xbf16>
    %54 = vector.shape_cast %53 : vector<1x128x32xbf16> to vector<128x32xbf16>
    %cst_36 = arith.constant dense<0.000000e+00> : vector<8x32xf32>
    %55 = tpu.matmul %52, %54, %cst_36 {dimension_numbers = #tpu.dot_dimension_numbers<[1], [0], [0], [1], [0, 0, 1, 1], [], []>} : vector<8x128xbf16>, vector<128x32xbf16>, vector<8x32xf32> -> vector<8x32xf32>
    %c0_37 = arith.constant 0 : index
    %c0_38 = arith.constant 0 : index
    %c0_39 = arith.constant 0 : index
    %56 = vector.load %arg4[%c0_37, %c0_38, %c0_39] : memref<2x1x32xf32, #tpu.memory_space<vmem>>, vector<1x1x32xf32>
    %57 = vector.shape_cast %56 : vector<1x1x32xf32> to vector<1x32xf32>
    %58 = vector.broadcast %57 : vector<1x32xf32> to vector<8x32xf32>
    %59 = arith.addf %55, %58 : vector<8x32xf32>
    %60 = arith.truncf %59 : vector<8x32xf32> to vector<8x32xbf16>
    %61 = vector.shape_cast %60 : vector<8x32xbf16> to vector<1x8x32xbf16>
    %62 = vector.shape_cast %61 : vector<1x8x32xbf16> to vector<1x8x32xbf16>
    %63 = vector.broadcast %62 : vector<1x8x32xbf16> to vector<4x8x32xbf16>
    %cst_40 = arith.constant 0.000000e+00 : f32
    %64 = vector.broadcast %cst_40 : f32 to vector<8x32xf32>
    %c1_41 = arith.constant 1 : index
    %c0_42 = arith.constant 0 : index
    %c0_43 = arith.constant 0 : index
    %c0_44 = arith.constant 0 : index
    %65 = vector.load %arg11[%c1_41, %c0_42, %c0_43, %c0_44] : memref<3x4x32x32xbf16, #tpu.memory_space<vmem>>, vector<1x4x32x32xbf16>
    %66 = vector.shape_cast %65 : vector<1x4x32x32xbf16> to vector<4x32x32xbf16>
    "tpu.trace_start"() <{level = 10 : i32, message = "hse,hed->hsd"}> : () -> ()
    %cst_45 = arith.constant dense<0.000000e+00> : vector<4x16x32xf32>
    %67 = tpu.matmul %45, %66, %cst_45 {dimension_numbers = #tpu.dot_dimension_numbers<[2], [1], [1], [2], [0, 0, 0, 1, 1, 2], [0], [0]>} : vector<4x16x32xbf16>, vector<4x32x32xbf16>, vector<4x16x32xf32> -> vector<4x16x32xf32>
    "tpu.trace_stop"() : () -> ()
    %c1_46 = arith.constant 1 : index
    %c0_47 = arith.constant 0 : index
    %c0_48 = arith.constant 0 : index
    %c0_49 = arith.constant 0 : index
    %68 = vector.load %arg12[%c1_46, %c0_47, %c0_48, %c0_49] : memref<3x4x32x32xbf16, #tpu.memory_space<vmem>>, vector<1x4x32x32xbf16>
    %69 = vector.shape_cast %68 : vector<1x4x32x32xbf16> to vector<4x32x32xbf16>
    "tpu.trace_start"() <{level = 10 : i32, message = "hse,hed->hsd"}> : () -> ()
    %cst_50 = arith.constant dense<0.000000e+00> : vector<4x16x32xf32>
    %70 = tpu.matmul %49, %69, %cst_50 {dimension_numbers = #tpu.dot_dimension_numbers<[2], [1], [1], [2], [0, 0, 0, 1, 1, 2], [0], [0]>} : vector<4x16x32xbf16>, vector<4x32x32xbf16>, vector<4x16x32xf32> -> vector<4x16x32xf32>
    "tpu.trace_stop"() : () -> ()
    %71 = arith.truncf %67 : vector<4x16x32xf32> to vector<4x16x32xbf16>
    "tpu.trace_start"() <{level = 10 : i32, message = "hnd,hsd->hns"}> : () -> ()
    %cst_51 = arith.constant dense<0.000000e+00> : vector<4x8x16xf32>
    %72 = tpu.matmul %63, %71, %cst_51 {dimension_numbers = #tpu.dot_dimension_numbers<[2], [2], [1], [1], [0, 0, 0, 1, 1, 1], [0], [0]>} : vector<4x8x32xbf16>, vector<4x16x32xbf16>, vector<4x8x16xf32> -> vector<4x8x16xf32>
    "tpu.trace_stop"() : () -> ()
    %c1_52 = arith.constant 1 : index
    %c0_53 = arith.constant 0 : index
    %c0_54 = arith.constant 0 : index
    %c0_55 = arith.constant 0 : index
    %73 = vector.load %arg13[%c1_52, %c0_53, %c0_54, %c0_55] : memref<3x4x1x1xf32, #tpu.memory_space<vmem>>, vector<1x4x1x1xf32>
    %74 = vector.shape_cast %73 : vector<1x4x1x1xf32> to vector<4x1x1xf32>
    %75 = vector.broadcast %74 : vector<4x1x1xf32> to vector<4x8x16xf32>
    %76 = arith.mulf %72, %75 : vector<4x8x16xf32>
    %cst_56 = arith.constant dense<0xFF800000> : vector<4x8xf32>
    %77 = vector.multi_reduction <maximumf>, %76, %cst_56 [2] : vector<4x8x16xf32> to vector<4x8xf32>
    %78 = vector.shape_cast %77 : vector<4x8xf32> to vector<4x8x1xf32>
    %79 = vector.broadcast %78 : vector<4x8x1xf32> to vector<4x8x16xf32>
    %80 = arith.subf %76, %79 : vector<4x8x16xf32>
    %81 = math.exp %80 : vector<4x8x16xf32>
    %cst_57 = arith.constant dense<0.000000e+00> : vector<4x8xf32>
    %82 = vector.multi_reduction <add>, %81, %cst_57 [2] : vector<4x8x16xf32> to vector<4x8xf32>
    %83 = vector.shape_cast %82 : vector<4x8xf32> to vector<4x8x1xf32>
    %84 = tpu.reciprocal %83 {approx = true} : vector<4x8x1xf32> -> vector<4x8x1xf32>
    %85 = vector.broadcast %84 : vector<4x8x1xf32> to vector<4x8x16xf32>
    %86 = arith.mulf %81, %85 : vector<4x8x16xf32>
    %87 = arith.truncf %86 : vector<4x8x16xf32> to vector<4x8x16xbf16>
    %88 = arith.truncf %70 : vector<4x16x32xf32> to vector<4x16x32xbf16>
    "tpu.trace_start"() <{level = 10 : i32, message = "hns,hsd->hnd"}> : () -> ()
    %cst_58 = arith.constant dense<0.000000e+00> : vector<4x8x32xf32>
    %89 = tpu.matmul %87, %88, %cst_58 {dimension_numbers = #tpu.dot_dimension_numbers<[2], [1], [1], [2], [0, 0, 0, 1, 1, 2], [0], [0]>} : vector<4x8x16xbf16>, vector<4x16x32xbf16>, vector<4x8x32xf32> -> vector<4x8x32xf32>
    "tpu.trace_stop"() : () -> ()
    %cst_59 = arith.constant dense<0.000000e+00> : vector<8x32xf32>
    %90 = vector.multi_reduction <add>, %89, %cst_59 [0] : vector<4x8x32xf32> to vector<8x32xf32>
    %91 = arith.addf %64, %90 : vector<8x32xf32>
    %c2 = arith.constant 2 : index
    %c0_60 = arith.constant 0 : index
    %c0_61 = arith.constant 0 : index
    %c0_62 = arith.constant 0 : index
    %92 = vector.load %arg11[%c2, %c0_60, %c0_61, %c0_62] : memref<3x4x32x32xbf16, #tpu.memory_space<vmem>>, vector<1x4x32x32xbf16>
    %93 = vector.shape_cast %92 : vector<1x4x32x32xbf16> to vector<4x32x32xbf16>
    "tpu.trace_start"() <{level = 10 : i32, message = "hse,hed->hsd"}> : () -> ()
    %cst_63 = arith.constant dense<0.000000e+00> : vector<4x16x32xf32>
    %94 = tpu.matmul %21, %93, %cst_63 {dimension_numbers = #tpu.dot_dimension_numbers<[2], [1], [1], [2], [0, 0, 0, 1, 1, 2], [0], [0]>} : vector<4x16x32xbf16>, vector<4x32x32xbf16>, vector<4x16x32xf32> -> vector<4x16x32xf32>
    "tpu.trace_stop"() : () -> ()
    %c2_64 = arith.constant 2 : index
    %c0_65 = arith.constant 0 : index
    %c0_66 = arith.constant 0 : index
    %c0_67 = arith.constant 0 : index
    %95 = vector.load %arg12[%c2_64, %c0_65, %c0_66, %c0_67] : memref<3x4x32x32xbf16, #tpu.memory_space<vmem>>, vector<1x4x32x32xbf16>
    %96 = vector.shape_cast %95 : vector<1x4x32x32xbf16> to vector<4x32x32xbf16>
    "tpu.trace_start"() <{level = 10 : i32, message = "hse,hed->hsd"}> : () -> ()
    %cst_68 = arith.constant dense<0.000000e+00> : vector<4x16x32xf32>
    %97 = tpu.matmul %25, %96, %cst_68 {dimension_numbers = #tpu.dot_dimension_numbers<[2], [1], [1], [2], [0, 0, 0, 1, 1, 2], [0], [0]>} : vector<4x16x32xbf16>, vector<4x32x32xbf16>, vector<4x16x32xf32> -> vector<4x16x32xf32>
    "tpu.trace_stop"() : () -> ()
    %98 = arith.truncf %94 : vector<4x16x32xf32> to vector<4x16x32xbf16>
    "tpu.trace_start"() <{level = 10 : i32, message = "hnd,hsd->hns"}> : () -> ()
    %cst_69 = arith.constant dense<0.000000e+00> : vector<4x8x16xf32>
    %99 = tpu.matmul %63, %98, %cst_69 {dimension_numbers = #tpu.dot_dimension_numbers<[2], [2], [1], [1], [0, 0, 0, 1, 1, 1], [0], [0]>} : vector<4x8x32xbf16>, vector<4x16x32xbf16>, vector<4x8x16xf32> -> vector<4x8x16xf32>
    "tpu.trace_stop"() : () -> ()
    %c2_70 = arith.constant 2 : index
    %c0_71 = arith.constant 0 : index
    %c0_72 = arith.constant 0 : index
    %c0_73 = arith.constant 0 : index
    %100 = vector.load %arg13[%c2_70, %c0_71, %c0_72, %c0_73] : memref<3x4x1x1xf32, #tpu.memory_space<vmem>>, vector<1x4x1x1xf32>
    %101 = vector.shape_cast %100 : vector<1x4x1x1xf32> to vector<4x1x1xf32>
    %102 = vector.broadcast %101 : vector<4x1x1xf32> to vector<4x8x16xf32>
    %103 = arith.mulf %99, %102 : vector<4x8x16xf32>
    %cst_74 = arith.constant dense<0xFF800000> : vector<4x8xf32>
    %104 = vector.multi_reduction <maximumf>, %103, %cst_74 [2] : vector<4x8x16xf32> to vector<4x8xf32>
    %105 = vector.shape_cast %104 : vector<4x8xf32> to vector<4x8x1xf32>
    %106 = vector.broadcast %105 : vector<4x8x1xf32> to vector<4x8x16xf32>
    %107 = arith.subf %103, %106 : vector<4x8x16xf32>
    %108 = math.exp %107 : vector<4x8x16xf32>
    %cst_75 = arith.constant dense<0.000000e+00> : vector<4x8xf32>
    %109 = vector.multi_reduction <add>, %108, %cst_75 [2] : vector<4x8x16xf32> to vector<4x8xf32>
    %110 = vector.shape_cast %109 : vector<4x8xf32> to vector<4x8x1xf32>
    %111 = tpu.reciprocal %110 {approx = true} : vector<4x8x1xf32> -> vector<4x8x1xf32>
    %112 = vector.broadcast %111 : vector<4x8x1xf32> to vector<4x8x16xf32>
    %113 = arith.mulf %108, %112 : vector<4x8x16xf32>
    %114 = arith.truncf %113 : vector<4x8x16xf32> to vector<4x8x16xbf16>
    %115 = arith.truncf %97 : vector<4x16x32xf32> to vector<4x16x32xbf16>
    "tpu.trace_start"() <{level = 10 : i32, message = "hns,hsd->hnd"}> : () -> ()
    %cst_76 = arith.constant dense<0.000000e+00> : vector<4x8x32xf32>
    %116 = tpu.matmul %114, %115, %cst_76 {dimension_numbers = #tpu.dot_dimension_numbers<[2], [1], [1], [2], [0, 0, 0, 1, 1, 2], [0], [0]>} : vector<4x8x16xbf16>, vector<4x16x32xbf16>, vector<4x8x32xf32> -> vector<4x8x32xf32>
    "tpu.trace_stop"() : () -> ()
    %cst_77 = arith.constant dense<0.000000e+00> : vector<8x32xf32>
    %117 = vector.multi_reduction <add>, %116, %cst_77 [0] : vector<4x8x32xf32> to vector<8x32xf32>
    %118 = arith.addf %91, %117 : vector<8x32xf32>
    %cst_78 = arith.constant 5.000000e-01 : f32
    %119 = vector.broadcast %cst_78 : f32 to vector<8x32xf32>
    %120 = arith.mulf %118, %119 : vector<8x32xf32>
    %121 = arith.truncf %120 : vector<8x32xf32> to vector<8x32xbf16>
    %c0_79 = arith.constant 0 : index
    %c0_80 = arith.constant 0 : index
    %c0_81 = arith.constant 0 : index
    %122 = vector.load %arg9[%c0_79, %c0_80, %c0_81] : memref<2x32x128xbf16, #tpu.memory_space<vmem>>, vector<1x32x128xbf16>
    %123 = vector.shape_cast %122 : vector<1x32x128xbf16> to vector<32x128xbf16>
    %cst_82 = arith.constant dense<0.000000e+00> : vector<8x128xf32>
    %124 = tpu.matmul %121, %123, %cst_82 {dimension_numbers = #tpu.dot_dimension_numbers<[1], [0], [0], [1], [0, 0, 1, 1], [], []>} : vector<8x32xbf16>, vector<32x128xbf16>, vector<8x128xf32> -> vector<8x128xf32>
    %c0_83 = arith.constant 0 : index
    %c0_84 = arith.constant 0 : index
    %c0_85 = arith.constant 0 : index
    %125 = vector.load %arg10[%c0_83, %c0_84, %c0_85] : memref<2x1x128xf32, #tpu.memory_space<vmem>>, vector<1x1x128xf32>
    %126 = vector.shape_cast %125 : vector<1x1x128xf32> to vector<1x128xf32>
    %127 = vector.broadcast %126 : vector<1x128xf32> to vector<8x128xf32>
    %128 = arith.addf %124, %127 : vector<8x128xf32>
    %c0_86 = arith.constant 0 : index
    %129 = memref.load %arg1[%c0_86] : memref<2xf32, #tpu.memory_space<smem>>
    %130 = vector.broadcast %129 : f32 to vector<8x128xf32>
    %131 = arith.mulf %128, %130 : vector<8x128xf32>
    %132 = arith.extf %52 : vector<8x128xbf16> to vector<8x128xf32>
    %cst_87 = arith.constant 1.000000e+00 : f32
    %133 = arith.subf %cst_87, %129 : f32
    %134 = vector.broadcast %133 : f32 to vector<8x128xf32>
    %135 = arith.mulf %132, %134 : vector<8x128xf32>
    %136 = arith.addf %131, %135 : vector<8x128xf32>
    %c0_88 = arith.constant 0 : index
    %c0_89 = arith.constant 0 : index
    %c0_90 = arith.constant 0 : index
    %137 = vector.load %arg14[%c0_88, %c0_89, %c0_90] : memref<2x8x128xf32, #tpu.memory_space<vmem>>, vector<1x8x128xf32>
    %138 = vector.shape_cast %137 : vector<1x8x128xf32> to vector<8x128xf32>
    %139 = vector.shape_cast %136 : vector<8x128xf32> to vector<1x8x128xf32>
    tpu.vector_store %arg14[%c0_88, %c0_89, %c0_90], %139 {strides = array<i32>} : memref<2x8x128xf32, #tpu.memory_space<vmem>>, vector<1x8x128xf32>,
    %c1_91 = arith.constant 1 : index
    %140 = arith.index_cast %1 : i32 to index
    %c0_92 = arith.constant 0 : index
    %141 = vector.load %arg2[%c1_91, %140, %c0_92] : memref<2x16x128xbf16, #tpu.memory_space<vmem>>, vector<1x8x128xbf16>
    %142 = vector.shape_cast %141 : vector<1x8x128xbf16> to vector<8x128xbf16>
    %c1_93 = arith.constant 1 : index
    %c0_94 = arith.constant 0 : index
    %c0_95 = arith.constant 0 : index
    %143 = vector.load %arg3[%c1_93, %c0_94, %c0_95] : memref<2x128x32xbf16, #tpu.memory_space<vmem>>, vector<1x128x32xbf16>
    %144 = vector.shape_cast %143 : vector<1x128x32xbf16> to vector<128x32xbf16>
    %cst_96 = arith.constant dense<0.000000e+00> : vector<8x32xf32>
    %145 = tpu.matmul %142, %144, %cst_96 {dimension_numbers = #tpu.dot_dimension_numbers<[1], [0], [0], [1], [0, 0, 1, 1], [], []>} : vector<8x128xbf16>, vector<128x32xbf16>, vector<8x32xf32> -> vector<8x32xf32>
    %c1_97 = arith.constant 1 : index
    %c0_98 = arith.constant 0 : index
    %c0_99 = arith.constant 0 : index
    %146 = vector.load %arg4[%c1_97, %c0_98, %c0_99] : memref<2x1x32xf32, #tpu.memory_space<vmem>>, vector<1x1x32xf32>
    %147 = vector.shape_cast %146 : vector<1x1x32xf32> to vector<1x32xf32>
    %148 = vector.broadcast %147 : vector<1x32xf32> to vector<8x32xf32>
    %149 = arith.addf %145, %148 : vector<8x32xf32>
    %150 = arith.truncf %149 : vector<8x32xf32> to vector<8x32xbf16>
    %151 = vector.shape_cast %150 : vector<8x32xbf16> to vector<1x8x32xbf16>
    %152 = vector.shape_cast %151 : vector<1x8x32xbf16> to vector<1x8x32xbf16>
    %153 = vector.broadcast %152 : vector<1x8x32xbf16> to vector<4x8x32xbf16>
    %cst_100 = arith.constant 0.000000e+00 : f32
    %154 = vector.broadcast %cst_100 : f32 to vector<8x32xf32>
    %c0_101 = arith.constant 0 : index
    %c0_102 = arith.constant 0 : index
    %c0_103 = arith.constant 0 : index
    %c0_104 = arith.constant 0 : index
    %155 = vector.load %arg11[%c0_101, %c0_102, %c0_103, %c0_104] : memref<3x4x32x32xbf16, #tpu.memory_space<vmem>>, vector<1x4x32x32xbf16>
    %156 = vector.shape_cast %155 : vector<1x4x32x32xbf16> to vector<4x32x32xbf16>
    "tpu.trace_start"() <{level = 10 : i32, message = "hse,hed->hsd"}> : () -> ()
    %cst_105 = arith.constant dense<0.000000e+00> : vector<4x16x32xf32>
    %157 = tpu.matmul %21, %156, %cst_105 {dimension_numbers = #tpu.dot_dimension_numbers<[2], [1], [1], [2], [0, 0, 0, 1, 1, 2], [0], [0]>} : vector<4x16x32xbf16>, vector<4x32x32xbf16>, vector<4x16x32xf32> -> vector<4x16x32xf32>
    "tpu.trace_stop"() : () -> ()
    %c0_106 = arith.constant 0 : index
    %c0_107 = arith.constant 0 : index
    %c0_108 = arith.constant 0 : index
    %c0_109 = arith.constant 0 : index
    %158 = vector.load %arg12[%c0_106, %c0_107, %c0_108, %c0_109] : memref<3x4x32x32xbf16, #tpu.memory_space<vmem>>, vector<1x4x32x32xbf16>
    %159 = vector.shape_cast %158 : vector<1x4x32x32xbf16> to vector<4x32x32xbf16>
    "tpu.trace_start"() <{level = 10 : i32, message = "hse,hed->hsd"}> : () -> ()
    %cst_110 = arith.constant dense<0.000000e+00> : vector<4x16x32xf32>
    %160 = tpu.matmul %25, %159, %cst_110 {dimension_numbers = #tpu.dot_dimension_numbers<[2], [1], [1], [2], [0, 0, 0, 1, 1, 2], [0], [0]>} : vector<4x16x32xbf16>, vector<4x32x32xbf16>, vector<4x16x32xf32> -> vector<4x16x32xf32>
    "tpu.trace_stop"() : () -> ()
    %161 = arith.truncf %157 : vector<4x16x32xf32> to vector<4x16x32xbf16>
    "tpu.trace_start"() <{level = 10 : i32, message = "hnd,hsd->hns"}> : () -> ()
    %cst_111 = arith.constant dense<0.000000e+00> : vector<4x8x16xf32>
    %162 = tpu.matmul %153, %161, %cst_111 {dimension_numbers = #tpu.dot_dimension_numbers<[2], [2], [1], [1], [0, 0, 0, 1, 1, 1], [0], [0]>} : vector<4x8x32xbf16>, vector<4x16x32xbf16>, vector<4x8x16xf32> -> vector<4x8x16xf32>
    "tpu.trace_stop"() : () -> ()
    %c0_112 = arith.constant 0 : index
    %c0_113 = arith.constant 0 : index
    %c0_114 = arith.constant 0 : index
    %c0_115 = arith.constant 0 : index
    %163 = vector.load %arg13[%c0_112, %c0_113, %c0_114, %c0_115] : memref<3x4x1x1xf32, #tpu.memory_space<vmem>>, vector<1x4x1x1xf32>
    %164 = vector.shape_cast %163 : vector<1x4x1x1xf32> to vector<4x1x1xf32>
    %165 = vector.broadcast %164 : vector<4x1x1xf32> to vector<4x8x16xf32>
    %166 = arith.mulf %162, %165 : vector<4x8x16xf32>
    %cst_116 = arith.constant dense<0xFF800000> : vector<4x8xf32>
    %167 = vector.multi_reduction <maximumf>, %166, %cst_116 [2] : vector<4x8x16xf32> to vector<4x8xf32>
    %168 = vector.shape_cast %167 : vector<4x8xf32> to vector<4x8x1xf32>
    %169 = vector.broadcast %168 : vector<4x8x1xf32> to vector<4x8x16xf32>
    %170 = arith.subf %166, %169 : vector<4x8x16xf32>
    %171 = math.exp %170 : vector<4x8x16xf32>
    %cst_117 = arith.constant dense<0.000000e+00> : vector<4x8xf32>
    %172 = vector.multi_reduction <add>, %171, %cst_117 [2] : vector<4x8x16xf32> to vector<4x8xf32>
    %173 = vector.shape_cast %172 : vector<4x8xf32> to vector<4x8x1xf32>
    %174 = tpu.reciprocal %173 {approx = true} : vector<4x8x1xf32> -> vector<4x8x1xf32>
    %175 = vector.broadcast %174 : vector<4x8x1xf32> to vector<4x8x16xf32>
    %176 = arith.mulf %171, %175 : vector<4x8x16xf32>
    %177 = arith.truncf %176 : vector<4x8x16xf32> to vector<4x8x16xbf16>
    %178 = arith.truncf %160 : vector<4x16x32xf32> to vector<4x16x32xbf16>
    "tpu.trace_start"() <{level = 10 : i32, message = "hns,hsd->hnd"}> : () -> ()
    %cst_118 = arith.constant dense<0.000000e+00> : vector<4x8x32xf32>
    %179 = tpu.matmul %177, %178, %cst_118 {dimension_numbers = #tpu.dot_dimension_numbers<[2], [1], [1], [2], [0, 0, 0, 1, 1, 2], [0], [0]>} : vector<4x8x16xbf16>, vector<4x16x32xbf16>, vector<4x8x32xf32> -> vector<4x8x32xf32>
    "tpu.trace_stop"() : () -> ()
    %cst_119 = arith.constant dense<0.000000e+00> : vector<8x32xf32>
    %180 = vector.multi_reduction <add>, %179, %cst_119 [0] : vector<4x8x32xf32> to vector<8x32xf32>
    %181 = arith.addf %154, %180 : vector<8x32xf32>
    %cst_120 = arith.constant 1.000000e+00 : f32
    %182 = vector.broadcast %cst_120 : f32 to vector<8x32xf32>
    %183 = arith.mulf %181, %182 : vector<8x32xf32>
    %184 = arith.truncf %183 : vector<8x32xf32> to vector<8x32xbf16>
    %c1_121 = arith.constant 1 : index
    %c0_122 = arith.constant 0 : index
    %c0_123 = arith.constant 0 : index
    %185 = vector.load %arg9[%c1_121, %c0_122, %c0_123] : memref<2x32x128xbf16, #tpu.memory_space<vmem>>, vector<1x32x128xbf16>
    %186 = vector.shape_cast %185 : vector<1x32x128xbf16> to vector<32x128xbf16>
    %cst_124 = arith.constant dense<0.000000e+00> : vector<8x128xf32>
    %187 = tpu.matmul %184, %186, %cst_124 {dimension_numbers = #tpu.dot_dimension_numbers<[1], [0], [0], [1], [0, 0, 1, 1], [], []>} : vector<8x32xbf16>, vector<32x128xbf16>, vector<8x128xf32> -> vector<8x128xf32>
    %c1_125 = arith.constant 1 : index
    %c0_126 = arith.constant 0 : index
    %c0_127 = arith.constant 0 : index
    %188 = vector.load %arg10[%c1_125, %c0_126, %c0_127] : memref<2x1x128xf32, #tpu.memory_space<vmem>>, vector<1x1x128xf32>
    %189 = vector.shape_cast %188 : vector<1x1x128xf32> to vector<1x128xf32>
    %190 = vector.broadcast %189 : vector<1x128xf32> to vector<8x128xf32>
    %191 = arith.addf %187, %190 : vector<8x128xf32>
    %c1_128 = arith.constant 1 : index
    %192 = memref.load %arg1[%c1_128] : memref<2xf32, #tpu.memory_space<smem>>
    %193 = vector.broadcast %192 : f32 to vector<8x128xf32>
    %194 = arith.mulf %191, %193 : vector<8x128xf32>
    %195 = arith.extf %142 : vector<8x128xbf16> to vector<8x128xf32>
    %cst_129 = arith.constant 1.000000e+00 : f32
    %196 = arith.subf %cst_129, %192 : f32
    %197 = vector.broadcast %196 : f32 to vector<8x128xf32>
    %198 = arith.mulf %195, %197 : vector<8x128xf32>
    %199 = arith.addf %194, %198 : vector<8x128xf32>
    %c1_130 = arith.constant 1 : index
    %c0_131 = arith.constant 0 : index
    %c0_132 = arith.constant 0 : index
    %200 = vector.load %arg14[%c1_130, %c0_131, %c0_132] : memref<2x8x128xf32, #tpu.memory_space<vmem>>, vector<1x8x128xf32>
    %201 = vector.shape_cast %200 : vector<1x8x128xf32> to vector<8x128xf32>
    %202 = vector.shape_cast %199 : vector<8x128xf32> to vector<1x8x128xf32>
    tpu.vector_store %arg14[%c1_130, %c0_131, %c0_132], %202 {strides = array<i32>} : memref<2x8x128xf32, #tpu.memory_space<vmem>>, vector<1x8x128xf32>,
    return
  }
  func.func @transform_0(%arg0: i32) -> i32 {
    %c0_i32 = arith.constant 0 : i32
    %c0_i32_0 = arith.constant 0 : i32
    return %c0_i32 : i32
  }
  func.func @transform_1(%arg0: i32) -> (i32, i32, i32) {
    %c0_i32 = arith.constant 0 : i32
    %c0_i32_0 = arith.constant 0 : i32
    %c0_i32_1 = arith.constant 0 : i32
    %c0_i32_2 = arith.constant 0 : i32
    return %c0_i32, %c0_i32_0, %c0_i32_1 : i32, i32, i32
  }
  func.func @transform_2(%arg0: i32) -> (i32, i32, i32) {
    %c0_i32 = arith.constant 0 : i32
    %c0_i32_0 = arith.constant 0 : i32
    %c0_i32_1 = arith.constant 0 : i32
    %c0_i32_2 = arith.constant 0 : i32
    return %c0_i32, %c0_i32_0, %c0_i32_1 : i32, i32, i32
  }
  func.func @transform_3(%arg0: i32) -> (i32, i32, i32) {
    %c0_i32 = arith.constant 0 : i32
    %c0_i32_0 = arith.constant 0 : i32
    %c0_i32_1 = arith.constant 0 : i32
    %c0_i32_2 = arith.constant 0 : i32
    return %c0_i32, %c0_i32_0, %c0_i32_1 : i32, i32, i32
  }
  func.func @transform_4(%arg0: i32) -> (i32, i32, i32) {
    %c0_i32 = arith.constant 0 : i32
    %c0_i32_0 = arith.constant 0 : i32
    %c0_i32_1 = arith.constant 0 : i32
    %c0_i32_2 = arith.constant 0 : i32
    return %c0_i32, %c0_i32_0, %c0_i32_1 : i32, i32, i32
  }
  func.func @transform_5(%arg0: i32) -> (i32, i32, i32) {
    %c0_i32 = arith.constant 0 : i32
    %c0_i32_0 = arith.constant 0 : i32
    %c0_i32_1 = arith.constant 0 : i32
    %c0_i32_2 = arith.constant 0 : i32
    return %c0_i32, %c0_i32_0, %c0_i32_1 : i32, i32, i32
  }
  func.func @transform_6(%arg0: i32) -> (i32, i32, i32) {
    %c0_i32 = arith.constant 0 : i32
    %c0_i32_0 = arith.constant 0 : i32
    %c0_i32_1 = arith.constant 0 : i32
    %c0_i32_2 = arith.constant 0 : i32
    return %c0_i32, %c0_i32_0, %c0_i32_1 : i32, i32, i32
  }
  func.func @transform_7(%arg0: i32) -> (i32, i32, i32) {
    %c0_i32 = arith.constant 0 : i32
    %c0_i32_0 = arith.constant 0 : i32
    %c0_i32_1 = arith.constant 0 : i32
    %c0_i32_2 = arith.constant 0 : i32
    return %c0_i32, %c0_i32_0, %c0_i32_1 : i32, i32, i32
  }
  func.func @transform_8(%arg0: i32) -> (i32, i32, i32) {
    %c0_i32 = arith.constant 0 : i32
    %c0_i32_0 = arith.constant 0 : i32
    %c0_i32_1 = arith.constant 0 : i32
    %c0_i32_2 = arith.constant 0 : i32
    return %c0_i32, %c0_i32_0, %c0_i32_1 : i32, i32, i32
  }
  func.func @transform_9(%arg0: i32) -> (i32, i32, i32) {
    %c0_i32 = arith.constant 0 : i32
    %c0_i32_0 = arith.constant 0 : i32
    %c0_i32_1 = arith.constant 0 : i32
    %c0_i32_2 = arith.constant 0 : i32
    return %c0_i32, %c0_i32_0, %c0_i32_1 : i32, i32, i32
  }
  func.func @transform_10(%arg0: i32) -> (i32, i32, i32, i32) {
    %c0_i32 = arith.constant 0 : i32
    %c0_i32_0 = arith.constant 0 : i32
    %c0_i32_1 = arith.constant 0 : i32
    %c0_i32_2 = arith.constant 0 : i32
    %c0_i32_3 = arith.constant 0 : i32
    return %c0_i32, %c0_i32_0, %c0_i32_1, %c0_i32_2 : i32, i32, i32, i32
  }
  func.func @transform_11(%arg0: i32) -> (i32, i32, i32, i32) {
    %c0_i32 = arith.constant 0 : i32
    %c0_i32_0 = arith.constant 0 : i32
    %c0_i32_1 = arith.constant 0 : i32
    %c0_i32_2 = arith.constant 0 : i32
    %c0_i32_3 = arith.constant 0 : i32
    return %c0_i32, %c0_i32_0, %c0_i32_1, %c0_i32_2 : i32, i32, i32, i32
  }
  func.func @transform_12(%arg0: i32) -> (i32, i32, i32, i32) {
    %c0_i32 = arith.constant 0 : i32
    %c0_i32_0 = arith.constant 0 : i32
    %c0_i32_1 = arith.constant 0 : i32
    %c0_i32_2 = arith.constant 0 : i32
    %c0_i32_3 = arith.constant 0 : i32
    return %c0_i32, %c0_i32_0, %c0_i32_1, %c0_i32_2 : i32, i32, i32, i32
  }
  func.func @transform_13(%arg0: i32) -> (i32, i32, i32) {
    %c0_i32 = arith.constant 0 : i32
    %c0_i32_0 = arith.constant 0 : i32
    %c0_i32_1 = arith.constant 0 : i32
    return %c0_i32, %arg0, %c0_i32_0 : i32, i32, i32
  }
}

</mosaic_0001>

<llo_original>
// kernel: tpu_custom_call.1
$region0: #{tpu_custom_call.1}
  #allocation0 [shape = 'u32[]', space=smem, size = 0x4, offset = 0x4, fixed_abs, tag = 'smem constant byte address 0x4 - core index']
  #allocation1 [shape = 'u32[144,128]{1,0:T(1,128)}', space=vmem, size = 0x12000, scoped, tag = 'internal scratch']
  %s0 = inlined_call_operand.vmem [shape: f32[2], index: 0, kind: input, shape index: {}]
  %s1 = inlined_call_operand.hbm [shape: bf16[2,16,128], index: 1, kind: input, shape index: {}]
  %s2 = inlined_call_operand.vmem [shape: bf16[2,128,32], index: 2, kind: input, shape index: {}]
  %s3 = inlined_call_operand.vmem [shape: f32[2,1,32], index: 3, kind: input, shape index: {}]
  %s4 = inlined_call_operand.vmem [shape: bf16[2,128,32], index: 4, kind: input, shape index: {}]
  %s5 = inlined_call_operand.vmem [shape: f32[2,1,32], index: 5, kind: input, shape index: {}]
  %s6 = inlined_call_operand.vmem [shape: bf16[2,128,32], index: 6, kind: input, shape index: {}]
  %s7 = inlined_call_operand.vmem [shape: f32[2,1,32], index: 7, kind: input, shape index: {}]
  %s8 = inlined_call_operand.vmem [shape: bf16[2,32,128], index: 8, kind: input, shape index: {}]
  %s9 = inlined_call_operand.vmem [shape: f32[2,1,128], index: 9, kind: input, shape index: {}]
  %s10 = inlined_call_operand.vmem [shape: bf16[3,4,32,32], index: 10, kind: input, shape index: {}]
  %s11 = inlined_call_operand.vmem [shape: bf16[3,4,32,32], index: 11, kind: input, shape index: {}]
  %s12 = inlined_call_operand.vmem [shape: f32[3,4,1,1], index: 12, kind: input, shape index: {}]
  %s13 = inlined_call_operand.hbm [shape: f32[2,16,128], index: 13, kind: output, shape index: {}]
  %s14 = sld [smem:[#allocation0]]
  $region93: #{tpu_custom_call.1} parent=0
    _
  %s16 = ssub.s32 1, %s14
  %s17 = scalar_select 0, %s16, %s14
  $region1: #{tpu_custom_call.1} parent=0
    #allocation2 [shape = 'u8[512]{0}', space=smem, size = 0x200, scoped, tag = 'input window, operand 0, single buffered']
    #allocation3 [shape = 's32[2]{0}', space=sflag, size = 0x8, scoped, tag = 'scoped memory for tpu_custom_call.1']
    #allocation4 [shape = 's32[2]{0}', space=sflag, size = 0x8, scoped, tag = 'scoped memory for tpu_custom_call.1']
    #allocation5 [shape = 's32[2]{0}', space=sflag, size = 0x8, scoped, tag = 'scoped memory for tpu_custom_call.1']
    #allocation6 [shape = 'u8[8192]{0}', space=vmem, size = 0x2000, scoped, tag = 'input window, operand 1, single buffered']
    #allocation7 [shape = 'u8[16384]{0}', space=vmem, size = 0x4000, scoped, tag = 'output window, operand 0']
    %18 = vsyncpa [#allocation5], 0
    %19 = vsyncpa [#allocation3], 0
    %20 = vsyncpa [#allocation4], 0
    %s21 = scalar_lea.sflag [#allocation4], 1
    %22 = vsyncpa %s21, 0
    loop: start=0, step=1, limit=4
    $region2: #{tpu_custom_call.1} parent=1 // loop_pre_header
      _
    $region3: #{tpu_custom_call.1} parent=1 // loop_header
      %s24 = sphi 0, %s28
      %p25 = scmp.ge.s32.totalorder %s24, 4
      %s32 = sphi 0, %s32
      %s34 = sphi 0, %s32
      %s35 = sphi 0, %s34
      %s49 = sphi 0, %s35
      %s53 = sphi 0, %s53
      %s55 = sphi 0, %s53
      %s56 = sphi 0, %s55
      %s70 = sphi 0, %s56
      %s74 = sphi 0, %s74
      %s76 = sphi 0, %s74
      %s77 = sphi 0, %s76
      %s91 = sphi 0, %s77
      %s95 = sphi 0, %s95
      %s97 = sphi 0, %s95
      %s98 = sphi 0, %s97
      %s112 = sphi 0, %s98
      %s116 = sphi 0, %s116
      %s118 = sphi 0, %s116
      %s119 = sphi 0, %s118
      %s133 = sphi 0, %s119
      %s137 = sphi 0, %s137
      %s139 = sphi 0, %s137
      %s140 = sphi 0, %s139
      %s154 = sphi 0, %s140
      %s158 = sphi 0, %s158
      %s160 = sphi 0, %s158
      %s161 = sphi 0, %s160
      %s175 = sphi 0, %s161
      %s179 = sphi 0, %s179
      %s181 = sphi 0, %s179
      %s182 = sphi 0, %s181
      %s196 = sphi 0, %s182
      %s200 = sphi 0, %s200
      %s202 = sphi 0, %s200
      %s203 = sphi 0, %s202
      %s217 = sphi 0, %s203
      %s221 = sphi 0, %s221
      %s223 = sphi 0, %s221
      %s224 = sphi 0, %s223
      %s238 = sphi 0, %s224
      %s242 = sphi 0, %s242
      %s244 = sphi 0, %s242
      %s245 = sphi 0, %s244
      %s259 = sphi 0, %s245
      %s263 = sphi 0, %s263
      %s265 = sphi 0, %s263
      %s266 = sphi 0, %s265
      %s280 = sphi 0, %s266
      %s284 = sphi 0, %s284
      %s286 = sphi 0, %s284
      %s287 = sphi 0, %s286
      %s301 = sphi 0, %s287
      %s307 = sphi 0, %s309
      %s310 = sphi 0, %s307
      %s311 = sphi 0, %s310
      %s327 = sphi 0, %s311
    $region4: #{tpu_custom_call.1} parent=1 // loop_header_branch
      %27 = sbr.rel (%p25) target = $region8
    $region5: #{tpu_custom_call.1} parent=1 // loop_body
      %s29 = ssub.s32 %s24, 1
      %s30 = ssub.s32 %s24, 2
      %s31 = sadd.s32 %s24, 1
      %s33 = sadd.s32 %s32, 1
      %p36 = scmp.eq.s32.totalorder %s24, 1
      %p37 = scmp.ne.s32.totalorder %s32, %s34
      %p38 = scmp.eq.s32.totalorder %s24, 0
      %p39 = por %p37, %p38
      %p40 = scmp.ne.s32.totalorder %s32, %s34
      %p41 = scmp.eq.s32.totalorder %s29, 1
      %p42 = por %p40, %p41
      %p43 = scmp.ne.s32.totalorder %s34, %s35
      %p44 = scmp.eq.s32.totalorder %s29, 0
      %p45 = por %p43, %p44
      %p46 = scmp.ne.s32.totalorder %s34, %s35
      %p47 = scmp.eq.s32.totalorder %s30, 1
      %p48 = por %p46, %p47
      %p50 = scmp.ne.s32.totalorder %s35, %s49
      %p51 = scmp.eq.s32.totalorder %s30, 0
      %p52 = por %p50, %p51
      %s54 = sadd.s32 %s53, 1
      %p57 = scmp.eq.s32.totalorder %s24, 1
      %p58 = scmp.ne.s32.totalorder %s53, %s55
      %p59 = scmp.eq.s32.totalorder %s24, 0
      %p60 = por %p58, %p59
      %p61 = scmp.ne.s32.totalorder %s53, %s55
      %p62 = scmp.eq.s32.totalorder %s29, 1
      %p63 = por %p61, %p62
      %p64 = scmp.ne.s32.totalorder %s55, %s56
      %p65 = scmp.eq.s32.totalorder %s29, 0
      %p66 = por %p64, %p65
      %p67 = scmp.ne.s32.totalorder %s55, %s56
      %p68 = scmp.eq.s32.totalorder %s30, 1
      %p69 = por %p67, %p68
      %p71 = scmp.ne.s32.totalorder %s56, %s70
      %p72 = scmp.eq.s32.totalorder %s30, 0
      %p73 = por %p71, %p72
      %s75 = sadd.s32 %s74, 1
      %p78 = scmp.eq.s32.totalorder %s24, 1
      %p79 = scmp.ne.s32.totalorder %s74, %s76
      %p80 = scmp.eq.s32.totalorder %s24, 0
      %p81 = por %p79, %p80
      %p82 = scmp.ne.s32.totalorder %s74, %s76
      %p83 = scmp.eq.s32.totalorder %s29, 1
      %p84 = por %p82, %p83
      %p85 = scmp.ne.s32.totalorder %s76, %s77
      %p86 = scmp.eq.s32.totalorder %s29, 0
      %p87 = por %p85, %p86
      %p88 = scmp.ne.s32.totalorder %s76, %s77
      %p89 = scmp.eq.s32.totalorder %s30, 1
      %p90 = por %p88, %p89
      %p92 = scmp.ne.s32.totalorder %s77, %s91
      %p93 = scmp.eq.s32.totalorder %s30, 0
      %p94 = por %p92, %p93
      %s96 = sadd.s32 %s95, 1
      %p99 = scmp.eq.s32.totalorder %s24, 1
      %p100 = scmp.ne.s32.totalorder %s95, %s97
      %p101 = scmp.eq.s32.totalorder %s24, 0
      %p102 = por %p100, %p101
      %p103 = scmp.ne.s32.totalorder %s95, %s97
      %p104 = scmp.eq.s32.totalorder %s29, 1
      %p105 = por %p103, %p104
      %p106 = scmp.ne.s32.totalorder %s97, %s98
      %p107 = scmp.eq.s32.totalorder %s29, 0
      %p108 = por %p106, %p107
      %p109 = scmp.ne.s32.totalorder %s97, %s98
      %p110 = scmp.eq.s32.totalorder %s30, 1
      %p111 = por %p109, %p110
      %p113 = scmp.ne.s32.totalorder %s98, %s112
      %p114 = scmp.eq.s32.totalorder %s30, 0
      %p115 = por %p113, %p114
      %s117 = sadd.s32 %s116, 1
      %p120 = scmp.eq.s32.totalorder %s24, 1
      %p121 = scmp.ne.s32.totalorder %s116, %s118
      %p122 = scmp.eq.s32.totalorder %s24, 0
      %p123 = por %p121, %p122
      %p124 = scmp.ne.s32.totalorder %s116, %s118
      %p125 = scmp.eq.s32.totalorder %s29, 1
      %p126 = por %p124, %p125
      %p127 = scmp.ne.s32.totalorder %s118, %s119
      %p128 = scmp.eq.s32.totalorder %s29, 0
      %p129 = por %p127, %p128
      %p130 = scmp.ne.s32.totalorder %s118, %s119
      %p131 = scmp.eq.s32.totalorder %s30, 1
      %p132 = por %p130, %p131
      %p134 = scmp.ne.s32.totalorder %s119, %s133
      %p135 = scmp.eq.s32.totalorder %s30, 0
      %p136 = por %p134, %p135
      %s138 = sadd.s32 %s137, 1
      %p141 = scmp.eq.s32.totalorder %s24, 1
      %p142 = scmp.ne.s32.totalorder %s137, %s139
      %p143 = scmp.eq.s32.totalorder %s24, 0
      %p144 = por %p142, %p143
      %p145 = scmp.ne.s32.totalorder %s137, %s139
      %p146 = scmp.eq.s32.totalorder %s29, 1
      %p147 = por %p145, %p146
      %p148 = scmp.ne.s32.totalorder %s139, %s140
      %p149 = scmp.eq.s32.totalorder %s29, 0
      %p150 = por %p148, %p149
      %p151 = scmp.ne.s32.totalorder %s139, %s140
      %p152 = scmp.eq.s32.totalorder %s30, 1
      %p153 = por %p151, %p152
      %p155 = scmp.ne.s32.totalorder %s140, %s154
      %p156 = scmp.eq.s32.totalorder %s30, 0
      %p157 = por %p155, %p156
      %s159 = sadd.s32 %s158, 1
      %p162 = scmp.eq.s32.totalorder %s24, 1
      %p163 = scmp.ne.s32.totalorder %s158, %s160
      %p164 = scmp.eq.s32.totalorder %s24, 0
      %p165 = por %p163, %p164
      %p166 = scmp.ne.s32.totalorder %s158, %s160
      %p167 = scmp.eq.s32.totalorder %s29, 1
      %p168 = por %p166, %p167
      %p169 = scmp.ne.s32.totalorder %s160, %s161
      %p170 = scmp.eq.s32.totalorder %s29, 0
      %p171 = por %p169, %p170
      %p172 = scmp.ne.s32.totalorder %s160, %s161
      %p173 = scmp.eq.s32.totalorder %s30, 1
      %p174 = por %p172, %p173
      %p176 = scmp.ne.s32.totalorder %s161, %s175
      %p177 = scmp.eq.s32.totalorder %s30, 0
      %p178 = por %p176, %p177
      %s180 = sadd.s32 %s179, 1
      %p183 = scmp.eq.s32.totalorder %s24, 1
      %p184 = scmp.ne.s32.totalorder %s179, %s181
      %p185 = scmp.eq.s32.totalorder %s24, 0
      %p186 = por %p184, %p185
      %p187 = scmp.ne.s32.totalorder %s179, %s181
      %p188 = scmp.eq.s32.totalorder %s29, 1
      %p189 = por %p187, %p188
      %p190 = scmp.ne.s32.totalorder %s181, %s182
      %p191 = scmp.eq.s32.totalorder %s29, 0
      %p192 = por %p190, %p191
      %p193 = scmp.ne.s32.totalorder %s181, %s182
      %p194 = scmp.eq.s32.totalorder %s30, 1
      %p195 = por %p193, %p194
      %p197 = scmp.ne.s32.totalorder %s182, %s196
      %p198 = scmp.eq.s32.totalorder %s30, 0
      %p199 = por %p197, %p198
      %s201 = sadd.s32 %s200, 1
      %p204 = scmp.eq.s32.totalorder %s24, 1
      %p205 = scmp.ne.s32.totalorder %s200, %s202
      %p206 = scmp.eq.s32.totalorder %s24, 0
      %p207 = por %p205, %p206
      %p208 = scmp.ne.s32.totalorder %s200, %s202
      %p209 = scmp.eq.s32.totalorder %s29, 1
      %p210 = por %p208, %p209
      %p211 = scmp.ne.s32.totalorder %s202, %s203
      %p212 = scmp.eq.s32.totalorder %s29, 0
      %p213 = por %p211, %p212
      %p214 = scmp.ne.s32.totalorder %s202, %s203
      %p215 = scmp.eq.s32.totalorder %s30, 1
      %p216 = por %p214, %p215
      %p218 = scmp.ne.s32.totalorder %s203, %s217
      %p219 = scmp.eq.s32.totalorder %s30, 0
      %p220 = por %p218, %p219
      %s222 = sadd.s32 %s221, 1
      %p225 = scmp.eq.s32.totalorder %s24, 1
      %p226 = scmp.ne.s32.totalorder %s221, %s223
      %p227 = scmp.eq.s32.totalorder %s24, 0
      %p228 = por %p226, %p227
      %p229 = scmp.ne.s32.totalorder %s221, %s223
      %p230 = scmp.eq.s32.totalorder %s29, 1
      %p231 = por %p229, %p230
      %p232 = scmp.ne.s32.totalorder %s223, %s224
      %p233 = scmp.eq.s32.totalorder %s29, 0
      %p234 = por %p232, %p233
      %p235 = scmp.ne.s32.totalorder %s223, %s224
      %p236 = scmp.eq.s32.totalorder %s30, 1
      %p237 = por %p235, %p236
      %p239 = scmp.ne.s32.totalorder %s224, %s238
      %p240 = scmp.eq.s32.totalorder %s30, 0
      %p241 = por %p239, %p240
      %s243 = sadd.s32 %s242, 1
      %p246 = scmp.eq.s32.totalorder %s24, 1
      %p247 = scmp.ne.s32.totalorder %s242, %s244
      %p248 = scmp.eq.s32.totalorder %s24, 0
      %p249 = por %p247, %p248
      %p250 = scmp.ne.s32.totalorder %s242, %s244
      %p251 = scmp.eq.s32.totalorder %s29, 1
      %p252 = por %p250, %p251
      %p253 = scmp.ne.s32.totalorder %s244, %s245
      %p254 = scmp.eq.s32.totalorder %s29, 0
      %p255 = por %p253, %p254
      %p256 = scmp.ne.s32.totalorder %s244, %s245
      %p257 = scmp.eq.s32.totalorder %s30, 1
      %p258 = por %p256, %p257
      %p260 = scmp.ne.s32.totalorder %s245, %s259
      %p261 = scmp.eq.s32.totalorder %s30, 0
      %p262 = por %p260, %p261
      %s264 = sadd.s32 %s263, 1
      %p267 = scmp.eq.s32.totalorder %s24, 1
      %p268 = scmp.ne.s32.totalorder %s263, %s265
      %p269 = scmp.eq.s32.totalorder %s24, 0
      %p270 = por %p268, %p269
      %p271 = scmp.ne.s32.totalorder %s263, %s265
      %p272 = scmp.eq.s32.totalorder %s29, 1
      %p273 = por %p271, %p272
      %p274 = scmp.ne.s32.totalorder %s265, %s266
      %p275 = scmp.eq.s32.totalorder %s29, 0
      %p276 = por %p274, %p275
      %p277 = scmp.ne.s32.totalorder %s265, %s266
      %p278 = scmp.eq.s32.totalorder %s30, 1
      %p279 = por %p277, %p278
      %p281 = scmp.ne.s32.totalorder %s266, %s280
      %p282 = scmp.eq.s32.totalorder %s30, 0
      %p283 = por %p281, %p282
      %s285 = sadd.s32 %s284, 1
      %p288 = scmp.eq.s32.totalorder %s24, 1
      %p289 = scmp.ne.s32.totalorder %s284, %s286
      %p290 = scmp.eq.s32.totalorder %s24, 0
      %p291 = por %p289, %p290
      %p292 = scmp.ne.s32.totalorder %s284, %s286
      %p293 = scmp.eq.s32.totalorder %s29, 1
      %p294 = por %p292, %p293
      %p295 = scmp.ne.s32.totalorder %s286, %s287
      %p296 = scmp.eq.s32.totalorder %s29, 0
      %p297 = por %p295, %p296
      %p298 = scmp.ne.s32.totalorder %s286, %s287
      %p299 = scmp.eq.s32.totalorder %s30, 1
      %p300 = por %p298, %p299
      %p302 = scmp.ne.s32.totalorder %s287, %s301
      %p303 = scmp.eq.s32.totalorder %s30, 0
      %p304 = por %p302, %p303
      %s305 = ssub.s32 %s24, %s31
      %p306 = scmp.eq.s32.totalorder %s305, 0
      %s308 = sadd.s32 %s307, 1
      %s309 = scalar_select %p306, %s307, %s308
      %p312 = pneg %p306
      %p313 = scmp.eq.s32.totalorder %s24, 1
      %p314 = por %p312, %p313
      %p315 = scmp.ne.s32.totalorder %s307, %s310
      %p316 = scmp.eq.s32.totalorder %s24, 0
      %p317 = por %p315, %p316
      %p318 = scmp.ne.s32.totalorder %s307, %s310
      %p319 = scmp.eq.s32.totalorder %s29, 1
      %p320 = por %p318, %p319
      %p321 = scmp.ne.s32.totalorder %s310, %s311
      %p322 = scmp.eq.s32.totalorder %s29, 0
      %p323 = por %p321, %p322
      %p324 = scmp.ne.s32.totalorder %s310, %s311
      %p325 = scmp.eq.s32.totalorder %s30, 1
      %p326 = por %p324, %p325
      %p328 = scmp.ne.s32.totalorder %s311, %s327
      %p329 = scmp.eq.s32.totalorder %s30, 0
      %p330 = por %p328, %p329
      %p331 = scmp.le.s32.totalorder 1, %s24
      %p332 = scmp.lt.s32.totalorder %s24, 3
      %p333 = pnand %p331, %p332
      %p334 = pneg %p333
      // Predicated region
      $region9: #{tpu_custom_call.1} parent=5 // pred_check
        _
      $region10: #{tpu_custom_call.1} parent=5 // pred_check_branch
        %336 = sbr.rel (%p333) target = $region12
      $region11: #{tpu_custom_call.1} parent=5 // pred_region
        %s337 = ssub.s32 %s24, 1
        // Predicated region
        $region13: #{tpu_custom_call.1} parent=11 // pred_check
          %p338 = pneg %p45
        $region14: #{tpu_custom_call.1} parent=11 // pred_check_branch
          %340 = sbr.rel (%p338) target = $region16
        $region15: #{tpu_custom_call.1} parent=11 // pred_region
          %s342 = ssub.s32 16, 16
          %343 = vsyncadd [#allocation5], %s342
          %s345 = sshll.u32 %s0, 4
          %s346 = int_to_ptr.vmem [resolvable:$true] %s345
          %348 = dma.vmem_to_smem %s346, 16, [#allocation2], [#allocation5]
        $region16: #{tpu_custom_call.1} parent=11 // pred_fallthru
          _
        // Predicated region
        $region17: #{tpu_custom_call.1} parent=11 // pred_check
          %p349 = pneg %p66
        $region18: #{tpu_custom_call.1} parent=11 // pred_check_branch
          %351 = sbr.rel (%p349) target = $region20
        $region19: #{tpu_custom_call.1} parent=11 // pred_region
          %s353 = ssub.s32 256, 256
          %354 = vsyncadd [#allocation3], %s353
          %s355 = sshll.u32 [#allocation6], 4
          %s356 = int_to_ptr.vmem [resolvable:$true] %s355
          %361 = dma.hbm_to_vmem [thread:$0]  %s1, 256, %s356, [#allocation3], 64, 64, 4
        $region20: #{tpu_custom_call.1} parent=11 // pred_fallthru
          _
        // Predicated region
        $region21: #{tpu_custom_call.1} parent=11 // pred_check
          %p362 = pneg %p87
        $region22: #{tpu_custom_call.1} parent=11 // pred_check_branch
          %364 = sbr.rel (%p362) target = $region24
        $region23: #{tpu_custom_call.1} parent=11 // pred_region
          _
        $region24: #{tpu_custom_call.1} parent=11 // pred_fallthru
          _
        // Predicated region
        $region25: #{tpu_custom_call.1} parent=11 // pred_check
          %p365 = pneg %p108
        $region26: #{tpu_custom_call.1} parent=11 // pred_check_branch
          %367 = sbr.rel (%p365) target = $region28
        $region27: #{tpu_custom_call.1} parent=11 // pred_region
          _
        $region28: #{tpu_custom_call.1} parent=11 // pred_fallthru
          _
        // Predicated region
        $region29: #{tpu_custom_call.1} parent=11 // pred_check
          %p368 = pneg %p129
        $region30: #{tpu_custom_call.1} parent=11 // pred_check_branch
          %370 = sbr.rel (%p368) target = $region32
        $region31: #{tpu_custom_call.1} parent=11 // pred_region
          _
        $region32: #{tpu_custom_call.1} parent=11 // pred_fallthru
          _
        // Predicated region
        $region33: #{tpu_custom_call.1} parent=11 // pred_check
          %p371 = pneg %p150
        $region34: #{tpu_custom_call.1} parent=11 // pred_check_branch
          %373 = sbr.rel (%p371) target = $region36
        $region35: #{tpu_custom_call.1} parent=11 // pred_region
          _
        $region36: #{tpu_custom_call.1} parent=11 // pred_fallthru
          _
        // Predicated region
        $region37: #{tpu_custom_call.1} parent=11 // pred_check
          %p374 = pneg %p171
        $region38: #{tpu_custom_call.1} parent=11 // pred_check_branch
          %376 = sbr.rel (%p374) target = $region40
        $region39: #{tpu_custom_call.1} parent=11 // pred_region
          _
        $region40: #{tpu_custom_call.1} parent=11 // pred_fallthru
          _
        // Predicated region
        $region41: #{tpu_custom_call.1} parent=11 // pred_check
          %p377 = pneg %p192
        $region42: #{tpu_custom_call.1} parent=11 // pred_check_branch
          %379 = sbr.rel (%p377) target = $region44
        $region43: #{tpu_custom_call.1} parent=11 // pred_region
          _
        $region44: #{tpu_custom_call.1} parent=11 // pred_fallthru
          _
        // Predicated region
        $region45: #{tpu_custom_call.1} parent=11 // pred_check
          %p380 = pneg %p213
        $region46: #{tpu_custom_call.1} parent=11 // pred_check_branch
          %382 = sbr.rel (%p380) target = $region48
        $region47: #{tpu_custom_call.1} parent=11 // pred_region
          _
        $region48: #{tpu_custom_call.1} parent=11 // pred_fallthru
          _
        // Predicated region
        $region49: #{tpu_custom_call.1} parent=11 // pred_check
          %p383 = pneg %p234
        $region50: #{tpu_custom_call.1} parent=11 // pred_check_branch
          %385 = sbr.rel (%p383) target = $region52
        $region51: #{tpu_custom_call.1} parent=11 // pred_region
          _
        $region52: #{tpu_custom_call.1} parent=11 // pred_fallthru
          _
        // Predicated region
        $region53: #{tpu_custom_call.1} parent=11 // pred_check
          %p386 = pneg %p255
        $region54: #{tpu_custom_call.1} parent=11 // pred_check_branch
          %388 = sbr.rel (%p386) target = $region56
        $region55: #{tpu_custom_call.1} parent=11 // pred_region
          _
        $region56: #{tpu_custom_call.1} parent=11 // pred_fallthru
          _
        // Predicated region
        $region57: #{tpu_custom_call.1} parent=11 // pred_check
          %p389 = pneg %p276
        $region58: #{tpu_custom_call.1} parent=11 // pred_check_branch
          %391 = sbr.rel (%p389) target = $region60
        $region59: #{tpu_custom_call.1} parent=11 // pred_region
          _
        $region60: #{tpu_custom_call.1} parent=11 // pred_fallthru
          _
        // Predicated region
        $region61: #{tpu_custom_call.1} parent=11 // pred_check
          %p392 = pneg %p297
        $region62: #{tpu_custom_call.1} parent=11 // pred_check_branch
          %394 = sbr.rel (%p392) target = $region64
        $region63: #{tpu_custom_call.1} parent=11 // pred_region
          _
        $region64: #{tpu_custom_call.1} parent=11 // pred_fallthru
          _
      $region12: #{tpu_custom_call.1} parent=5 // pred_fallthru
        _
      %p395 = scmp.lt.s32.totalorder %s24, 2
      // Predicated region
      $region65: #{tpu_custom_call.1} parent=5 // pred_check
        %p396 = pneg %p395
      $region66: #{tpu_custom_call.1} parent=5 // pred_check_branch
        %398 = sbr.rel (%p396) target = $region68
      $region67: #{tpu_custom_call.1} parent=5 // pred_region
        _
      $region68: #{tpu_custom_call.1} parent=5 // pred_fallthru
        _
      %p399 = scmp.le.s32.totalorder 1, %s24
      %p400 = scmp.lt.s32.totalorder %s24, 3
      %p401 = pnand %p399, %p400
      %p402 = pneg %p401
      // Predicated region
      $region69: #{tpu_custom_call.1} parent=5 // pred_check
        _
      $region70: #{tpu_custom_call.1} parent=5 // pred_check_branch
        %404 = sbr.rel (%p401) target = $region72
      $region71: #{tpu_custom_call.1} parent=5 // pred_region
        %s405 = ssub.s32 %s24, 1
        // Predicated region
        $region73: #{tpu_custom_call.1} parent=71 // pred_check
          %p406 = pneg %p45
        $region74: #{tpu_custom_call.1} parent=71 // pred_check_branch
          %408 = sbr.rel (%p406) target = $region76
        $region75: #{tpu_custom_call.1} parent=71 // pred_region
          %409 = dma.done [#allocation5], 16
        $region76: #{tpu_custom_call.1} parent=71 // pred_fallthru
          _
        // Predicated region
        $region77: #{tpu_custom_call.1} parent=71 // pred_check
          %p410 = pneg %p66
        $region78: #{tpu_custom_call.1} parent=71 // pred_check_branch
          %412 = sbr.rel (%p410) target = $region80
        $region79: #{tpu_custom_call.1} parent=71 // pred_region
          %413 = dma.done [#allocation3], 256
        $region80: #{tpu_custom_call.1} parent=71 // pred_fallthru
          _
        %414 = sfence
        %p415 = pneg %p45
        %p416 = pneg %p42
        %p417 = pneg %p66
        %p418 = pneg %p63
        %p419 = pneg %p87
        %p420 = pneg %p84
        %p421 = pneg %p108
        %p422 = pneg %p105
        %p423 = pneg %p129
        %p424 = pneg %p126
        %p425 = pneg %p150
        %p426 = pneg %p147
        %p427 = pneg %p171
        %p428 = pneg %p168
        %p429 = pneg %p192
        %p430 = pneg %p189
        %p431 = pneg %p213
        %p432 = pneg %p210
        %p433 = pneg %p234
        %p434 = pneg %p231
        %p435 = pneg %p255
        %p436 = pneg %p252
        %p437 = pneg %p276
        %p438 = pneg %p273
        %p439 = pneg %p297
        %p440 = pneg %p294
        %p441 = pneg %p323
        %p442 = pneg %p320
        %s443 = sand.u32 %s310, 1
        %s444 = scalar_lea.sflag [#allocation4], %s443
        %s445 = sand.u32 %s310, 1
        %s446 = smul.addr %s445, 16
        %s447 = scalar_lea.vmem [#allocation7], %s446
        %s449 = smul.u32 %s29, 8
        %v450 = vld [vmem:[#allocation6] sm:$0xf]
        %v451 = vld [vmem:[#allocation6 + $0x4] sm:$0xf]
        %v452 = vld [vmem:[%s4] sm:$0xf]
        %v453 = vld [vmem:[%s4 + $0x4] sm:$0xf]
        %v454 = vld [vmem:[%s4 + $0x8] sm:$0xf]
        %v455 = vld [vmem:[%s4 + $0xc] sm:$0xf]
        %v456 = vld [vmem:[%s4 + $0x10] sm:$0xf]
        %v457 = vld [vmem:[%s4 + $0x14] sm:$0xf]
        %v458 = vld [vmem:[%s4 + $0x18] sm:$0xf]
        %v459 = vld [vmem:[%s4 + $0x1c] sm:$0xf]
        %v460 = vld [vmem:[%s4 + $0x20] sm:$0xf]
        %v461 = vld [vmem:[%s4 + $0x24] sm:$0xf]
        %v462 = vld [vmem:[%s4 + $0x28] sm:$0xf]
        %v463 = vld [vmem:[%s4 + $0x2c] sm:$0xf]
        %v464 = vld [vmem:[%s4 + $0x30] sm:$0xf]
        %v465 = vld [vmem:[%s4 + $0x34] sm:$0xf]
        %v466 = vld [vmem:[%s4 + $0x38] sm:$0xf]
        %v467 = vld [vmem:[%s4 + $0x3c] sm:$0xf]
        %v468 = vld [vmem:[%s5] sm:$0x1]
        %v470 = vlaneseq
        %v471 = vshrl.u32 %v470, 7
        %v472 = vsub.s32 0, %v471
        %v473 = vrot.slane %v468, %v472
        %v477 = vunpack.c.l.b16 %v450
        %v478 = vunpack.c.l.b16 %v451
        %v479 = vpack.c.b16 %v478, %v477
        %v497 = vunpack.c.l.b16 %v452
        %v498 = vunpack.c.l.b16 %v453
        %v499 = vunpack.c.l.b16 %v454
        %v500 = vunpack.c.l.b16 %v455
        %v501 = vunpack.c.l.b16 %v456
        %v502 = vunpack.c.l.b16 %v457
        %v503 = vunpack.c.l.b16 %v458
        %v504 = vunpack.c.l.b16 %v459
        %v505 = vunpack.c.l.b16 %v460
        %v506 = vunpack.c.l.b16 %v461
        %v507 = vunpack.c.l.b16 %v462
        %v508 = vunpack.c.l.b16 %v463
        %v509 = vunpack.c.l.b16 %v464
        %v510 = vunpack.c.l.b16 %v465
        %v511 = vunpack.c.l.b16 %v466
        %v512 = vunpack.c.l.b16 %v467
        %v513 = vpack.c.b16 %v498, %v497
        %v514 = vpack.c.b16 %v500, %v499
        %v515 = vpack.c.b16 %v502, %v501
        %v516 = vpack.c.b16 %v504, %v503
        %v517 = vpack.c.b16 %v506, %v505
        %v518 = vpack.c.b16 %v508, %v507
        %v519 = vpack.c.b16 %v510, %v509
        %v520 = vpack.c.b16 %v512, %v511
        %529 = vmatprep.subr.bf16.mxu0 0
        %530 = vmatpush1.bf16.msra.mxu0 %v513
        %531 = vmatprep.subr.bf16.mxu0 0
        %532 = vmatpush1.bf16.msra.mxu0 %v514
        %533 = vmatprep.subr.bf16.mxu0 0
        %534 = vmatpush1.bf16.msra.mxu0 %v515
        %535 = vmatprep.subr.bf16.mxu0 0
        %536 = vmatpush1.bf16.msra.mxu0 %v516
        %537 = vmatprep.subr.bf16.mxu0 0
        %538 = vmatpush1.bf16.msra.mxu0 %v517
        %539 = vmatprep.subr.bf16.mxu0 0
        %540 = vmatpush1.bf16.msra.mxu0 %v518
        %541 = vmatprep.subr.bf16.mxu0 0
        %542 = vmatpush1.bf16.msra.mxu0 %v519
        %543 = vmatprep.subr.bf16.mxu0 0
        %544 = vmatpush1.bf16.msra.mxu0 %v520
        %545 = vmatprep.subr.bf16.mxu0 0
        %546 = vmatpush1.bf16.msra.mxu0 0
        %547 = vmatprep.subr.bf16.mxu0 0
        %548 = vmatpush1.bf16.msra.mxu0 0
        %549 = vmatprep.subr.bf16.mxu0 0
        %550 = vmatpush1.bf16.msra.mxu0 0
        %551 = vmatprep.subr.bf16.mxu0 0
        %552 = vmatpush1.bf16.msra.mxu0 0
        %553 = vmatprep.subr.bf16.mxu0 0
        %554 = vmatpush1.bf16.msra.mxu0 0
        %555 = vmatprep.subr.bf16.mxu0 0
        %556 = vmatpush1.bf16.msra.mxu0 0
        %557 = vmatprep.subr.bf16.mxu0 0
        %558 = vmatpush1.bf16.msra.mxu0 0
        %559 = vmatprep.subr.bf16.mxu0 0
        %560 = vmatpush1.bf16.msra.mxu0 0
        %561 = vmatprep.mubr.bf16.mxu0 0
        %562 = vmatmul.mubr.bf16.gmra.mrb[0].mxu0 %v479
        %v563 = vpop.f32.mrb[0].mxu0
        %v564 = vadd.f32 %v473, %v563
        %v565 = vpop.f32.mrb[0].mxu0
        %v566 = vpop.f32.mrb[0].mxu0
        %v567 = vadd.f32 %v473, %v566
        %v568 = vpop.f32.mrb[0].mxu0
        %569 = vdwg.mxu0
        %v570 = vld [vmem:[%s6] sm:$0xf]
        %v571 = vld [vmem:[%s6 + $0x4] sm:$0xf]
        %v572 = vld [vmem:[%s6 + $0x8] sm:$0xf]
        %v573 = vld [vmem:[%s6 + $0xc] sm:$0xf]
        %v574 = vld [vmem:[%s6 + $0x10] sm:$0xf]
        %v575 = vld [vmem:[%s6 + $0x14] sm:$0xf]
        %v576 = vld [vmem:[%s6 + $0x18] sm:$0xf]
        %v577 = vld [vmem:[%s6 + $0x1c] sm:$0xf]
        %v578 = vld [vmem:[%s6 + $0x20] sm:$0xf]
        %v579 = vld [vmem:[%s6 + $0x24] sm:$0xf]
        %v580 = vld [vmem:[%s6 + $0x28] sm:$0xf]
        %v581 = vld [vmem:[%s6 + $0x2c] sm:$0xf]
        %v582 = vld [vmem:[%s6 + $0x30] sm:$0xf]
        %v583 = vld [vmem:[%s6 + $0x34] sm:$0xf]
        %v584 = vld [vmem:[%s6 + $0x38] sm:$0xf]
        %v585 = vld [vmem:[%s6 + $0x3c] sm:$0xf]
        %v586 = vld [vmem:[%s7] sm:$0x1]
        %v588 = vlaneseq
        %v589 = vshrl.u32 %v588, 7
        %v590 = vsub.s32 0, %v589
        %v591 = vrot.slane %v586, %v590
        %v609 = vunpack.c.l.b16 %v570
        %v610 = vunpack.c.l.b16 %v571
        %v611 = vunpack.c.l.b16 %v572
        %v612 = vunpack.c.l.b16 %v573
        %v613 = vunpack.c.l.b16 %v574
        %v614 = vunpack.c.l.b16 %v575
        %v615 = vunpack.c.l.b16 %v576
        %v616 = vunpack.c.l.b16 %v577
        %v617 = vunpack.c.l.b16 %v578
        %v618 = vunpack.c.l.b16 %v579
        %v619 = vunpack.c.l.b16 %v580
        %v620 = vunpack.c.l.b16 %v581
        %v621 = vunpack.c.l.b16 %v582
        %v622 = vunpack.c.l.b16 %v583
        %v623 = vunpack.c.l.b16 %v584
        %v624 = vunpack.c.l.b16 %v585
        %v625 = vpack.c.b16 %v610, %v609
        %v626 = vpack.c.b16 %v612, %v611
        %v627 = vpack.c.b16 %v614, %v613
        %v628 = vpack.c.b16 %v616, %v615
        %v629 = vpack.c.b16 %v618, %v617
        %v630 = vpack.c.b16 %v620, %v619
        %v631 = vpack.c.b16 %v622, %v621
        %v632 = vpack.c.b16 %v624, %v623
        %641 = vmatprep.subr.bf16.mxu0 0
        %642 = vmatpush1.bf16.msra.mxu0 %v625
        %643 = vmatprep.subr.bf16.mxu0 0
        %644 = vmatpush1.bf16.msra.mxu0 %v626
        %645 = vmatprep.subr.bf16.mxu0 0
        %646 = vmatpush1.bf16.msra.mxu0 %v627
        %647 = vmatprep.subr.bf16.mxu0 0
        %648 = vmatpush1.bf16.msra.mxu0 %v628
        %649 = vmatprep.subr.bf16.mxu0 0
        %650 = vmatpush1.bf16.msra.mxu0 %v629
        %651 = vmatprep.subr.bf16.mxu0 0
        %652 = vmatpush1.bf16.msra.mxu0 %v630
        %653 = vmatprep.subr.bf16.mxu0 0
        %654 = vmatpush1.bf16.msra.mxu0 %v631
        %655 = vmatprep.subr.bf16.mxu0 0
        %656 = vmatpush1.bf16.msra.mxu0 %v632
        %657 = vmatprep.subr.bf16.mxu0 0
        %658 = vmatpush1.bf16.msra.mxu0 0
        %659 = vmatprep.subr.bf16.mxu0 0
        %660 = vmatpush1.bf16.msra.mxu0 0
        %661 = vmatprep.subr.bf16.mxu0 0
        %662 = vmatpush1.bf16.msra.mxu0 0
        %663 = vmatprep.subr.bf16.mxu0 0
        %664 = vmatpush1.bf16.msra.mxu0 0
        %665 = vmatprep.subr.bf16.mxu0 0
        %666 = vmatpush1.bf16.msra.mxu0 0
        %667 = vmatprep.subr.bf16.mxu0 0
        %668 = vmatpush1.bf16.msra.mxu0 0
        %669 = vmatprep.subr.bf16.mxu0 0
        %670 = vmatpush1.bf16.msra.mxu0 0
        %671 = vmatprep.subr.bf16.mxu0 0
        %672 = vmatpush1.bf16.msra.mxu0 0
        %673 = vmatprep.mubr.bf16.mxu0 0
        %674 = vmatmul.mubr.bf16.gmra.mrb[0].mxu0 %v479
        %v675 = vpop.f32.mrb[0].mxu0
        %v676 = vadd.f32 %v591, %v675
        %v677 = vpop.f32.mrb[0].mxu0
        %v678 = vpop.f32.mrb[0].mxu0
        %v679 = vadd.f32 %v591, %v678
        %v680 = vpop.f32.mrb[0].mxu0
        %681 = vdwg.mxu0
        %v682 = vpack.c.bf16 %v567, %v564
        %v683 = vpack.c.bf16 %v679, %v676
        %s684 = scalar_lea.vmem [#allocation6], 8
        %v685 = vld [vmem:[%s684] sm:$0xf]
        %v686 = vld [vmem:[%s684 + $0x4] sm:$0xf]
        %s687 = scalar_lea.vmem %s4, 64
        %v688 = vld [vmem:[%s687] sm:$0xf]
        %v689 = vld [vmem:[%s687 + $0x4] sm:$0xf]
        %v690 = vld [vmem:[%s687 + $0x8] sm:$0xf]
        %v691 = vld [vmem:[%s687 + $0xc] sm:$0xf]
        %v692 = vld [vmem:[%s687 + $0x10] sm:$0xf]
        %v693 = vld [vmem:[%s687 + $0x14] sm:$0xf]
        %v694 = vld [vmem:[%s687 + $0x18] sm:$0xf]
        %v695 = vld [vmem:[%s687 + $0x1c] sm:$0xf]
        %v696 = vld [vmem:[%s687 + $0x20] sm:$0xf]
        %v697 = vld [vmem:[%s687 + $0x24] sm:$0xf]
        %v698 = vld [vmem:[%s687 + $0x28] sm:$0xf]
        %v699 = vld [vmem:[%s687 + $0x2c] sm:$0xf]
        %v700 = vld [vmem:[%s687 + $0x30] sm:$0xf]
        %v701 = vld [vmem:[%s687 + $0x34] sm:$0xf]
        %v702 = vld [vmem:[%s687 + $0x38] sm:$0xf]
        %v703 = vld [vmem:[%s687 + $0x3c] sm:$0xf]
        %s704 = scalar_lea.vmem %s5, 1
        %v705 = vld [vmem:[%s704] sm:$0x1]
        %v707 = vlaneseq
        %v708 = vshrl.u32 %v707, 7
        %v709 = vsub.s32 0, %v708
        %v710 = vrot.slane %v705, %v709
        %v714 = vunpack.c.l.b16 %v685
        %v715 = vunpack.c.l.b16 %v686
        %v716 = vpack.c.b16 %v715, %v714
        %v734 = vunpack.c.l.b16 %v688
        %v735 = vunpack.c.l.b16 %v689
        %v736 = vunpack.c.l.b16 %v690
        %v737 = vunpack.c.l.b16 %v691
        %v738 = vunpack.c.l.b16 %v692
        %v739 = vunpack.c.l.b16 %v693
        %v740 = vunpack.c.l.b16 %v694
        %v741 = vunpack.c.l.b16 %v695
        %v742 = vunpack.c.l.b16 %v696
        %v743 = vunpack.c.l.b16 %v697
        %v744 = vunpack.c.l.b16 %v698
        %v745 = vunpack.c.l.b16 %v699
        %v746 = vunpack.c.l.b16 %v700
        %v747 = vunpack.c.l.b16 %v701
        %v748 = vunpack.c.l.b16 %v702
        %v749 = vunpack.c.l.b16 %v703
        %v750 = vpack.c.b16 %v735, %v734
        %v751 = vpack.c.b16 %v737, %v736
        %v752 = vpack.c.b16 %v739, %v738
        %v753 = vpack.c.b16 %v741, %v740
        %v754 = vpack.c.b16 %v743, %v742
        %v755 = vpack.c.b16 %v745, %v744
        %v756 = vpack.c.b16 %v747, %v746
        %v757 = vpack.c.b16 %v749, %v748
        %766 = vmatprep.subr.bf16.mxu0 0
        %767 = vmatpush1.bf16.msra.mxu0 %v750
        %768 = vmatprep.subr.bf16.mxu0 0
        %769 = vmatpush1.bf16.msra.mxu0 %v751
        %770 = vmatprep.subr.bf16.mxu0 0
        %771 = vmatpush1.bf16.msra.mxu0 %v752
        %772 = vmatprep.subr.bf16.mxu0 0
        %773 = vmatpush1.bf16.msra.mxu0 %v753
        %774 = vmatprep.subr.bf16.mxu0 0
        %775 = vmatpush1.bf16.msra.mxu0 %v754
        %776 = vmatprep.subr.bf16.mxu0 0
        %777 = vmatpush1.bf16.msra.mxu0 %v755
        %778 = vmatprep.subr.bf16.mxu0 0
        %779 = vmatpush1.bf16.msra.mxu0 %v756
        %780 = vmatprep.subr.bf16.mxu0 0
        %781 = vmatpush1.bf16.msra.mxu0 %v757
        %782 = vmatprep.subr.bf16.mxu0 0
        %783 = vmatpush1.bf16.msra.mxu0 0
        %784 = vmatprep.subr.bf16.mxu0 0
        %785 = vmatpush1.bf16.msra.mxu0 0
        %786 = vmatprep.subr.bf16.mxu0 0
        %787 = vmatpush1.bf16.msra.mxu0 0
        %788 = vmatprep.subr.bf16.mxu0 0
        %789 = vmatpush1.bf16.msra.mxu0 0
        %790 = vmatprep.subr.bf16.mxu0 0
        %791 = vmatpush1.bf16.msra.mxu0 0
        %792 = vmatprep.subr.bf16.mxu0 0
        %793 = vmatpush1.bf16.msra.mxu0 0
        %794 = vmatprep.subr.bf16.mxu0 0
        %795 = vmatpush1.bf16.msra.mxu0 0
        %796 = vmatprep.subr.bf16.mxu0 0
        %797 = vmatpush1.bf16.msra.mxu0 0
        %798 = vmatprep.mubr.bf16.mxu0 0
        %799 = vmatmul.mubr.bf16.gmra.mrb[0].mxu0 %v716
        %v800 = vpop.f32.mrb[0].mxu0
        %v801 = vadd.f32 %v710, %v800
        %v802 = vpop.f32.mrb[0].mxu0
        %v803 = vpop.f32.mrb[0].mxu0
        %v804 = vadd.f32 %v710, %v803
        %v805 = vpop.f32.mrb[0].mxu0
        %806 = vdwg.mxu0
        %s807 = scalar_lea.vmem %s6, 64
        %v808 = vld [vmem:[%s807] sm:$0xf]
        %v809 = vld [vmem:[%s807 + $0x4] sm:$0xf]
        %v810 = vld [vmem:[%s807 + $0x8] sm:$0xf]
        %v811 = vld [vmem:[%s807 + $0xc] sm:$0xf]
        %v812 = vld [vmem:[%s807 + $0x10] sm:$0xf]
        %v813 = vld [vmem:[%s807 + $0x14] sm:$0xf]
        %v814 = vld [vmem:[%s807 + $0x18] sm:$0xf]
        %v815 = vld [vmem:[%s807 + $0x1c] sm:$0xf]
        %v816 = vld [vmem:[%s807 + $0x20] sm:$0xf]
        %v817 = vld [vmem:[%s807 + $0x24] sm:$0xf]
        %v818 = vld [vmem:[%s807 + $0x28] sm:$0xf]
        %v819 = vld [vmem:[%s807 + $0x2c] sm:$0xf]
        %v820 = vld [vmem:[%s807 + $0x30] sm:$0xf]
        %v821 = vld [vmem:[%s807 + $0x34] sm:$0xf]
        %v822 = vld [vmem:[%s807 + $0x38] sm:$0xf]
        %v823 = vld [vmem:[%s807 + $0x3c] sm:$0xf]
        %s824 = scalar_lea.vmem %s7, 1
        %v825 = vld [vmem:[%s824] sm:$0x1]
        %v827 = vlaneseq
        %v828 = vshrl.u32 %v827, 7
        %v829 = vsub.s32 0, %v828
        %v830 = vrot.slane %v825, %v829
        %v848 = vunpack.c.l.b16 %v808
        %v849 = vunpack.c.l.b16 %v809
        %v850 = vunpack.c.l.b16 %v810
        %v851 = vunpack.c.l.b16 %v811
        %v852 = vunpack.c.l.b16 %v812
        %v853 = vunpack.c.l.b16 %v813
        %v854 = vunpack.c.l.b16 %v814
        %v855 = vunpack.c.l.b16 %v815
        %v856 = vunpack.c.l.b16 %v816
        %v857 = vunpack.c.l.b16 %v817
        %v858 = vunpack.c.l.b16 %v818
        %v859 = vunpack.c.l.b16 %v819
        %v860 = vunpack.c.l.b16 %v820
        %v861 = vunpack.c.l.b16 %v821
        %v862 = vunpack.c.l.b16 %v822
        %v863 = vunpack.c.l.b16 %v823
        %v864 = vpack.c.b16 %v849, %v848
        %v865 = vpack.c.b16 %v851, %v850
        %v866 = vpack.c.b16 %v853, %v852
        %v867 = vpack.c.b16 %v855, %v854
        %v868 = vpack.c.b16 %v857, %v856
        %v869 = vpack.c.b16 %v859, %v858
        %v870 = vpack.c.b16 %v861, %v860
        %v871 = vpack.c.b16 %v863, %v862
        %880 = vmatprep.subr.bf16.mxu0 0
        %881 = vmatpush1.bf16.msra.mxu0 %v864
        %882 = vmatprep.subr.bf16.mxu0 0
        %883 = vmatpush1.bf16.msra.mxu0 %v865
        %884 = vmatprep.subr.bf16.mxu0 0
        %885 = vmatpush1.bf16.msra.mxu0 %v866
        %886 = vmatprep.subr.bf16.mxu0 0
        %887 = vmatpush1.bf16.msra.mxu0 %v867
        %888 = vmatprep.subr.bf16.mxu0 0
        %889 = vmatpush1.bf16.msra.mxu0 %v868
        %890 = vmatprep.subr.bf16.mxu0 0
        %891 = vmatpush1.bf16.msra.mxu0 %v869
        %892 = vmatprep.subr.bf16.mxu0 0
        %893 = vmatpush1.bf16.msra.mxu0 %v870
        %894 = vmatprep.subr.bf16.mxu0 0
        %895 = vmatpush1.bf16.msra.mxu0 %v871
        %896 = vmatprep.subr.bf16.mxu0 0
        %897 = vmatpush1.bf16.msra.mxu0 0
        %898 = vmatprep.subr.bf16.mxu0 0
        %899 = vmatpush1.bf16.msra.mxu0 0
        %900 = vmatprep.subr.bf16.mxu0 0
        %901 = vmatpush1.bf16.msra.mxu0 0
        %902 = vmatprep.subr.bf16.mxu0 0
        %903 = vmatpush1.bf16.msra.mxu0 0
        %904 = vmatprep.subr.bf16.mxu0 0
        %905 = vmatpush1.bf16.msra.mxu0 0
        %906 = vmatprep.subr.bf16.mxu0 0
        %907 = vmatpush1.bf16.msra.mxu0 0
        %908 = vmatprep.subr.bf16.mxu0 0
        %909 = vmatpush1.bf16.msra.mxu0 0
        %910 = vmatprep.subr.bf16.mxu0 0
        %911 = vmatpush1.bf16.msra.mxu0 0
        %912 = vmatprep.mubr.bf16.mxu0 0
        %913 = vmatmul.mubr.bf16.gmra.mrb[0].mxu0 %v716
        %v914 = vpop.f32.mrb[0].mxu0
        %v915 = vadd.f32 %v830, %v914
        %v916 = vpop.f32.mrb[0].mxu0
        %v917 = vpop.f32.mrb[0].mxu0
        %v918 = vadd.f32 %v830, %v917
        %v919 = vpop.f32.mrb[0].mxu0
        %920 = vdwg.mxu0
        %v921 = vpack.c.bf16 %v804, %v801
        %v922 = vpack.c.bf16 %v918, %v915
        %s923 = sshra.s32 %s449, 3
        %s924 = sand.u32 %s449, 7
        %s925 = smul.addr %s923, 4
        %s926 = scalar_lea.vmem [#allocation6], %s925
        %v927 = vld [vmem:[%s926] sm:$0xf]
        %v928 = vld [vmem:[%s2] sm:$0xf]
        %v929 = vld [vmem:[%s2 + $0x4] sm:$0xf]
        %v930 = vld [vmem:[%s2 + $0x8] sm:$0xf]
        %v931 = vld [vmem:[%s2 + $0xc] sm:$0xf]
        %v932 = vld [vmem:[%s2 + $0x10] sm:$0xf]
        %v933 = vld [vmem:[%s2 + $0x14] sm:$0xf]
        %v934 = vld [vmem:[%s2 + $0x18] sm:$0xf]
        %v935 = vld [vmem:[%s2 + $0x1c] sm:$0xf]
        %v936 = vld [vmem:[%s2 + $0x20] sm:$0xf]
        %v937 = vld [vmem:[%s2 + $0x24] sm:$0xf]
        %v938 = vld [vmem:[%s2 + $0x28] sm:$0xf]
        %v939 = vld [vmem:[%s2 + $0x2c] sm:$0xf]
        %v940 = vld [vmem:[%s2 + $0x30] sm:$0xf]
        %v941 = vld [vmem:[%s2 + $0x34] sm:$0xf]
        %v942 = vld [vmem:[%s2 + $0x38] sm:$0xf]
        %v943 = vld [vmem:[%s2 + $0x3c] sm:$0xf]
        %v944 = vld [vmem:[%s3] sm:$0x1]
        %v946 = vlaneseq
        %v947 = vshrl.u32 %v946, 7
        %v948 = vsub.s32 0, %v947
        %v949 = vrot.slane %v944, %v948
        %v967 = vunpack.c.l.b16 %v928
        %v968 = vunpack.c.l.b16 %v929
        %v969 = vunpack.c.l.b16 %v930
        %v970 = vunpack.c.l.b16 %v931
        %v971 = vunpack.c.l.b16 %v932
        %v972 = vunpack.c.l.b16 %v933
        %v973 = vunpack.c.l.b16 %v934
        %v974 = vunpack.c.l.b16 %v935
        %v975 = vunpack.c.l.b16 %v936
        %v976 = vunpack.c.l.b16 %v937
        %v977 = vunpack.c.l.b16 %v938
        %v978 = vunpack.c.l.b16 %v939
        %v979 = vunpack.c.l.b16 %v940
        %v980 = vunpack.c.l.b16 %v941
        %v981 = vunpack.c.l.b16 %v942
        %v982 = vunpack.c.l.b16 %v943
        %v983 = vpack.c.b16 %v968, %v967
        %v984 = vpack.c.b16 %v970, %v969
        %v985 = vpack.c.b16 %v972, %v971
        %v986 = vpack.c.b16 %v974, %v973
        %v987 = vpack.c.b16 %v976, %v975
        %v988 = vpack.c.b16 %v978, %v977
        %v989 = vpack.c.b16 %v980, %v979
        %v990 = vpack.c.b16 %v982, %v981
        %999 = vmatprep.subr.bf16.mxu0 0
        %1000 = vmatpush1.bf16.msra.mxu0 %v983
        %1001 = vmatprep.subr.bf16.mxu0 0
        %1002 = vmatpush1.bf16.msra.mxu0 %v984
        %1003 = vmatprep.subr.bf16.mxu0 0
        %1004 = vmatpush1.bf16.msra.mxu0 %v985
        %1005 = vmatprep.subr.bf16.mxu0 0
        %1006 = vmatpush1.bf16.msra.mxu0 %v986
        %1007 = vmatprep.subr.bf16.mxu0 0
        %1008 = vmatpush1.bf16.msra.mxu0 %v987
        %1009 = vmatprep.subr.bf16.mxu0 0
        %1010 = vmatpush1.bf16.msra.mxu0 %v988
        %1011 = vmatprep.subr.bf16.mxu0 0
        %1012 = vmatpush1.bf16.msra.mxu0 %v989
        %1013 = vmatprep.subr.bf16.mxu0 0
        %1014 = vmatpush1.bf16.msra.mxu0 %v990
        %1015 = vmatprep.subr.bf16.mxu0 0
        %1016 = vmatpush1.bf16.msra.mxu0 0
        %1017 = vmatprep.subr.bf16.mxu0 0
        %1018 = vmatpush1.bf16.msra.mxu0 0
        %1019 = vmatprep.subr.bf16.mxu0 0
        %1020 = vmatpush1.bf16.msra.mxu0 0
        %1021 = vmatprep.subr.bf16.mxu0 0
        %1022 = vmatpush1.bf16.msra.mxu0 0
        %1023 = vmatprep.subr.bf16.mxu0 0
        %1024 = vmatpush1.bf16.msra.mxu0 0
        %1025 = vmatprep.subr.bf16.mxu0 0
        %1026 = vmatpush1.bf16.msra.mxu0 0
        %1027 = vmatprep.subr.bf16.mxu0 0
        %1028 = vmatpush1.bf16.msra.mxu0 0
        %1029 = vmatprep.subr.bf16.mxu0 0
        %1030 = vmatpush1.bf16.msra.mxu0 0
        %1031 = vmatprep.mubr.bf16.mxu0 0
        %1032 = vmatmul.mubr.bf16.gmra.mrb[0].mxu0 %v927
        %v1033 = vpop.f32.mrb[0].mxu0
        %v1034 = vadd.f32 %v949, %v1033
        %v1035 = vpop.f32.mrb[0].mxu0
        %v1036 = vpop.f32.mrb[0].mxu0
        %v1037 = vpop.f32.mrb[0].mxu0
        %1038 = vdwg.mxu0
        %v1039 = vpack.c.bf16 %v1034, %v1034
        %s1040 = scalar_lea.vmem %s10, 64
        %v1041 = vld [vmem:[%s1040] sm:$0xf]
        %v1042 = vld [vmem:[%s1040 + $0x4] sm:$0xf]
        %v1043 = vld [vmem:[%s1040 + $0x8] sm:$0xf]
        %v1044 = vld [vmem:[%s1040 + $0xc] sm:$0xf]
        %v1045 = vld [vmem:[%s1040 + $0x10] sm:$0xf]
        %v1046 = vld [vmem:[%s1040 + $0x14] sm:$0xf]
        %v1047 = vld [vmem:[%s1040 + $0x18] sm:$0xf]
        %v1048 = vld [vmem:[%s1040 + $0x1c] sm:$0xf]
        %v1049 = vld [vmem:[%s1040 + $0x20] sm:$0xf]
        %v1050 = vld [vmem:[%s1040 + $0x24] sm:$0xf]
        %v1051 = vld [vmem:[%s1040 + $0x28] sm:$0xf]
        %v1052 = vld [vmem:[%s1040 + $0x2c] sm:$0xf]
        %v1053 = vld [vmem:[%s1040 + $0x30] sm:$0xf]
        %v1054 = vld [vmem:[%s1040 + $0x34] sm:$0xf]
        %v1055 = vld [vmem:[%s1040 + $0x38] sm:$0xf]
        %v1056 = vld [vmem:[%s1040 + $0x3c] sm:$0xf]
        %v1061 = vunpack.c.l.b16 %v1041
        %v1062 = vunpack.c.l.b16 %v1042
        %v1063 = vunpack.c.l.b16 %v1043
        %v1064 = vunpack.c.l.b16 %v1044
        %v1065 = vpack.c.b16 %v1062, %v1061
        %v1066 = vpack.c.b16 %v1064, %v1063
        %vm1069 = vcmask 261120
        %v1071 = vsel %vm1069, %v921, 0
        %1073 = vmatprep.subr.bf16.mxu0 0
        %1074 = vmatpush1.bf16.msra.mxu0 %v1065
        %1075 = vmatprep.subr.bf16.mxu0 0
        %1076 = vmatpush1.bf16.msra.mxu0 %v1066
        %1077 = vmatprep.subr.bf16.mxu0 0
        %1078 = vmatpush1.bf16.msra.mxu0 0
        %1079 = vmatprep.subr.bf16.mxu0 0
        %1080 = vmatpush1.bf16.msra.mxu0 0
        %1081 = vmatprep.subr.bf16.mxu0 0
        %1082 = vmatpush1.bf16.msra.mxu0 0
        %1083 = vmatprep.subr.bf16.mxu0 0
        %1084 = vmatpush1.bf16.msra.mxu0 0
        %1085 = vmatprep.subr.bf16.mxu0 0
        %1086 = vmatpush1.bf16.msra.mxu0 0
        %1087 = vmatprep.subr.bf16.mxu0 0
        %1088 = vmatpush1.bf16.msra.mxu0 0
        %1089 = vmatprep.subr.bf16.mxu0 0
        %1090 = vmatpush1.bf16.msra.mxu0 0
        %1091 = vmatprep.subr.bf16.mxu0 0
        %1092 = vmatpush1.bf16.msra.mxu0 0
        %1093 = vmatprep.subr.bf16.mxu0 0
        %1094 = vmatpush1.bf16.msra.mxu0 0
        %1095 = vmatprep.subr.bf16.mxu0 0
        %1096 = vmatpush1.bf16.msra.mxu0 0
        %1097 = vmatprep.subr.bf16.mxu0 0
        %1098 = vmatpush1.bf16.msra.mxu0 0
        %1099 = vmatprep.subr.bf16.mxu0 0
        %1100 = vmatpush1.bf16.msra.mxu0 0
        %1101 = vmatprep.subr.bf16.mxu0 0
        %1102 = vmatpush1.bf16.msra.mxu0 0
        %1103 = vmatprep.subr.bf16.mxu0 0
        %1104 = vmatpush1.bf16.msra.mxu0 0
        %1105 = vmatprep.mubr.bf16.mxu0 0
        %1106 = vmatmul.mubr.bf16.gmra.mrb[0].mxu0 %v1071
        %v1107 = vpop.f32.mrb[0].mxu0
        %v1108 = vadd.f32 0.0, %v1107
        %v1109 = vpop.f32.mrb[0].mxu0
        %v1110 = vpop.f32.mrb[0].mxu0
        %v1111 = vadd.f32 0.0, %v1110
        %v1112 = vpop.f32.mrb[0].mxu0
        %1113 = vdwg.mxu0
        %v1118 = vunpack.c.l.b16 %v1045
        %v1119 = vunpack.c.l.b16 %v1046
        %v1120 = vunpack.c.l.b16 %v1047
        %v1121 = vunpack.c.l.b16 %v1048
        %v1122 = vpack.c.b16 %v1119, %v1118
        %v1123 = vpack.c.b16 %v1121, %v1120
        %1126 = vmatprep.subr.bf16.mxu0 0
        %1127 = vmatpush1.bf16.msra.mxu0 %v1122
        %1128 = vmatprep.subr.bf16.mxu0 0
        %1129 = vmatpush1.bf16.msra.mxu0 %v1123
        %1130 = vmatprep.subr.bf16.mxu0 0
        %1131 = vmatpush1.bf16.msra.mxu0 0
        %1132 = vmatprep.subr.bf16.mxu0 0
        %1133 = vmatpush1.bf16.msra.mxu0 0
        %1134 = vmatprep.subr.bf16.mxu0 0
        %1135 = vmatpush1.bf16.msra.mxu0 0
        %1136 = vmatprep.subr.bf16.mxu0 0
        %1137 = vmatpush1.bf16.msra.mxu0 0
        %1138 = vmatprep.subr.bf16.mxu0 0
        %1139 = vmatpush1.bf16.msra.mxu0 0
        %1140 = vmatprep.subr.bf16.mxu0 0
        %1141 = vmatpush1.bf16.msra.mxu0 0
        %1142 = vmatprep.subr.bf16.mxu0 0
        %1143 = vmatpush1.bf16.msra.mxu0 0
        %1144 = vmatprep.subr.bf16.mxu0 0
        %1145 = vmatpush1.bf16.msra.mxu0 0
        %1146 = vmatprep.subr.bf16.mxu0 0
        %1147 = vmatpush1.bf16.msra.mxu0 0
        %1148 = vmatprep.subr.bf16.mxu0 0
        %1149 = vmatpush1.bf16.msra.mxu0 0
        %1150 = vmatprep.subr.bf16.mxu0 0
        %1151 = vmatpush1.bf16.msra.mxu0 0
        %1152 = vmatprep.subr.bf16.mxu0 0
        %1153 = vmatpush1.bf16.msra.mxu0 0
        %1154 = vmatprep.subr.bf16.mxu0 0
        %1155 = vmatpush1.bf16.msra.mxu0 0
        %1156 = vmatprep.subr.bf16.mxu0 0
        %1157 = vmatpush1.bf16.msra.mxu0 0
        %1158 = vmatprep.mubr.bf16.mxu0 0
        %1159 = vmatmul.mubr.bf16.gmra.mrb[0].mxu0 %v1071
        %v1160 = vpop.f32.mrb[0].mxu0
        %v1161 = vadd.f32 0.0, %v1160
        %v1162 = vpop.f32.mrb[0].mxu0
        %v1163 = vpop.f32.mrb[0].mxu0
        %v1164 = vadd.f32 0.0, %v1163
        %v1165 = vpop.f32.mrb[0].mxu0
        %1166 = vdwg.mxu0
        %v1171 = vunpack.c.l.b16 %v1049
        %v1172 = vunpack.c.l.b16 %v1050
        %v1173 = vunpack.c.l.b16 %v1051
        %v1174 = vunpack.c.l.b16 %v1052
        %v1175 = vpack.c.b16 %v1172, %v1171
        %v1176 = vpack.c.b16 %v1174, %v1173
        %1179 = vmatprep.subr.bf16.mxu0 0
        %1180 = vmatpush1.bf16.msra.mxu0 %v1175
        %1181 = vmatprep.subr.bf16.mxu0 0
        %1182 = vmatpush1.bf16.msra.mxu0 %v1176
        %1183 = vmatprep.subr.bf16.mxu0 0
        %1184 = vmatpush1.bf16.msra.mxu0 0
        %1185 = vmatprep.subr.bf16.mxu0 0
        %1186 = vmatpush1.bf16.msra.mxu0 0
        %1187 = vmatprep.subr.bf16.mxu0 0
        %1188 = vmatpush1.bf16.msra.mxu0 0
        %1189 = vmatprep.subr.bf16.mxu0 0
        %1190 = vmatpush1.bf16.msra.mxu0 0
        %1191 = vmatprep.subr.bf16.mxu0 0
        %1192 = vmatpush1.bf16.msra.mxu0 0
        %1193 = vmatprep.subr.bf16.mxu0 0
        %1194 = vmatpush1.bf16.msra.mxu0 0
        %1195 = vmatprep.subr.bf16.mxu0 0
        %1196 = vmatpush1.bf16.msra.mxu0 0
        %1197 = vmatprep.subr.bf16.mxu0 0
        %1198 = vmatpush1.bf16.msra.mxu0 0
        %1199 = vmatprep.subr.bf16.mxu0 0
        %1200 = vmatpush1.bf16.msra.mxu0 0
        %1201 = vmatprep.subr.bf16.mxu0 0
        %1202 = vmatpush1.bf16.msra.mxu0 0
        %1203 = vmatprep.subr.bf16.mxu0 0
        %1204 = vmatpush1.bf16.msra.mxu0 0
        %1205 = vmatprep.subr.bf16.mxu0 0
        %1206 = vmatpush1.bf16.msra.mxu0 0
        %1207 = vmatprep.subr.bf16.mxu0 0
        %1208 = vmatpush1.bf16.msra.mxu0 0
        %1209 = vmatprep.subr.bf16.mxu0 0
        %1210 = vmatpush1.bf16.msra.mxu0 0
        %1211 = vmatprep.mubr.bf16.mxu0 0
        %1212 = vmatmul.mubr.bf16.gmra.mrb[0].mxu0 %v1071
        %v1213 = vpop.f32.mrb[0].mxu0
        %v1214 = vadd.f32 0.0, %v1213
        %v1215 = vpop.f32.mrb[0].mxu0
        %v1216 = vpop.f32.mrb[0].mxu0
        %v1217 = vadd.f32 0.0, %v1216
        %v1218 = vpop.f32.mrb[0].mxu0
        %1219 = vdwg.mxu0
        %v1224 = vunpack.c.l.b16 %v1053
        %v1225 = vunpack.c.l.b16 %v1054
        %v1226 = vunpack.c.l.b16 %v1055
        %v1227 = vunpack.c.l.b16 %v1056
        %v1228 = vpack.c.b16 %v1225, %v1224
        %v1229 = vpack.c.b16 %v1227, %v1226
        %1232 = vmatprep.subr.bf16.mxu0 0
        %1233 = vmatpush1.bf16.msra.mxu0 %v1228
        %1234 = vmatprep.subr.bf16.mxu0 0
        %1235 = vmatpush1.bf16.msra.mxu0 %v1229
        %1236 = vmatprep.subr.bf16.mxu0 0
        %1237 = vmatpush1.bf16.msra.mxu0 0
        %1238 = vmatprep.subr.bf16.mxu0 0
        %1239 = vmatpush1.bf16.msra.mxu0 0
        %1240 = vmatprep.subr.bf16.mxu0 0
        %1241 = vmatpush1.bf16.msra.mxu0 0
        %1242 = vmatprep.subr.bf16.mxu0 0
        %1243 = vmatpush1.bf16.msra.mxu0 0
        %1244 = vmatprep.subr.bf16.mxu0 0
        %1245 = vmatpush1.bf16.msra.mxu0 0
        %1246 = vmatprep.subr.bf16.mxu0 0
        %1247 = vmatpush1.bf16.msra.mxu0 0
        %1248 = vmatprep.subr.bf16.mxu0 0
        %1249 = vmatpush1.bf16.msra.mxu0 0
        %1250 = vmatprep.subr.bf16.mxu0 0
        %1251 = vmatpush1.bf16.msra.mxu0 0
        %1252 = vmatprep.subr.bf16.mxu0 0
        %1253 = vmatpush1.bf16.msra.mxu0 0
        %1254 = vmatprep.subr.bf16.mxu0 0
        %1255 = vmatpush1.bf16.msra.mxu0 0
        %1256 = vmatprep.subr.bf16.mxu0 0
        %1257 = vmatpush1.bf16.msra.mxu0 0
        %1258 = vmatprep.subr.bf16.mxu0 0
        %1259 = vmatpush1.bf16.msra.mxu0 0
        %1260 = vmatprep.subr.bf16.mxu0 0
        %1261 = vmatpush1.bf16.msra.mxu0 0
        %1262 = vmatprep.subr.bf16.mxu0 0
        %1263 = vmatpush1.bf16.msra.mxu0 0
        %1264 = vmatprep.mubr.bf16.mxu0 0
        %1265 = vmatmul.mubr.bf16.gmra.mrb[0].mxu0 %v1071
        %v1266 = vpop.f32.mrb[0].mxu0
        %v1267 = vadd.f32 0.0, %v1266
        %v1268 = vpop.f32.mrb[0].mxu0
        %v1269 = vpop.f32.mrb[0].mxu0
        %v1270 = vadd.f32 0.0, %v1269
        %v1271 = vpop.f32.mrb[0].mxu0
        %1272 = vdwg.mxu0
        %s1273 = scalar_lea.vmem %s11, 64
        %v1274 = vld [vmem:[%s1273] sm:$0xf]
        %v1275 = vld [vmem:[%s1273 + $0x4] sm:$0xf]
        %v1276 = vld [vmem:[%s1273 + $0x8] sm:$0xf]
        %v1277 = vld [vmem:[%s1273 + $0xc] sm:$0xf]
        %v1278 = vld [vmem:[%s1273 + $0x10] sm:$0xf]
        %v1279 = vld [vmem:[%s1273 + $0x14] sm:$0xf]
        %v1280 = vld [vmem:[%s1273 + $0x18] sm:$0xf]
        %v1281 = vld [vmem:[%s1273 + $0x1c] sm:$0xf]
        %v1282 = vld [vmem:[%s1273 + $0x20] sm:$0xf]
        %v1283 = vld [vmem:[%s1273 + $0x24] sm:$0xf]
        %v1284 = vld [vmem:[%s1273 + $0x28] sm:$0xf]
        %v1285 = vld [vmem:[%s1273 + $0x2c] sm:$0xf]
        %v1286 = vld [vmem:[%s1273 + $0x30] sm:$0xf]
        %v1287 = vld [vmem:[%s1273 + $0x34] sm:$0xf]
        %v1288 = vld [vmem:[%s1273 + $0x38] sm:$0xf]
        %v1289 = vld [vmem:[%s1273 + $0x3c] sm:$0xf]
        %v1294 = vunpack.c.l.b16 %v1274
        %v1295 = vunpack.c.l.b16 %v1275
        %v1296 = vunpack.c.l.b16 %v1276
        %v1297 = vunpack.c.l.b16 %v1277
        %v1298 = vpack.c.b16 %v1295, %v1294
        %v1299 = vpack.c.b16 %v1297, %v1296
        %v1303 = vsel %vm1069, %v922, 0
        %1305 = vmatprep.subr.bf16.mxu0 0
        %1306 = vmatpush1.bf16.msra.mxu0 %v1298
        %1307 = vmatprep.subr.bf16.mxu0 0
        %1308 = vmatpush1.bf16.msra.mxu0 %v1299
        %1309 = vmatprep.subr.bf16.mxu0 0
        %1310 = vmatpush1.bf16.msra.mxu0 0
        %1311 = vmatprep.subr.bf16.mxu0 0
        %1312 = vmatpush1.bf16.msra.mxu0 0
        %1313 = vmatprep.subr.bf16.mxu0 0
        %1314 = vmatpush1.bf16.msra.mxu0 0
        %1315 = vmatprep.subr.bf16.mxu0 0
        %1316 = vmatpush1.bf16.msra.mxu0 0
        %1317 = vmatprep.subr.bf16.mxu0 0
        %1318 = vmatpush1.bf16.msra.mxu0 0
        %1319 = vmatprep.subr.bf16.mxu0 0
        %1320 = vmatpush1.bf16.msra.mxu0 0
        %1321 = vmatprep.subr.bf16.mxu0 0
        %1322 = vmatpush1.bf16.msra.mxu0 0
        %1323 = vmatprep.subr.bf16.mxu0 0
        %1324 = vmatpush1.bf16.msra.mxu0 0
        %1325 = vmatprep.subr.bf16.mxu0 0
        %1326 = vmatpush1.bf16.msra.mxu0 0
        %1327 = vmatprep.subr.bf16.mxu0 0
        %1328 = vmatpush1.bf16.msra.mxu0 0
        %1329 = vmatprep.subr.bf16.mxu0 0
        %1330 = vmatpush1.bf16.msra.mxu0 0
        %1331 = vmatprep.subr.bf16.mxu0 0
        %1332 = vmatpush1.bf16.msra.mxu0 0
        %1333 = vmatprep.subr.bf16.mxu0 0
        %1334 = vmatpush1.bf16.msra.mxu0 0
        %1335 = vmatprep.subr.bf16.mxu0 0
        %1336 = vmatpush1.bf16.msra.mxu0 0
        %1337 = vmatprep.mubr.bf16.mxu0 0
        %1338 = vmatmul.mubr.bf16.gmra.mrb[0].mxu0 %v1303
        %v1339 = vpop.f32.mrb[0].mxu0
        %v1340 = vadd.f32 0.0, %v1339
        %v1341 = vpop.f32.mrb[0].mxu0
        %v1342 = vpop.f32.mrb[0].mxu0
        %v1343 = vadd.f32 0.0, %v1342
        %v1344 = vpop.f32.mrb[0].mxu0
        %1345 = vdwg.mxu0
        %v1350 = vunpack.c.l.b16 %v1278
        %v1351 = vunpack.c.l.b16 %v1279
        %v1352 = vunpack.c.l.b16 %v1280
        %v1353 = vunpack.c.l.b16 %v1281
        %v1354 = vpack.c.b16 %v1351, %v1350
        %v1355 = vpack.c.b16 %v1353, %v1352
        %1358 = vmatprep.subr.bf16.mxu0 0
        %1359 = vmatpush1.bf16.msra.mxu0 %v1354
        %1360 = vmatprep.subr.bf16.mxu0 0
        %1361 = vmatpush1.bf16.msra.mxu0 %v1355
        %1362 = vmatprep.subr.bf16.mxu0 0
        %1363 = vmatpush1.bf16.msra.mxu0 0
        %1364 = vmatprep.subr.bf16.mxu0 0
        %1365 = vmatpush1.bf16.msra.mxu0 0
        %1366 = vmatprep.subr.bf16.mxu0 0
        %1367 = vmatpush1.bf16.msra.mxu0 0
        %1368 = vmatprep.subr.bf16.mxu0 0
        %1369 = vmatpush1.bf16.msra.mxu0 0
        %1370 = vmatprep.subr.bf16.mxu0 0
        %1371 = vmatpush1.bf16.msra.mxu0 0
        %1372 = vmatprep.subr.bf16.mxu0 0
        %1373 = vmatpush1.bf16.msra.mxu0 0
        %1374 = vmatprep.subr.bf16.mxu0 0
        %1375 = vmatpush1.bf16.msra.mxu0 0
        %1376 = vmatprep.subr.bf16.mxu0 0
        %1377 = vmatpush1.bf16.msra.mxu0 0
        %1378 = vmatprep.subr.bf16.mxu0 0
        %1379 = vmatpush1.bf16.msra.mxu0 0
        %1380 = vmatprep.subr.bf16.mxu0 0
        %1381 = vmatpush1.bf16.msra.mxu0 0
        %1382 = vmatprep.subr.bf16.mxu0 0
        %1383 = vmatpush1.bf16.msra.mxu0 0
        %1384 = vmatprep.subr.bf16.mxu0 0
        %1385 = vmatpush1.bf16.msra.mxu0 0
        %1386 = vmatprep.subr.bf16.mxu0 0
        %1387 = vmatpush1.bf16.msra.mxu0 0
        %1388 = vmatprep.subr.bf16.mxu0 0
        %1389 = vmatpush1.bf16.msra.mxu0 0
        %1390 = vmatprep.mubr.bf16.mxu0 0
        %1391 = vmatmul.mubr.bf16.gmra.mrb[0].mxu0 %v1303
        %v1392 = vpop.f32.mrb[0].mxu0
        %v1393 = vadd.f32 0.0, %v1392
        %v1394 = vpop.f32.mrb[0].mxu0
        %v1395 = vpop.f32.mrb[0].mxu0
        %v1396 = vadd.f32 0.0, %v1395
        %v1397 = vpop.f32.mrb[0].mxu0
        %1398 = vdwg.mxu0
        %v1403 = vunpack.c.l.b16 %v1282
        %v1404 = vunpack.c.l.b16 %v1283
        %v1405 = vunpack.c.l.b16 %v1284
        %v1406 = vunpack.c.l.b16 %v1285
        %v1407 = vpack.c.b16 %v1404, %v1403
        %v1408 = vpack.c.b16 %v1406, %v1405
        %1411 = vmatprep.subr.bf16.mxu0 0
        %1412 = vmatpush1.bf16.msra.mxu0 %v1407
        %1413 = vmatprep.subr.bf16.mxu0 0
        %1414 = vmatpush1.bf16.msra.mxu0 %v1408
        %1415 = vmatprep.subr.bf16.mxu0 0
        %1416 = vmatpush1.bf16.msra.mxu0 0
        %1417 = vmatprep.subr.bf16.mxu0 0
        %1418 = vmatpush1.bf16.msra.mxu0 0
        %1419 = vmatprep.subr.bf16.mxu0 0
        %1420 = vmatpush1.bf16.msra.mxu0 0
        %1421 = vmatprep.subr.bf16.mxu0 0
        %1422 = vmatpush1.bf16.msra.mxu0 0
        %1423 = vmatprep.subr.bf16.mxu0 0
        %1424 = vmatpush1.bf16.msra.mxu0 0
        %1425 = vmatprep.subr.bf16.mxu0 0
        %1426 = vmatpush1.bf16.msra.mxu0 0
        %1427 = vmatprep.subr.bf16.mxu0 0
        %1428 = vmatpush1.bf16.msra.mxu0 0
        %1429 = vmatprep.subr.bf16.mxu0 0
        %1430 = vmatpush1.bf16.msra.mxu0 0
        %1431 = vmatprep.subr.bf16.mxu0 0
        %1432 = vmatpush1.bf16.msra.mxu0 0
        %1433 = vmatprep.subr.bf16.mxu0 0
        %1434 = vmatpush1.bf16.msra.mxu0 0
        %1435 = vmatprep.subr.bf16.mxu0 0
        %1436 = vmatpush1.bf16.msra.mxu0 0
        %1437 = vmatprep.subr.bf16.mxu0 0
        %1438 = vmatpush1.bf16.msra.mxu0 0
        %1439 = vmatprep.subr.bf16.mxu0 0
        %1440 = vmatpush1.bf16.msra.mxu0 0
        %1441 = vmatprep.subr.bf16.mxu0 0
        %1442 = vmatpush1.bf16.msra.mxu0 0
        %1443 = vmatprep.mubr.bf16.mxu0 0
        %1444 = vmatmul.mubr.bf16.gmra.mrb[0].mxu0 %v1303
        %v1445 = vpop.f32.mrb[0].mxu0
        %v1446 = vadd.f32 0.0, %v1445
        %v1447 = vpop.f32.mrb[0].mxu0
        %v1448 = vpop.f32.mrb[0].mxu0
        %v1449 = vadd.f32 0.0, %v1448
        %v1450 = vpop.f32.mrb[0].mxu0
        %1451 = vdwg.mxu0
        %v1456 = vunpack.c.l.b16 %v1286
        %v1457 = vunpack.c.l.b16 %v1287
        %v1458 = vunpack.c.l.b16 %v1288
        %v1459 = vunpack.c.l.b16 %v1289
        %v1460 = vpack.c.b16 %v1457, %v1456
        %v1461 = vpack.c.b16 %v1459, %v1458
        %1464 = vmatprep.subr.bf16.mxu0 0
        %1465 = vmatpush1.bf16.msra.mxu0 %v1460
        %1466 = vmatprep.subr.bf16.mxu0 0
        %1467 = vmatpush1.bf16.msra.mxu0 %v1461
        %1468 = vmatprep.subr.bf16.mxu0 0
        %1469 = vmatpush1.bf16.msra.mxu0 0
        %1470 = vmatprep.subr.bf16.mxu0 0
        %1471 = vmatpush1.bf16.msra.mxu0 0
        %1472 = vmatprep.subr.bf16.mxu0 0
        %1473 = vmatpush1.bf16.msra.mxu0 0
        %1474 = vmatprep.subr.bf16.mxu0 0
        %1475 = vmatpush1.bf16.msra.mxu0 0
        %1476 = vmatprep.subr.bf16.mxu0 0
        %1477 = vmatpush1.bf16.msra.mxu0 0
        %1478 = vmatprep.subr.bf16.mxu0 0
        %1479 = vmatpush1.bf16.msra.mxu0 0
        %1480 = vmatprep.subr.bf16.mxu0 0
        %1481 = vmatpush1.bf16.msra.mxu0 0
        %1482 = vmatprep.subr.bf16.mxu0 0
        %1483 = vmatpush1.bf16.msra.mxu0 0
        %1484 = vmatprep.subr.bf16.mxu0 0
        %1485 = vmatpush1.bf16.msra.mxu0 0
        %1486 = vmatprep.subr.bf16.mxu0 0
        %1487 = vmatpush1.bf16.msra.mxu0 0
        %1488 = vmatprep.subr.bf16.mxu0 0
        %1489 = vmatpush1.bf16.msra.mxu0 0
        %1490 = vmatprep.subr.bf16.mxu0 0
        %1491 = vmatpush1.bf16.msra.mxu0 0
        %1492 = vmatprep.subr.bf16.mxu0 0
        %1493 = vmatpush1.bf16.msra.mxu0 0
        %1494 = vmatprep.subr.bf16.mxu0 0
        %1495 = vmatpush1.bf16.msra.mxu0 0
        %1496 = vmatprep.mubr.bf16.mxu0 0
        %1497 = vmatmul.mubr.bf16.gmra.mrb[0].mxu0 %v1303
        %v1498 = vpop.f32.mrb[0].mxu0
        %v1499 = vadd.f32 0.0, %v1498
        %v1500 = vpop.f32.mrb[0].mxu0
        %v1501 = vpop.f32.mrb[0].mxu0
        %v1502 = vadd.f32 0.0, %v1501
        %v1503 = vpop.f32.mrb[0].mxu0
        %1504 = vdwg.mxu0
        %v1505 = vpack.c.bf16 %v1111, %v1108
        %v1506 = vpack.c.bf16 %v1164, %v1161
        %v1507 = vpack.c.bf16 %v1217, %v1214
        %v1508 = vpack.c.bf16 %v1270, %v1267
        %v1510 = vsel %vm1069, %v1039, 0
        %v1513 = vsel %vm1069, %v1505, 0
        %1515 = vmatprep.subr.bf16.mxu0 0
        %1516 = vmatpush1.bf16.xpose.msra.mxu0 %v1513
        %1517 = vmatprep.subr.bf16.mxu0 0
        %1518 = vmatpush1.bf16.xpose.msra.mxu0 0
        %1519 = vmatprep.subr.bf16.mxu0 0
        %1520 = vmatpush1.bf16.xpose.msra.mxu0 0
        %1521 = vmatprep.subr.bf16.mxu0 0
        %1522 = vmatpush1.bf16.xpose.msra.mxu0 0
        %1523 = vmatprep.subr.bf16.mxu0 0
        %1524 = vmatpush1.bf16.xpose.msra.mxu0 0
        %1525 = vmatprep.subr.bf16.mxu0 0
        %1526 = vmatpush1.bf16.xpose.msra.mxu0 0
        %1527 = vmatprep.subr.bf16.mxu0 0
        %1528 = vmatpush1.bf16.xpose.msra.mxu0 0
        %1529 = vmatprep.subr.bf16.mxu0 0
        %1530 = vmatpush1.bf16.xpose.msra.mxu0 0
        %1531 = vmatprep.subr.bf16.mxu0 0
        %1532 = vmatpush1.bf16.xpose.msra.mxu0 0
        %1533 = vmatprep.subr.bf16.mxu0 0
        %1534 = vmatpush1.bf16.xpose.msra.mxu0 0
        %1535 = vmatprep.subr.bf16.mxu0 0
        %1536 = vmatpush1.bf16.xpose.msra.mxu0 0
        %1537 = vmatprep.subr.bf16.mxu0 0
        %1538 = vmatpush1.bf16.xpose.msra.mxu0 0
        %1539 = vmatprep.subr.bf16.mxu0 0
        %1540 = vmatpush1.bf16.xpose.msra.mxu0 0
        %1541 = vmatprep.subr.bf16.mxu0 0
        %1542 = vmatpush1.bf16.xpose.msra.mxu0 0
        %1543 = vmatprep.subr.bf16.mxu0 0
        %1544 = vmatpush1.bf16.xpose.msra.mxu0 0
        %1545 = vmatprep.subr.bf16.mxu0 0
        %1546 = vmatpush1.bf16.xpose.msra.mxu0 0
        %1547 = vmatprep.mubr.bf16.mxu0 0
        %1548 = vmatmul.mubr.bf16.gmra.mrb[0].mxu0 %v1510
        %v1549 = vpop.f32.mrb[0].mxu0
        %v1550 = vadd.f32 0.0, %v1549
        %v1551 = vpop.f32.mrb[0].mxu0
        %v1552 = vpop.f32.mrb[0].mxu0
        %v1553 = vpop.f32.mrb[0].mxu0
        %1554 = vdwg.mxu0
        %v1556 = vsel %vm1069, %v1506, 0
        %1558 = vmatprep.subr.bf16.mxu0 0
        %1559 = vmatpush1.bf16.xpose.msra.mxu0 %v1556
        %1560 = vmatprep.subr.bf16.mxu0 0
        %1561 = vmatpush1.bf16.xpose.msra.mxu0 0
        %1562 = vmatprep.subr.bf16.mxu0 0
        %1563 = vmatpush1.bf16.xpose.msra.mxu0 0
        %1564 = vmatprep.subr.bf16.mxu0 0
        %1565 = vmatpush1.bf16.xpose.msra.mxu0 0
        %1566 = vmatprep.subr.bf16.mxu0 0
        %1567 = vmatpush1.bf16.xpose.msra.mxu0 0
        %1568 = vmatprep.subr.bf16.mxu0 0
        %1569 = vmatpush1.bf16.xpose.msra.mxu0 0
        %1570 = vmatprep.subr.bf16.mxu0 0
        %1571 = vmatpush1.bf16.xpose.msra.mxu0 0
        %1572 = vmatprep.subr.bf16.mxu0 0
        %1573 = vmatpush1.bf16.xpose.msra.mxu0 0
        %1574 = vmatprep.subr.bf16.mxu0 0
        %1575 = vmatpush1.bf16.xpose.msra.mxu0 0
        %1576 = vmatprep.subr.bf16.mxu0 0
        %1577 = vmatpush1.bf16.xpose.msra.mxu0 0
        %1578 = vmatprep.subr.bf16.mxu0 0
        %1579 = vmatpush1.bf16.xpose.msra.mxu0 0
        %1580 = vmatprep.subr.bf16.mxu0 0
        %1581 = vmatpush1.bf16.xpose.msra.mxu0 0
        %1582 = vmatprep.subr.bf16.mxu0 0
        %1583 = vmatpush1.bf16.xpose.msra.mxu0 0
        %1584 = vmatprep.subr.bf16.mxu0 0
        %1585 = vmatpush1.bf16.xpose.msra.mxu0 0
        %1586 = vmatprep.subr.bf16.mxu0 0
        %1587 = vmatpush1.bf16.xpose.msra.mxu0 0
        %1588 = vmatprep.subr.bf16.mxu0 0
        %1589 = vmatpush1.bf16.xpose.msra.mxu0 0
        %1590 = vmatprep.mubr.bf16.mxu0 0
        %1591 = vmatmul.mubr.bf16.gmra.mrb[0].mxu0 %v1510
        %v1592 = vpop.f32.mrb[0].mxu0
        %v1593 = vadd.f32 0.0, %v1592
        %v1594 = vpop.f32.mrb[0].mxu0
        %v1595 = vpop.f32.mrb[0].mxu0
        %v1596 = vpop.f32.mrb[0].mxu0
        %1597 = vdwg.mxu0
        %v1599 = vsel %vm1069, %v1507, 0
        %1601 = vmatprep.subr.bf16.mxu0 0
        %1602 = vmatpush1.bf16.xpose.msra.mxu0 %v1599
        %1603 = vmatprep.subr.bf16.mxu0 0
        %1604 = vmatpush1.bf16.xpose.msra.mxu0 0
        %1605 = vmatprep.subr.bf16.mxu0 0
        %1606 = vmatpush1.bf16.xpose.msra.mxu0 0
        %1607 = vmatprep.subr.bf16.mxu0 0
        %1608 = vmatpush1.bf16.xpose.msra.mxu0 0
        %1609 = vmatprep.subr.bf16.mxu0 0
        %1610 = vmatpush1.bf16.xpose.msra.mxu0 0
        %1611 = vmatprep.subr.bf16.mxu0 0
        %1612 = vmatpush1.bf16.xpose.msra.mxu0 0
        %1613 = vmatprep.subr.bf16.mxu0 0
        %1614 = vmatpush1.bf16.xpose.msra.mxu0 0
        %1615 = vmatprep.subr.bf16.mxu0 0
        %1616 = vmatpush1.bf16.xpose.msra.mxu0 0
        %1617 = vmatprep.subr.bf16.mxu0 0
        %1618 = vmatpush1.bf16.xpose.msra.mxu0 0
        %1619 = vmatprep.subr.bf16.mxu0 0
        %1620 = vmatpush1.bf16.xpose.msra.mxu0 0
        %1621 = vmatprep.subr.bf16.mxu0 0
        %1622 = vmatpush1.bf16.xpose.msra.mxu0 0
        %1623 = vmatprep.subr.bf16.mxu0 0
        %1624 = vmatpush1.bf16.xpose.msra.mxu0 0
        %1625 = vmatprep.subr.bf16.mxu0 0
        %1626 = vmatpush1.bf16.xpose.msra.mxu0 0
        %1627 = vmatprep.subr.bf16.mxu0 0
        %1628 = vmatpush1.bf16.xpose.msra.mxu0 0
        %1629 = vmatprep.subr.bf16.mxu0 0
        %1630 = vmatpush1.bf16.xpose.msra.mxu0 0
        %1631 = vmatprep.subr.bf16.mxu0 0
        %1632 = vmatpush1.bf16.xpose.msra.mxu0 0
        %1633 = vmatprep.mubr.bf16.mxu0 0
        %1634 = vmatmul.mubr.bf16.gmra.mrb[0].mxu0 %v1510
        %v1635 = vpop.f32.mrb[0].mxu0
        %v1636 = vadd.f32 0.0, %v1635
        %v1637 = vpop.f32.mrb[0].mxu0
        %v1638 = vpop.f32.mrb[0].mxu0
        %v1639 = vpop.f32.mrb[0].mxu0
        %1640 = vdwg.mxu0
        %v1642 = vsel %vm1069, %v1508, 0
        %1644 = vmatprep.subr.bf16.mxu0 0
        %1645 = vmatpush1.bf16.xpose.msra.mxu0 %v1642
        %1646 = vmatprep.subr.bf16.mxu0 0
        %1647 = vmatpush1.bf16.xpose.msra.mxu0 0
        %1648 = vmatprep.subr.bf16.mxu0 0
        %1649 = vmatpush1.bf16.xpose.msra.mxu0 0
        %1650 = vmatprep.subr.bf16.mxu0 0
        %1651 = vmatpush1.bf16.xpose.msra.mxu0 0
        %1652 = vmatprep.subr.bf16.mxu0 0
        %1653 = vmatpush1.bf16.xpose.msra.mxu0 0
        %1654 = vmatprep.subr.bf16.mxu0 0
        %1655 = vmatpush1.bf16.xpose.msra.mxu0 0
        %1656 = vmatprep.subr.bf16.mxu0 0
        %1657 = vmatpush1.bf16.xpose.msra.mxu0 0
        %1658 = vmatprep.subr.bf16.mxu0 0
        %1659 = vmatpush1.bf16.xpose.msra.mxu0 0
        %1660 = vmatprep.subr.bf16.mxu0 0
        %1661 = vmatpush1.bf16.xpose.msra.mxu0 0
        %1662 = vmatprep.subr.bf16.mxu0 0
        %1663 = vmatpush1.bf16.xpose.msra.mxu0 0
        %1664 = vmatprep.subr.bf16.mxu0 0
        %1665 = vmatpush1.bf16.xpose.msra.mxu0 0
        %1666 = vmatprep.subr.bf16.mxu0 0
        %1667 = vmatpush1.bf16.xpose.msra.mxu0 0
        %1668 = vmatprep.subr.bf16.mxu0 0
        %1669 = vmatpush1.bf16.xpose.msra.mxu0 0
        %1670 = vmatprep.subr.bf16.mxu0 0
        %1671 = vmatpush1.bf16.xpose.msra.mxu0 0
        %1672 = vmatprep.subr.bf16.mxu0 0
        %1673 = vmatpush1.bf16.xpose.msra.mxu0 0
        %1674 = vmatprep.subr.bf16.mxu0 0
        %1675 = vmatpush1.bf16.xpose.msra.mxu0 0
        %1676 = vmatprep.mubr.bf16.mxu0 0
        %1677 = vmatmul.mubr.bf16.gmra.mrb[0].mxu0 %v1510
        %v1678 = vpop.f32.mrb[0].mxu0
        %v1679 = vadd.f32 0.0, %v1678
        %v1680 = vpop.f32.mrb[0].mxu0
        %v1681 = vpop.f32.mrb[0].mxu0
        %v1682 = vpop.f32.mrb[0].mxu0
        %1683 = vdwg.mxu0
        %s1684 = scalar_lea.vmem %s12, 4
        %v1685 = vld [vmem:[%s1684] sm:$0x1]
        %v1686 = vld [vmem:[%s1684 + $0x1] sm:$0x1]
        %v1687 = vld [vmem:[%s1684 + $0x2] sm:$0x1]
        %v1688 = vld [vmem:[%s1684 + $0x3] sm:$0x1]
        %v1693 = vlaneseq
        %v1694 = vshrl.u32 %v1693, 7
        %v1695 = vsub.s32 0, %v1694
        %v1696 = vrot.slane %v1685, %v1695
        %v1697 = vlaneseq
        %v1698 = vshrl.u32 %v1697, 7
        %v1699 = vsub.s32 0, %v1698
        %v1700 = vrot.slane %v1686, %v1699
        %v1701 = vlaneseq
        %v1702 = vshrl.u32 %v1701, 7
        %v1703 = vsub.s32 0, %v1702
        %v1704 = vrot.slane %v1687, %v1703
        %v1705 = vlaneseq
        %v1706 = vshrl.u32 %v1705, 7
        %v1707 = vsub.s32 0, %v1706
        %v1708 = vrot.slane %v1688, %v1707
        %1709 = vset.pattern.permute.xlu0 0
        %1710 = vperm.xlu0 %1709, %v1696
        %v1711 = vpop.permute.xlu0 %1710
        %1713 = vset.pattern.permute.xlu0 0
        %1714 = vperm.xlu0 %1713, %v1700
        %v1715 = vpop.permute.xlu0 %1714
        %1717 = vset.pattern.permute.xlu0 0
        %1718 = vperm.xlu0 %1717, %v1704
        %v1719 = vpop.permute.xlu0 %1718
        %1721 = vset.pattern.permute.xlu0 0
        %1722 = vperm.xlu0 %1721, %v1708
        %v1723 = vpop.permute.xlu0 %1722
        %v1725 = vmul.f32 %v1550, %v1711
        %v1726 = vmul.f32 %v1593, %v1715
        %v1727 = vmul.f32 %v1636, %v1719
        %v1728 = vmul.f32 %v1679, %v1723
        %vm1729 = vcmask 130048
        %v1730 = vsel %vm1729, %v1725, -inf
        %1731 = vmax.xlane.f32.xlu0 %v1730
        %v1732 = vpop.xlane.xlu0 %1731
        %v1733 = vsel %vm1729, %v1726, -inf
        %1734 = vmax.xlane.f32.xlu0 %v1733
        %v1735 = vpop.xlane.xlu0 %1734
        %v1736 = vsel %vm1729, %v1727, -inf
        %1737 = vmax.xlane.f32.xlu0 %v1736
        %v1738 = vpop.xlane.xlu0 %1737
        %v1739 = vsel %vm1729, %v1728, -inf
        %1740 = vmax.xlane.f32.xlu0 %v1739
        %v1741 = vpop.xlane.xlu0 %1740
        %v1742 = vsub.f32 %v1725, %v1732
        %v1743 = vsub.f32 %v1726, %v1735
        %v1744 = vsub.f32 %v1727, %v1738
        %v1745 = vsub.f32 %v1728, %v1741
        %v1746 = vmul.f32 %v1742, 1.442695
        %v1747 = vpow.pop %v1746
        %v1748 = vmul.f32 %v1743, 1.442695
        %v1749 = vpow.pop %v1748
        %v1750 = vmul.f32 %v1744, 1.442695
        %v1751 = vpow.pop %v1750
        %v1752 = vmul.f32 %v1745, 1.442695
        %v1753 = vpow.pop %v1752
        %v1754 = vsel %vm1729, %v1747, 0.0
        %1755 = vadd.xlane.f32.xlu0 %v1754
        %v1756 = vpop.xlane.xlu0 %1755
        %v1757 = vsel %vm1729, %v1749, 0.0
        %1758 = vadd.xlane.f32.xlu0 %v1757
        %v1759 = vpop.xlane.xlu0 %1758
        %v1760 = vsel %vm1729, %v1751, 0.0
        %1761 = vadd.xlane.f32.xlu0 %v1760
        %v1762 = vpop.xlane.xlu0 %1761
        %v1763 = vsel %vm1729, %v1753, 0.0
        %1764 = vadd.xlane.f32.xlu0 %v1763
        %v1765 = vpop.xlane.xlu0 %1764
        %v1766 = vrcp.pop %v1756
        %v1767 = vrcp.pop %v1759
        %v1768 = vrcp.pop %v1762
        %v1769 = vrcp.pop %v1765
        %v1770 = vmul.f32 %v1747, %v1766
        %v1771 = vmul.f32 %v1749, %v1767
        %v1772 = vmul.f32 %v1751, %v1768
        %v1773 = vmul.f32 %v1753, %v1769
        %v1774 = vpack.c.bf16 %v1770, %v1770
        %v1775 = vpack.c.bf16 %v1771, %v1771
        %v1776 = vpack.c.bf16 %v1772, %v1772
        %v1777 = vpack.c.bf16 %v1773, %v1773
        %v1778 = vpack.c.bf16 %v1343, %v1340
        %v1779 = vpack.c.bf16 %v1396, %v1393
        %v1780 = vpack.c.bf16 %v1449, %v1446
        %v1781 = vpack.c.bf16 %v1502, %v1499
        %v1783 = vsel %vm1729, %v1774, 0
        %1785 = vmatprep.subr.bf16.mxu0 0
        %1786 = vmatpush1.bf16.msra.mxu0 %v1778
        %1787 = vmatprep.subr.bf16.mxu0 0
        %1788 = vmatpush1.bf16.msra.mxu0 0
        %1789 = vmatprep.subr.bf16.mxu0 0
        %1790 = vmatpush1.bf16.msra.mxu0 0
        %1791 = vmatprep.subr.bf16.mxu0 0
        %1792 = vmatpush1.bf16.msra.mxu0 0
        %1793 = vmatprep.subr.bf16.mxu0 0
        %1794 = vmatpush1.bf16.msra.mxu0 0
        %1795 = vmatprep.subr.bf16.mxu0 0
        %1796 = vmatpush1.bf16.msra.mxu0 0
        %1797 = vmatprep.subr.bf16.mxu0 0
        %1798 = vmatpush1.bf16.msra.mxu0 0
        %1799 = vmatprep.subr.bf16.mxu0 0
        %1800 = vmatpush1.bf16.msra.mxu0 0
        %1801 = vmatprep.subr.bf16.mxu0 0
        %1802 = vmatpush1.bf16.msra.mxu0 0
        %1803 = vmatprep.subr.bf16.mxu0 0
        %1804 = vmatpush1.bf16.msra.mxu0 0
        %1805 = vmatprep.subr.bf16.mxu0 0
        %1806 = vmatpush1.bf16.msra.mxu0 0
        %1807 = vmatprep.subr.bf16.mxu0 0
        %1808 = vmatpush1.bf16.msra.mxu0 0
        %1809 = vmatprep.subr.bf16.mxu0 0
        %1810 = vmatpush1.bf16.msra.mxu0 0
        %1811 = vmatprep.subr.bf16.mxu0 0
        %1812 = vmatpush1.bf16.msra.mxu0 0
        %1813 = vmatprep.subr.bf16.mxu0 0
        %1814 = vmatpush1.bf16.msra.mxu0 0
        %1815 = vmatprep.subr.bf16.mxu0 0
        %1816 = vmatpush1.bf16.msra.mxu0 0
        %1817 = vmatprep.mubr.bf16.mxu0 0
        %1818 = vmatmul.mubr.bf16.gmra.mrb[0].mxu0 %v1783
        %v1819 = vpop.f32.mrb[0].mxu0
        %v1820 = vadd.f32 0.0, %v1819
        %v1821 = vpop.f32.mrb[0].mxu0
        %v1822 = vpop.f32.mrb[0].mxu0
        %v1823 = vpop.f32.mrb[0].mxu0
        %1824 = vdwg.mxu0
        %v1826 = vsel %vm1729, %v1775, 0
        %1828 = vmatprep.subr.bf16.mxu0 0
        %1829 = vmatpush1.bf16.msra.mxu0 %v1779
        %1830 = vmatprep.subr.bf16.mxu0 0
        %1831 = vmatpush1.bf16.msra.mxu0 0
        %1832 = vmatprep.subr.bf16.mxu0 0
        %1833 = vmatpush1.bf16.msra.mxu0 0
        %1834 = vmatprep.subr.bf16.mxu0 0
        %1835 = vmatpush1.bf16.msra.mxu0 0
        %1836 = vmatprep.subr.bf16.mxu0 0
        %1837 = vmatpush1.bf16.msra.mxu0 0
        %1838 = vmatprep.subr.bf16.mxu0 0
        %1839 = vmatpush1.bf16.msra.mxu0 0
        %1840 = vmatprep.subr.bf16.mxu0 0
        %1841 = vmatpush1.bf16.msra.mxu0 0
        %1842 = vmatprep.subr.bf16.mxu0 0
        %1843 = vmatpush1.bf16.msra.mxu0 0
        %1844 = vmatprep.subr.bf16.mxu0 0
        %1845 = vmatpush1.bf16.msra.mxu0 0
        %1846 = vmatprep.subr.bf16.mxu0 0
        %1847 = vmatpush1.bf16.msra.mxu0 0
        %1848 = vmatprep.subr.bf16.mxu0 0
        %1849 = vmatpush1.bf16.msra.mxu0 0
        %1850 = vmatprep.subr.bf16.mxu0 0
        %1851 = vmatpush1.bf16.msra.mxu0 0
        %1852 = vmatprep.subr.bf16.mxu0 0
        %1853 = vmatpush1.bf16.msra.mxu0 0
        %1854 = vmatprep.subr.bf16.mxu0 0
        %1855 = vmatpush1.bf16.msra.mxu0 0
        %1856 = vmatprep.subr.bf16.mxu0 0
        %1857 = vmatpush1.bf16.msra.mxu0 0
        %1858 = vmatprep.subr.bf16.mxu0 0
        %1859 = vmatpush1.bf16.msra.mxu0 0
        %1860 = vmatprep.mubr.bf16.mxu0 0
        %1861 = vmatmul.mubr.bf16.gmra.mrb[0].mxu0 %v1826
        %v1862 = vpop.f32.mrb[0].mxu0
        %v1863 = vadd.f32 0.0, %v1862
        %v1864 = vpop.f32.mrb[0].mxu0
        %v1865 = vpop.f32.mrb[0].mxu0
        %v1866 = vpop.f32.mrb[0].mxu0
        %1867 = vdwg.mxu0
        %v1869 = vsel %vm1729, %v1776, 0
        %1871 = vmatprep.subr.bf16.mxu0 0
        %1872 = vmatpush1.bf16.msra.mxu0 %v1780
        %1873 = vmatprep.subr.bf16.mxu0 0
        %1874 = vmatpush1.bf16.msra.mxu0 0
        %1875 = vmatprep.subr.bf16.mxu0 0
        %1876 = vmatpush1.bf16.msra.mxu0 0
        %1877 = vmatprep.subr.bf16.mxu0 0
        %1878 = vmatpush1.bf16.msra.mxu0 0
        %1879 = vmatprep.subr.bf16.mxu0 0
        %1880 = vmatpush1.bf16.msra.mxu0 0
        %1881 = vmatprep.subr.bf16.mxu0 0
        %1882 = vmatpush1.bf16.msra.mxu0 0
        %1883 = vmatprep.subr.bf16.mxu0 0
        %1884 = vmatpush1.bf16.msra.mxu0 0
        %1885 = vmatprep.subr.bf16.mxu0 0
        %1886 = vmatpush1.bf16.msra.mxu0 0
        %1887 = vmatprep.subr.bf16.mxu0 0
        %1888 = vmatpush1.bf16.msra.mxu0 0
        %1889 = vmatprep.subr.bf16.mxu0 0
        %1890 = vmatpush1.bf16.msra.mxu0 0
        %1891 = vmatprep.subr.bf16.mxu0 0
        %1892 = vmatpush1.bf16.msra.mxu0 0
        %1893 = vmatprep.subr.bf16.mxu0 0
        %1894 = vmatpush1.bf16.msra.mxu0 0
        %1895 = vmatprep.subr.bf16.mxu0 0
        %1896 = vmatpush1.bf16.msra.mxu0 0
        %1897 = vmatprep.subr.bf16.mxu0 0
        %1898 = vmatpush1.bf16.msra.mxu0 0
        %1899 = vmatprep.subr.bf16.mxu0 0
        %1900 = vmatpush1.bf16.msra.mxu0 0
        %1901 = vmatprep.subr.bf16.mxu0 0
        %1902 = vmatpush1.bf16.msra.mxu0 0
        %1903 = vmatprep.mubr.bf16.mxu0 0
        %1904 = vmatmul.mubr.bf16.gmra.mrb[0].mxu0 %v1869
        %v1905 = vpop.f32.mrb[0].mxu0
        %v1906 = vadd.f32 0.0, %v1905
        %v1907 = vpop.f32.mrb[0].mxu0
        %v1908 = vpop.f32.mrb[0].mxu0
        %v1909 = vpop.f32.mrb[0].mxu0
        %1910 = vdwg.mxu0
        %v1912 = vsel %vm1729, %v1777, 0
        %1914 = vmatprep.subr.bf16.mxu0 0
        %1915 = vmatpush1.bf16.msra.mxu0 %v1781
        %1916 = vmatprep.subr.bf16.mxu0 0
        %1917 = vmatpush1.bf16.msra.mxu0 0
        %1918 = vmatprep.subr.bf16.mxu0 0
        %1919 = vmatpush1.bf16.msra.mxu0 0
        %1920 = vmatprep.subr.bf16.mxu0 0
        %1921 = vmatpush1.bf16.msra.mxu0 0
        %1922 = vmatprep.subr.bf16.mxu0 0
        %1923 = vmatpush1.bf16.msra.mxu0 0
        %1924 = vmatprep.subr.bf16.mxu0 0
        %1925 = vmatpush1.bf16.msra.mxu0 0
        %1926 = vmatprep.subr.bf16.mxu0 0
        %1927 = vmatpush1.bf16.msra.mxu0 0
        %1928 = vmatprep.subr.bf16.mxu0 0
        %1929 = vmatpush1.bf16.msra.mxu0 0
        %1930 = vmatprep.subr.bf16.mxu0 0
        %1931 = vmatpush1.bf16.msra.mxu0 0
        %1932 = vmatprep.subr.bf16.mxu0 0
        %1933 = vmatpush1.bf16.msra.mxu0 0
        %1934 = vmatprep.subr.bf16.mxu0 0
        %1935 = vmatpush1.bf16.msra.mxu0 0
        %1936 = vmatprep.subr.bf16.mxu0 0
        %1937 = vmatpush1.bf16.msra.mxu0 0
        %1938 = vmatprep.subr.bf16.mxu0 0
        %1939 = vmatpush1.bf16.msra.mxu0 0
        %1940 = vmatprep.subr.bf16.mxu0 0
        %1941 = vmatpush1.bf16.msra.mxu0 0
        %1942 = vmatprep.subr.bf16.mxu0 0
        %1943 = vmatpush1.bf16.msra.mxu0 0
        %1944 = vmatprep.subr.bf16.mxu0 0
        %1945 = vmatpush1.bf16.msra.mxu0 0
        %1946 = vmatprep.mubr.bf16.mxu0 0
        %1947 = vmatmul.mubr.bf16.gmra.mrb[0].mxu0 %v1912
        %v1948 = vpop.f32.mrb[0].mxu0
        %v1949 = vadd.f32 0.0, %v1948
        %v1950 = vpop.f32.mrb[0].mxu0
        %v1951 = vpop.f32.mrb[0].mxu0
        %v1952 = vpop.f32.mrb[0].mxu0
        %1953 = vdwg.mxu0
        %v1954 = vsel %vm1069, %v1820, 0.0
        %v1955 = vsel %vm1069, %v1863, 0.0
        %v1956 = vadd.f32 %v1954, %v1955
        %v1957 = vsel %vm1069, %v1906, 0.0
        %v1958 = vadd.f32 %v1956, %v1957
        %v1959 = vsel %vm1069, %v1949, 0.0
        %v1960 = vadd.f32 %v1958, %v1959
        %v1961 = vadd.f32 %v1960, 0.0
        %s1962 = scalar_lea.vmem %s10, 128
        %v1963 = vld [vmem:[%s1962] sm:$0xf]
        %v1964 = vld [vmem:[%s1962 + $0x4] sm:$0xf]
        %v1965 = vld [vmem:[%s1962 + $0x8] sm:$0xf]
        %v1966 = vld [vmem:[%s1962 + $0xc] sm:$0xf]
        %v1967 = vld [vmem:[%s1962 + $0x10] sm:$0xf]
        %v1968 = vld [vmem:[%s1962 + $0x14] sm:$0xf]
        %v1969 = vld [vmem:[%s1962 + $0x18] sm:$0xf]
        %v1970 = vld [vmem:[%s1962 + $0x1c] sm:$0xf]
        %v1971 = vld [vmem:[%s1962 + $0x20] sm:$0xf]
        %v1972 = vld [vmem:[%s1962 + $0x24] sm:$0xf]
        %v1973 = vld [vmem:[%s1962 + $0x28] sm:$0xf]
        %v1974 = vld [vmem:[%s1962 + $0x2c] sm:$0xf]
        %v1975 = vld [vmem:[%s1962 + $0x30] sm:$0xf]
        %v1976 = vld [vmem:[%s1962 + $0x34] sm:$0xf]
        %v1977 = vld [vmem:[%s1962 + $0x38] sm:$0xf]
        %v1978 = vld [vmem:[%s1962 + $0x3c] sm:$0xf]
        %v1983 = vunpack.c.l.b16 %v1963
        %v1984 = vunpack.c.l.b16 %v1964
        %v1985 = vunpack.c.l.b16 %v1965
        %v1986 = vunpack.c.l.b16 %v1966
        %v1987 = vpack.c.b16 %v1984, %v1983
        %v1988 = vpack.c.b16 %v1986, %v1985
        %v1992 = vsel %vm1069, %v682, 0
        %1994 = vmatprep.subr.bf16.mxu0 0
        %1995 = vmatpush1.bf16.msra.mxu0 %v1987
        %1996 = vmatprep.subr.bf16.mxu0 0
        %1997 = vmatpush1.bf16.msra.mxu0 %v1988
        %1998 = vmatprep.subr.bf16.mxu0 0
        %1999 = vmatpush1.bf16.msra.mxu0 0
        %2000 = vmatprep.subr.bf16.mxu0 0
        %2001 = vmatpush1.bf16.msra.mxu0 0
        %2002 = vmatprep.subr.bf16.mxu0 0
        %2003 = vmatpush1.bf16.msra.mxu0 0
        %2004 = vmatprep.subr.bf16.mxu0 0
        %2005 = vmatpush1.bf16.msra.mxu0 0
        %2006 = vmatprep.subr.bf16.mxu0 0
        %2007 = vmatpush1.bf16.msra.mxu0 0
        %2008 = vmatprep.subr.bf16.mxu0 0
        %2009 = vmatpush1.bf16.msra.mxu0 0
        %2010 = vmatprep.subr.bf16.mxu0 0
        %2011 = vmatpush1.bf16.msra.mxu0 0
        %2012 = vmatprep.subr.bf16.mxu0 0
        %2013 = vmatpush1.bf16.msra.mxu0 0
        %2014 = vmatprep.subr.bf16.mxu0 0
        %2015 = vmatpush1.bf16.msra.mxu0 0
        %2016 = vmatprep.subr.bf16.mxu0 0
        %2017 = vmatpush1.bf16.msra.mxu0 0
        %2018 = vmatprep.subr.bf16.mxu0 0
        %2019 = vmatpush1.bf16.msra.mxu0 0
        %2020 = vmatprep.subr.bf16.mxu0 0
        %2021 = vmatpush1.bf16.msra.mxu0 0
        %2022 = vmatprep.subr.bf16.mxu0 0
        %2023 = vmatpush1.bf16.msra.mxu0 0
        %2024 = vmatprep.subr.bf16.mxu0 0
        %2025 = vmatpush1.bf16.msra.mxu0 0
        %2026 = vmatprep.mubr.bf16.mxu0 0
        %2027 = vmatmul.mubr.bf16.gmra.mrb[0].mxu0 %v1992
        %v2028 = vpop.f32.mrb[0].mxu0
        %v2029 = vadd.f32 0.0, %v2028
        %v2030 = vpop.f32.mrb[0].mxu0
        %v2031 = vpop.f32.mrb[0].mxu0
        %v2032 = vadd.f32 0.0, %v2031
        %v2033 = vpop.f32.mrb[0].mxu0
        %2034 = vdwg.mxu0
        %v2039 = vunpack.c.l.b16 %v1967
        %v2040 = vunpack.c.l.b16 %v1968
        %v2041 = vunpack.c.l.b16 %v1969
        %v2042 = vunpack.c.l.b16 %v1970
        %v2043 = vpack.c.b16 %v2040, %v2039
        %v2044 = vpack.c.b16 %v2042, %v2041
        %2047 = vmatprep.subr.bf16.mxu0 0
        %2048 = vmatpush1.bf16.msra.mxu0 %v2043
        %2049 = vmatprep.subr.bf16.mxu0 0
        %2050 = vmatpush1.bf16.msra.mxu0 %v2044
        %2051 = vmatprep.subr.bf16.mxu0 0
        %2052 = vmatpush1.bf16.msra.mxu0 0
        %2053 = vmatprep.subr.bf16.mxu0 0
        %2054 = vmatpush1.bf16.msra.mxu0 0
        %2055 = vmatprep.subr.bf16.mxu0 0
        %2056 = vmatpush1.bf16.msra.mxu0 0
        %2057 = vmatprep.subr.bf16.mxu0 0
        %2058 = vmatpush1.bf16.msra.mxu0 0
        %2059 = vmatprep.subr.bf16.mxu0 0
        %2060 = vmatpush1.bf16.msra.mxu0 0
        %2061 = vmatprep.subr.bf16.mxu0 0
        %2062 = vmatpush1.bf16.msra.mxu0 0
        %2063 = vmatprep.subr.bf16.mxu0 0
        %2064 = vmatpush1.bf16.msra.mxu0 0
        %2065 = vmatprep.subr.bf16.mxu0 0
        %2066 = vmatpush1.bf16.msra.mxu0 0
        %2067 = vmatprep.subr.bf16.mxu0 0
        %2068 = vmatpush1.bf16.msra.mxu0 0
        %2069 = vmatprep.subr.bf16.mxu0 0
        %2070 = vmatpush1.bf16.msra.mxu0 0
        %2071 = vmatprep.subr.bf16.mxu0 0
        %2072 = vmatpush1.bf16.msra.mxu0 0
        %2073 = vmatprep.subr.bf16.mxu0 0
        %2074 = vmatpush1.bf16.msra.mxu0 0
        %2075 = vmatprep.subr.bf16.mxu0 0
        %2076 = vmatpush1.bf16.msra.mxu0 0
        %2077 = vmatprep.subr.bf16.mxu0 0
        %2078 = vmatpush1.bf16.msra.mxu0 0
        %2079 = vmatprep.mubr.bf16.mxu0 0
        %2080 = vmatmul.mubr.bf16.gmra.mrb[0].mxu0 %v1992
        %v2081 = vpop.f32.mrb[0].mxu0
        %v2082 = vadd.f32 0.0, %v2081
        %v2083 = vpop.f32.mrb[0].mxu0
        %v2084 = vpop.f32.mrb[0].mxu0
        %v2085 = vadd.f32 0.0, %v2084
        %v2086 = vpop.f32.mrb[0].mxu0
        %2087 = vdwg.mxu0
        %v2092 = vunpack.c.l.b16 %v1971
        %v2093 = vunpack.c.l.b16 %v1972
        %v2094 = vunpack.c.l.b16 %v1973
        %v2095 = vunpack.c.l.b16 %v1974
        %v2096 = vpack.c.b16 %v2093, %v2092
        %v2097 = vpack.c.b16 %v2095, %v2094
        %2100 = vmatprep.subr.bf16.mxu0 0
        %2101 = vmatpush1.bf16.msra.mxu0 %v2096
        %2102 = vmatprep.subr.bf16.mxu0 0
        %2103 = vmatpush1.bf16.msra.mxu0 %v2097
        %2104 = vmatprep.subr.bf16.mxu0 0
        %2105 = vmatpush1.bf16.msra.mxu0 0
        %2106 = vmatprep.subr.bf16.mxu0 0
        %2107 = vmatpush1.bf16.msra.mxu0 0
        %2108 = vmatprep.subr.bf16.mxu0 0
        %2109 = vmatpush1.bf16.msra.mxu0 0
        %2110 = vmatprep.subr.bf16.mxu0 0
        %2111 = vmatpush1.bf16.msra.mxu0 0
        %2112 = vmatprep.subr.bf16.mxu0 0
        %2113 = vmatpush1.bf16.msra.mxu0 0
        %2114 = vmatprep.subr.bf16.mxu0 0
        %2115 = vmatpush1.bf16.msra.mxu0 0
        %2116 = vmatprep.subr.bf16.mxu0 0
        %2117 = vmatpush1.bf16.msra.mxu0 0
        %2118 = vmatprep.subr.bf16.mxu0 0
        %2119 = vmatpush1.bf16.msra.mxu0 0
        %2120 = vmatprep.subr.bf16.mxu0 0
        %2121 = vmatpush1.bf16.msra.mxu0 0
        %2122 = vmatprep.subr.bf16.mxu0 0
        %2123 = vmatpush1.bf16.msra.mxu0 0
        %2124 = vmatprep.subr.bf16.mxu0 0
        %2125 = vmatpush1.bf16.msra.mxu0 0
        %2126 = vmatprep.subr.bf16.mxu0 0
        %2127 = vmatpush1.bf16.msra.mxu0 0
        %2128 = vmatprep.subr.bf16.mxu0 0
        %2129 = vmatpush1.bf16.msra.mxu0 0
        %2130 = vmatprep.subr.bf16.mxu0 0
        %2131 = vmatpush1.bf16.msra.mxu0 0
        %2132 = vmatprep.mubr.bf16.mxu0 0
        %2133 = vmatmul.mubr.bf16.gmra.mrb[0].mxu0 %v1992
        %v2134 = vpop.f32.mrb[0].mxu0
        %v2135 = vadd.f32 0.0, %v2134
        %v2136 = vpop.f32.mrb[0].mxu0
        %v2137 = vpop.f32.mrb[0].mxu0
        %v2138 = vadd.f32 0.0, %v2137
        %v2139 = vpop.f32.mrb[0].mxu0
        %2140 = vdwg.mxu0
        %v2145 = vunpack.c.l.b16 %v1975
        %v2146 = vunpack.c.l.b16 %v1976
        %v2147 = vunpack.c.l.b16 %v1977
        %v2148 = vunpack.c.l.b16 %v1978
        %v2149 = vpack.c.b16 %v2146, %v2145
        %v2150 = vpack.c.b16 %v2148, %v2147
        %2153 = vmatprep.subr.bf16.mxu0 0
        %2154 = vmatpush1.bf16.msra.mxu0 %v2149
        %2155 = vmatprep.subr.bf16.mxu0 0
        %2156 = vmatpush1.bf16.msra.mxu0 %v2150
        %2157 = vmatprep.subr.bf16.mxu0 0
        %2158 = vmatpush1.bf16.msra.mxu0 0
        %2159 = vmatprep.subr.bf16.mxu0 0
        %2160 = vmatpush1.bf16.msra.mxu0 0
        %2161 = vmatprep.subr.bf16.mxu0 0
        %2162 = vmatpush1.bf16.msra.mxu0 0
        %2163 = vmatprep.subr.bf16.mxu0 0
        %2164 = vmatpush1.bf16.msra.mxu0 0
        %2165 = vmatprep.subr.bf16.mxu0 0
        %2166 = vmatpush1.bf16.msra.mxu0 0
        %2167 = vmatprep.subr.bf16.mxu0 0
        %2168 = vmatpush1.bf16.msra.mxu0 0
        %2169 = vmatprep.subr.bf16.mxu0 0
        %2170 = vmatpush1.bf16.msra.mxu0 0
        %2171 = vmatprep.subr.bf16.mxu0 0
        %2172 = vmatpush1.bf16.msra.mxu0 0
        %2173 = vmatprep.subr.bf16.mxu0 0
        %2174 = vmatpush1.bf16.msra.mxu0 0
        %2175 = vmatprep.subr.bf16.mxu0 0
        %2176 = vmatpush1.bf16.msra.mxu0 0
        %2177 = vmatprep.subr.bf16.mxu0 0
        %2178 = vmatpush1.bf16.msra.mxu0 0
        %2179 = vmatprep.subr.bf16.mxu0 0
        %2180 = vmatpush1.bf16.msra.mxu0 0
        %2181 = vmatprep.subr.bf16.mxu0 0
        %2182 = vmatpush1.bf16.msra.mxu0 0
        %2183 = vmatprep.subr.bf16.mxu0 0
        %2184 = vmatpush1.bf16.msra.mxu0 0
        %2185 = vmatprep.mubr.bf16.mxu0 0
        %2186 = vmatmul.mubr.bf16.gmra.mrb[0].mxu0 %v1992
        %v2187 = vpop.f32.mrb[0].mxu0
        %v2188 = vadd.f32 0.0, %v2187
        %v2189 = vpop.f32.mrb[0].mxu0
        %v2190 = vpop.f32.mrb[0].mxu0
        %v2191 = vadd.f32 0.0, %v2190
        %v2192 = vpop.f32.mrb[0].mxu0
        %2193 = vdwg.mxu0
        %s2194 = scalar_lea.vmem %s11, 128
        %v2195 = vld [vmem:[%s2194] sm:$0xf]
        %v2196 = vld [vmem:[%s2194 + $0x4] sm:$0xf]
        %v2197 = vld [vmem:[%s2194 + $0x8] sm:$0xf]
        %v2198 = vld [vmem:[%s2194 + $0xc] sm:$0xf]
        %v2199 = vld [vmem:[%s2194 + $0x10] sm:$0xf]
        %v2200 = vld [vmem:[%s2194 + $0x14] sm:$0xf]
        %v2201 = vld [vmem:[%s2194 + $0x18] sm:$0xf]
        %v2202 = vld [vmem:[%s2194 + $0x1c] sm:$0xf]
        %v2203 = vld [vmem:[%s2194 + $0x20] sm:$0xf]
        %v2204 = vld [vmem:[%s2194 + $0x24] sm:$0xf]
        %v2205 = vld [vmem:[%s2194 + $0x28] sm:$0xf]
        %v2206 = vld [vmem:[%s2194 + $0x2c] sm:$0xf]
        %v2207 = vld [vmem:[%s2194 + $0x30] sm:$0xf]
        %v2208 = vld [vmem:[%s2194 + $0x34] sm:$0xf]
        %v2209 = vld [vmem:[%s2194 + $0x38] sm:$0xf]
        %v2210 = vld [vmem:[%s2194 + $0x3c] sm:$0xf]
        %v2215 = vunpack.c.l.b16 %v2195
        %v2216 = vunpack.c.l.b16 %v2196
        %v2217 = vunpack.c.l.b16 %v2197
        %v2218 = vunpack.c.l.b16 %v2198
        %v2219 = vpack.c.b16 %v2216, %v2215
        %v2220 = vpack.c.b16 %v2218, %v2217
        %v2224 = vsel %vm1069, %v683, 0
        %2226 = vmatprep.subr.bf16.mxu0 0
        %2227 = vmatpush1.bf16.msra.mxu0 %v2219
        %2228 = vmatprep.subr.bf16.mxu0 0
        %2229 = vmatpush1.bf16.msra.mxu0 %v2220
        %2230 = vmatprep.subr.bf16.mxu0 0
        %2231 = vmatpush1.bf16.msra.mxu0 0
        %2232 = vmatprep.subr.bf16.mxu0 0
        %2233 = vmatpush1.bf16.msra.mxu0 0
        %2234 = vmatprep.subr.bf16.mxu0 0
        %2235 = vmatpush1.bf16.msra.mxu0 0
        %2236 = vmatprep.subr.bf16.mxu0 0
        %2237 = vmatpush1.bf16.msra.mxu0 0
        %2238 = vmatprep.subr.bf16.mxu0 0
        %2239 = vmatpush1.bf16.msra.mxu0 0
        %2240 = vmatprep.subr.bf16.mxu0 0
        %2241 = vmatpush1.bf16.msra.mxu0 0
        %2242 = vmatprep.subr.bf16.mxu0 0
        %2243 = vmatpush1.bf16.msra.mxu0 0
        %2244 = vmatprep.subr.bf16.mxu0 0
        %2245 = vmatpush1.bf16.msra.mxu0 0
        %2246 = vmatprep.subr.bf16.mxu0 0
        %2247 = vmatpush1.bf16.msra.mxu0 0
        %2248 = vmatprep.subr.bf16.mxu0 0
        %2249 = vmatpush1.bf16.msra.mxu0 0
        %2250 = vmatprep.subr.bf16.mxu0 0
        %2251 = vmatpush1.bf16.msra.mxu0 0
        %2252 = vmatprep.subr.bf16.mxu0 0
        %2253 = vmatpush1.bf16.msra.mxu0 0
        %2254 = vmatprep.subr.bf16.mxu0 0
        %2255 = vmatpush1.bf16.msra.mxu0 0
        %2256 = vmatprep.subr.bf16.mxu0 0
        %2257 = vmatpush1.bf16.msra.mxu0 0
        %2258 = vmatprep.mubr.bf16.mxu0 0
        %2259 = vmatmul.mubr.bf16.gmra.mrb[0].mxu0 %v2224
        %v2260 = vpop.f32.mrb[0].mxu0
        %v2261 = vadd.f32 0.0, %v2260
        %v2262 = vpop.f32.mrb[0].mxu0
        %v2263 = vpop.f32.mrb[0].mxu0
        %v2264 = vadd.f32 0.0, %v2263
        %v2265 = vpop.f32.mrb[0].mxu0
        %2266 = vdwg.mxu0
        %v2271 = vunpack.c.l.b16 %v2199
        %v2272 = vunpack.c.l.b16 %v2200
        %v2273 = vunpack.c.l.b16 %v2201
        %v2274 = vunpack.c.l.b16 %v2202
        %v2275 = vpack.c.b16 %v2272, %v2271
        %v2276 = vpack.c.b16 %v2274, %v2273
        %2279 = vmatprep.subr.bf16.mxu0 0
        %2280 = vmatpush1.bf16.msra.mxu0 %v2275
        %2281 = vmatprep.subr.bf16.mxu0 0
        %2282 = vmatpush1.bf16.msra.mxu0 %v2276
        %2283 = vmatprep.subr.bf16.mxu0 0
        %2284 = vmatpush1.bf16.msra.mxu0 0
        %2285 = vmatprep.subr.bf16.mxu0 0
        %2286 = vmatpush1.bf16.msra.mxu0 0
        %2287 = vmatprep.subr.bf16.mxu0 0
        %2288 = vmatpush1.bf16.msra.mxu0 0
        %2289 = vmatprep.subr.bf16.mxu0 0
        %2290 = vmatpush1.bf16.msra.mxu0 0
        %2291 = vmatprep.subr.bf16.mxu0 0
        %2292 = vmatpush1.bf16.msra.mxu0 0
        %2293 = vmatprep.subr.bf16.mxu0 0
        %2294 = vmatpush1.bf16.msra.mxu0 0
        %2295 = vmatprep.subr.bf16.mxu0 0
        %2296 = vmatpush1.bf16.msra.mxu0 0
        %2297 = vmatprep.subr.bf16.mxu0 0
        %2298 = vmatpush1.bf16.msra.mxu0 0
        %2299 = vmatprep.subr.bf16.mxu0 0
        %2300 = vmatpush1.bf16.msra.mxu0 0
        %2301 = vmatprep.subr.bf16.mxu0 0
        %2302 = vmatpush1.bf16.msra.mxu0 0
        %2303 = vmatprep.subr.bf16.mxu0 0
        %2304 = vmatpush1.bf16.msra.mxu0 0
        %2305 = vmatprep.subr.bf16.mxu0 0
        %2306 = vmatpush1.bf16.msra.mxu0 0
        %2307 = vmatprep.subr.bf16.mxu0 0
        %2308 = vmatpush1.bf16.msra.mxu0 0
        %2309 = vmatprep.subr.bf16.mxu0 0
        %2310 = vmatpush1.bf16.msra.mxu0 0
        %2311 = vmatprep.mubr.bf16.mxu0 0
        %2312 = vmatmul.mubr.bf16.gmra.mrb[0].mxu0 %v2224
        %v2313 = vpop.f32.mrb[0].mxu0
        %v2314 = vadd.f32 0.0, %v2313
        %v2315 = vpop.f32.mrb[0].mxu0
        %v2316 = vpop.f32.mrb[0].mxu0
        %v2317 = vadd.f32 0.0, %v2316
        %v2318 = vpop.f32.mrb[0].mxu0
        %2319 = vdwg.mxu0
        %v2324 = vunpack.c.l.b16 %v2203
        %v2325 = vunpack.c.l.b16 %v2204
        %v2326 = vunpack.c.l.b16 %v2205
        %v2327 = vunpack.c.l.b16 %v2206
        %v2328 = vpack.c.b16 %v2325, %v2324
        %v2329 = vpack.c.b16 %v2327, %v2326
        %2332 = vmatprep.subr.bf16.mxu0 0
        %2333 = vmatpush1.bf16.msra.mxu0 %v2328
        %2334 = vmatprep.subr.bf16.mxu0 0
        %2335 = vmatpush1.bf16.msra.mxu0 %v2329
        %2336 = vmatprep.subr.bf16.mxu0 0
        %2337 = vmatpush1.bf16.msra.mxu0 0
        %2338 = vmatprep.subr.bf16.mxu0 0
        %2339 = vmatpush1.bf16.msra.mxu0 0
        %2340 = vmatprep.subr.bf16.mxu0 0
        %2341 = vmatpush1.bf16.msra.mxu0 0
        %2342 = vmatprep.subr.bf16.mxu0 0
        %2343 = vmatpush1.bf16.msra.mxu0 0
        %2344 = vmatprep.subr.bf16.mxu0 0
        %2345 = vmatpush1.bf16.msra.mxu0 0
        %2346 = vmatprep.subr.bf16.mxu0 0
        %2347 = vmatpush1.bf16.msra.mxu0 0
        %2348 = vmatprep.subr.bf16.mxu0 0
        %2349 = vmatpush1.bf16.msra.mxu0 0
        %2350 = vmatprep.subr.bf16.mxu0 0
        %2351 = vmatpush1.bf16.msra.mxu0 0
        %2352 = vmatprep.subr.bf16.mxu0 0
        %2353 = vmatpush1.bf16.msra.mxu0 0
        %2354 = vmatprep.subr.bf16.mxu0 0
        %2355 = vmatpush1.bf16.msra.mxu0 0
        %2356 = vmatprep.subr.bf16.mxu0 0
        %2357 = vmatpush1.bf16.msra.mxu0 0
        %2358 = vmatprep.subr.bf16.mxu0 0
        %2359 = vmatpush1.bf16.msra.mxu0 0
        %2360 = vmatprep.subr.bf16.mxu0 0
        %2361 = vmatpush1.bf16.msra.mxu0 0
        %2362 = vmatprep.subr.bf16.mxu0 0
        %2363 = vmatpush1.bf16.msra.mxu0 0
        %2364 = vmatprep.mubr.bf16.mxu0 0
        %2365 = vmatmul.mubr.bf16.gmra.mrb[0].mxu0 %v2224
        %v2366 = vpop.f32.mrb[0].mxu0
        %v2367 = vadd.f32 0.0, %v2366
        %v2368 = vpop.f32.mrb[0].mxu0
        %v2369 = vpop.f32.mrb[0].mxu0
        %v2370 = vadd.f32 0.0, %v2369
        %v2371 = vpop.f32.mrb[0].mxu0
        %2372 = vdwg.mxu0
        %v2377 = vunpack.c.l.b16 %v2207
        %v2378 = vunpack.c.l.b16 %v2208
        %v2379 = vunpack.c.l.b16 %v2209
        %v2380 = vunpack.c.l.b16 %v2210
        %v2381 = vpack.c.b16 %v2378, %v2377
        %v2382 = vpack.c.b16 %v2380, %v2379
        %2385 = vmatprep.subr.bf16.mxu0 0
        %2386 = vmatpush1.bf16.msra.mxu0 %v2381
        %2387 = vmatprep.subr.bf16.mxu0 0
        %2388 = vmatpush1.bf16.msra.mxu0 %v2382
        %2389 = vmatprep.subr.bf16.mxu0 0
        %2390 = vmatpush1.bf16.msra.mxu0 0
        %2391 = vmatprep.subr.bf16.mxu0 0
        %2392 = vmatpush1.bf16.msra.mxu0 0
        %2393 = vmatprep.subr.bf16.mxu0 0
        %2394 = vmatpush1.bf16.msra.mxu0 0
        %2395 = vmatprep.subr.bf16.mxu0 0
        %2396 = vmatpush1.bf16.msra.mxu0 0
        %2397 = vmatprep.subr.bf16.mxu0 0
        %2398 = vmatpush1.bf16.msra.mxu0 0
        %2399 = vmatprep.subr.bf16.mxu0 0
        %2400 = vmatpush1.bf16.msra.mxu0 0
        %2401 = vmatprep.subr.bf16.mxu0 0
        %2402 = vmatpush1.bf16.msra.mxu0 0
        %2403 = vmatprep.subr.bf16.mxu0 0
        %2404 = vmatpush1.bf16.msra.mxu0 0
        %2405 = vmatprep.subr.bf16.mxu0 0
        %2406 = vmatpush1.bf16.msra.mxu0 0
        %2407 = vmatprep.subr.bf16.mxu0 0
        %2408 = vmatpush1.bf16.msra.mxu0 0
        %2409 = vmatprep.subr.bf16.mxu0 0
        %2410 = vmatpush1.bf16.msra.mxu0 0
        %2411 = vmatprep.subr.bf16.mxu0 0
        %2412 = vmatpush1.bf16.msra.mxu0 0
        %2413 = vmatprep.subr.bf16.mxu0 0
        %2414 = vmatpush1.bf16.msra.mxu0 0
        %2415 = vmatprep.subr.bf16.mxu0 0
        %2416 = vmatpush1.bf16.msra.mxu0 0
        %2417 = vmatprep.mubr.bf16.mxu0 0
        %2418 = vmatmul.mubr.bf16.gmra.mrb[0].mxu0 %v2224
        %v2419 = vpop.f32.mrb[0].mxu0
        %v2420 = vadd.f32 0.0, %v2419
        %v2421 = vpop.f32.mrb[0].mxu0
        %v2422 = vpop.f32.mrb[0].mxu0
        %v2423 = vadd.f32 0.0, %v2422
        %v2424 = vpop.f32.mrb[0].mxu0
        %2425 = vdwg.mxu0
        %v2426 = vpack.c.bf16 %v2032, %v2029
        %v2427 = vpack.c.bf16 %v2085, %v2082
        %v2428 = vpack.c.bf16 %v2138, %v2135
        %v2429 = vpack.c.bf16 %v2191, %v2188
        %v2431 = vsel %vm1069, %v2426, 0
        %2433 = vmatprep.subr.bf16.mxu0 0
        %2434 = vmatpush1.bf16.xpose.msra.mxu0 %v2431
        %2435 = vmatprep.subr.bf16.mxu0 0
        %2436 = vmatpush1.bf16.xpose.msra.mxu0 0
        %2437 = vmatprep.subr.bf16.mxu0 0
        %2438 = vmatpush1.bf16.xpose.msra.mxu0 0
        %2439 = vmatprep.subr.bf16.mxu0 0
        %2440 = vmatpush1.bf16.xpose.msra.mxu0 0
        %2441 = vmatprep.subr.bf16.mxu0 0
        %2442 = vmatpush1.bf16.xpose.msra.mxu0 0
        %2443 = vmatprep.subr.bf16.mxu0 0
        %2444 = vmatpush1.bf16.xpose.msra.mxu0 0
        %2445 = vmatprep.subr.bf16.mxu0 0
        %2446 = vmatpush1.bf16.xpose.msra.mxu0 0
        %2447 = vmatprep.subr.bf16.mxu0 0
        %2448 = vmatpush1.bf16.xpose.msra.mxu0 0
        %2449 = vmatprep.subr.bf16.mxu0 0
        %2450 = vmatpush1.bf16.xpose.msra.mxu0 0
        %2451 = vmatprep.subr.bf16.mxu0 0
        %2452 = vmatpush1.bf16.xpose.msra.mxu0 0
        %2453 = vmatprep.subr.bf16.mxu0 0
        %2454 = vmatpush1.bf16.xpose.msra.mxu0 0
        %2455 = vmatprep.subr.bf16.mxu0 0
        %2456 = vmatpush1.bf16.xpose.msra.mxu0 0
        %2457 = vmatprep.subr.bf16.mxu0 0
        %2458 = vmatpush1.bf16.xpose.msra.mxu0 0
        %2459 = vmatprep.subr.bf16.mxu0 0
        %2460 = vmatpush1.bf16.xpose.msra.mxu0 0
        %2461 = vmatprep.subr.bf16.mxu0 0
        %2462 = vmatpush1.bf16.xpose.msra.mxu0 0
        %2463 = vmatprep.subr.bf16.mxu0 0
        %2464 = vmatpush1.bf16.xpose.msra.mxu0 0
        %2465 = vmatprep.mubr.bf16.mxu0 0
        %2466 = vmatmul.mubr.bf16.gmra.mrb[0].mxu0 %v1510
        %v2467 = vpop.f32.mrb[0].mxu0
        %v2468 = vadd.f32 0.0, %v2467
        %v2469 = vpop.f32.mrb[0].mxu0
        %v2470 = vpop.f32.mrb[0].mxu0
        %v2471 = vpop.f32.mrb[0].mxu0
        %2472 = vdwg.mxu0
        %v2474 = vsel %vm1069, %v2427, 0
        %2476 = vmatprep.subr.bf16.mxu0 0
        %2477 = vmatpush1.bf16.xpose.msra.mxu0 %v2474
        %2478 = vmatprep.subr.bf16.mxu0 0
        %2479 = vmatpush1.bf16.xpose.msra.mxu0 0
        %2480 = vmatprep.subr.bf16.mxu0 0
        %2481 = vmatpush1.bf16.xpose.msra.mxu0 0
        %2482 = vmatprep.subr.bf16.mxu0 0
        %2483 = vmatpush1.bf16.xpose.msra.mxu0 0
        %2484 = vmatprep.subr.bf16.mxu0 0
        %2485 = vmatpush1.bf16.xpose.msra.mxu0 0
        %2486 = vmatprep.subr.bf16.mxu0 0
        %2487 = vmatpush1.bf16.xpose.msra.mxu0 0
        %2488 = vmatprep.subr.bf16.mxu0 0
        %2489 = vmatpush1.bf16.xpose.msra.mxu0 0
        %2490 = vmatprep.subr.bf16.mxu0 0
        %2491 = vmatpush1.bf16.xpose.msra.mxu0 0
        %2492 = vmatprep.subr.bf16.mxu0 0
        %2493 = vmatpush1.bf16.xpose.msra.mxu0 0
        %2494 = vmatprep.subr.bf16.mxu0 0
        %2495 = vmatpush1.bf16.xpose.msra.mxu0 0
        %2496 = vmatprep.subr.bf16.mxu0 0
        %2497 = vmatpush1.bf16.xpose.msra.mxu0 0
        %2498 = vmatprep.subr.bf16.mxu0 0
        %2499 = vmatpush1.bf16.xpose.msra.mxu0 0
        %2500 = vmatprep.subr.bf16.mxu0 0
        %2501 = vmatpush1.bf16.xpose.msra.mxu0 0
        %2502 = vmatprep.subr.bf16.mxu0 0
        %2503 = vmatpush1.bf16.xpose.msra.mxu0 0
        %2504 = vmatprep.subr.bf16.mxu0 0
        %2505 = vmatpush1.bf16.xpose.msra.mxu0 0
        %2506 = vmatprep.subr.bf16.mxu0 0
        %2507 = vmatpush1.bf16.xpose.msra.mxu0 0
        %2508 = vmatprep.mubr.bf16.mxu0 0
        %2509 = vmatmul.mubr.bf16.gmra.mrb[0].mxu0 %v1510
        %v2510 = vpop.f32.mrb[0].mxu0
        %v2511 = vadd.f32 0.0, %v2510
        %v2512 = vpop.f32.mrb[0].mxu0
        %v2513 = vpop.f32.mrb[0].mxu0
        %v2514 = vpop.f32.mrb[0].mxu0
        %2515 = vdwg.mxu0
        %v2517 = vsel %vm1069, %v2428, 0
        %2519 = vmatprep.subr.bf16.mxu0 0
        %2520 = vmatpush1.bf16.xpose.msra.mxu0 %v2517
        %2521 = vmatprep.subr.bf16.mxu0 0
        %2522 = vmatpush1.bf16.xpose.msra.mxu0 0
        %2523 = vmatprep.subr.bf16.mxu0 0
        %2524 = vmatpush1.bf16.xpose.msra.mxu0 0
        %2525 = vmatprep.subr.bf16.mxu0 0
        %2526 = vmatpush1.bf16.xpose.msra.mxu0 0
        %2527 = vmatprep.subr.bf16.mxu0 0
        %2528 = vmatpush1.bf16.xpose.msra.mxu0 0
        %2529 = vmatprep.subr.bf16.mxu0 0
        %2530 = vmatpush1.bf16.xpose.msra.mxu0 0
        %2531 = vmatprep.subr.bf16.mxu0 0
        %2532 = vmatpush1.bf16.xpose.msra.mxu0 0
        %2533 = vmatprep.subr.bf16.mxu0 0
        %2534 = vmatpush1.bf16.xpose.msra.mxu0 0
        %2535 = vmatprep.subr.bf16.mxu0 0
        %2536 = vmatpush1.bf16.xpose.msra.mxu0 0
        %2537 = vmatprep.subr.bf16.mxu0 0
        %2538 = vmatpush1.bf16.xpose.msra.mxu0 0
        %2539 = vmatprep.subr.bf16.mxu0 0
        %2540 = vmatpush1.bf16.xpose.msra.mxu0 0
        %2541 = vmatprep.subr.bf16.mxu0 0
        %2542 = vmatpush1.bf16.xpose.msra.mxu0 0
        %2543 = vmatprep.subr.bf16.mxu0 0
        %2544 = vmatpush1.bf16.xpose.msra.mxu0 0
        %2545 = vmatprep.subr.bf16.mxu0 0
        %2546 = vmatpush1.bf16.xpose.msra.mxu0 0
        %2547 = vmatprep.subr.bf16.mxu0 0
        %2548 = vmatpush1.bf16.xpose.msra.mxu0 0
        %2549 = vmatprep.subr.bf16.mxu0 0
        %2550 = vmatpush1.bf16.xpose.msra.mxu0 0
        %2551 = vmatprep.mubr.bf16.mxu0 0
        %2552 = vmatmul.mubr.bf16.gmra.mrb[0].mxu0 %v1510
        %v2553 = vpop.f32.mrb[0].mxu0
        %v2554 = vadd.f32 0.0, %v2553
        %v2555 = vpop.f32.mrb[0].mxu0
        %v2556 = vpop.f32.mrb[0].mxu0
        %v2557 = vpop.f32.mrb[0].mxu0
        %2558 = vdwg.mxu0
        %v2560 = vsel %vm1069, %v2429, 0
        %2562 = vmatprep.subr.bf16.mxu0 0
        %2563 = vmatpush1.bf16.xpose.msra.mxu0 %v2560
        %2564 = vmatprep.subr.bf16.mxu0 0
        %2565 = vmatpush1.bf16.xpose.msra.mxu0 0
        %2566 = vmatprep.subr.bf16.mxu0 0
        %2567 = vmatpush1.bf16.xpose.msra.mxu0 0
        %2568 = vmatprep.subr.bf16.mxu0 0
        %2569 = vmatpush1.bf16.xpose.msra.mxu0 0
        %2570 = vmatprep.subr.bf16.mxu0 0
        %2571 = vmatpush1.bf16.xpose.msra.mxu0 0
        %2572 = vmatprep.subr.bf16.mxu0 0
        %2573 = vmatpush1.bf16.xpose.msra.mxu0 0
        %2574 = vmatprep.subr.bf16.mxu0 0
        %2575 = vmatpush1.bf16.xpose.msra.mxu0 0
        %2576 = vmatprep.subr.bf16.mxu0 0
        %2577 = vmatpush1.bf16.xpose.msra.mxu0 0
        %2578 = vmatprep.subr.bf16.mxu0 0
        %2579 = vmatpush1.bf16.xpose.msra.mxu0 0
        %2580 = vmatprep.subr.bf16.mxu0 0
        %2581 = vmatpush1.bf16.xpose.msra.mxu0 0
        %2582 = vmatprep.subr.bf16.mxu0 0
        %2583 = vmatpush1.bf16.xpose.msra.mxu0 0
        %2584 = vmatprep.subr.bf16.mxu0 0
        %2585 = vmatpush1.bf16.xpose.msra.mxu0 0
        %2586 = vmatprep.subr.bf16.mxu0 0
        %2587 = vmatpush1.bf16.xpose.msra.mxu0 0
        %2588 = vmatprep.subr.bf16.mxu0 0
        %2589 = vmatpush1.bf16.xpose.msra.mxu0 0
        %2590 = vmatprep.subr.bf16.mxu0 0
        %2591 = vmatpush1.bf16.xpose.msra.mxu0 0
        %2592 = vmatprep.subr.bf16.mxu0 0
        %2593 = vmatpush1.bf16.xpose.msra.mxu0 0
        %2594 = vmatprep.mubr.bf16.mxu0 0
        %2595 = vmatmul.mubr.bf16.gmra.mrb[0].mxu0 %v1510
        %v2596 = vpop.f32.mrb[0].mxu0
        %v2597 = vadd.f32 0.0, %v2596
        %v2598 = vpop.f32.mrb[0].mxu0
        %v2599 = vpop.f32.mrb[0].mxu0
        %v2600 = vpop.f32.mrb[0].mxu0
        %2601 = vdwg.mxu0
        %s2602 = scalar_lea.vmem %s12, 8
        %v2603 = vld [vmem:[%s2602] sm:$0x1]
        %v2604 = vld [vmem:[%s2602 + $0x1] sm:$0x1]
        %v2605 = vld [vmem:[%s2602 + $0x2] sm:$0x1]
        %v2606 = vld [vmem:[%s2602 + $0x3] sm:$0x1]
        %v2611 = vlaneseq
        %v2612 = vshrl.u32 %v2611, 7
        %v2613 = vsub.s32 0, %v2612
        %v2614 = vrot.slane %v2603, %v2613
        %v2615 = vlaneseq
        %v2616 = vshrl.u32 %v2615, 7
        %v2617 = vsub.s32 0, %v2616
        %v2618 = vrot.slane %v2604, %v2617
        %v2619 = vlaneseq
        %v2620 = vshrl.u32 %v2619, 7
        %v2621 = vsub.s32 0, %v2620
        %v2622 = vrot.slane %v2605, %v2621
        %v2623 = vlaneseq
        %v2624 = vshrl.u32 %v2623, 7
        %v2625 = vsub.s32 0, %v2624
        %v2626 = vrot.slane %v2606, %v2625
        %2627 = vset.pattern.permute.xlu0 0
        %2628 = vperm.xlu0 %2627, %v2614
        %v2629 = vpop.permute.xlu0 %2628
        %2631 = vset.pattern.permute.xlu0 0
        %2632 = vperm.xlu0 %2631, %v2618
        %v2633 = vpop.permute.xlu0 %2632
        %2635 = vset.pattern.permute.xlu0 0
        %2636 = vperm.xlu0 %2635, %v2622
        %v2637 = vpop.permute.xlu0 %2636
        %2639 = vset.pattern.permute.xlu0 0
        %2640 = vperm.xlu0 %2639, %v2626
        %v2641 = vpop.permute.xlu0 %2640
        %v2643 = vmul.f32 %v2468, %v2629
        %v2644 = vmul.f32 %v2511, %v2633
        %v2645 = vmul.f32 %v2554, %v2637
        %v2646 = vmul.f32 %v2597, %v2641
        %v2647 = vsel %vm1729, %v2643, -inf
        %2648 = vmax.xlane.f32.xlu0 %v2647
        %v2649 = vpop.xlane.xlu0 %2648
        %v2650 = vsel %vm1729, %v2644, -inf
        %2651 = vmax.xlane.f32.xlu0 %v2650
        %v2652 = vpop.xlane.xlu0 %2651
        %v2653 = vsel %vm1729, %v2645, -inf
        %2654 = vmax.xlane.f32.xlu0 %v2653
        %v2655 = vpop.xlane.xlu0 %2654
        %v2656 = vsel %vm1729, %v2646, -inf
        %2657 = vmax.xlane.f32.xlu0 %v2656
        %v2658 = vpop.xlane.xlu0 %2657
        %v2659 = vsub.f32 %v2643, %v2649
        %v2660 = vsub.f32 %v2644, %v2652
        %v2661 = vsub.f32 %v2645, %v2655
        %v2662 = vsub.f32 %v2646, %v2658
        %v2663 = vmul.f32 %v2659, 1.442695
        %v2664 = vpow.pop %v2663
        %v2665 = vmul.f32 %v2660, 1.442695
        %v2666 = vpow.pop %v2665
        %v2667 = vmul.f32 %v2661, 1.442695
        %v2668 = vpow.pop %v2667
        %v2669 = vmul.f32 %v2662, 1.442695
        %v2670 = vpow.pop %v2669
        %v2671 = vsel %vm1729, %v2664, 0.0
        %2672 = vadd.xlane.f32.xlu0 %v2671
        %v2673 = vpop.xlane.xlu0 %2672
        %v2674 = vsel %vm1729, %v2666, 0.0
        %2675 = vadd.xlane.f32.xlu0 %v2674
        %v2676 = vpop.xlane.xlu0 %2675
        %v2677 = vsel %vm1729, %v2668, 0.0
        %2678 = vadd.xlane.f32.xlu0 %v2677
        %v2679 = vpop.xlane.xlu0 %2678
        %v2680 = vsel %vm1729, %v2670, 0.0
        %2681 = vadd.xlane.f32.xlu0 %v2680
        %v2682 = vpop.xlane.xlu0 %2681
        %v2683 = vrcp.pop %v2673
        %v2684 = vrcp.pop %v2676
        %v2685 = vrcp.pop %v2679
        %v2686 = vrcp.pop %v2682
        %v2687 = vmul.f32 %v2664, %v2683
        %v2688 = vmul.f32 %v2666, %v2684
        %v2689 = vmul.f32 %v2668, %v2685
        %v2690 = vmul.f32 %v2670, %v2686
        %v2691 = vpack.c.bf16 %v2687, %v2687
        %v2692 = vpack.c.bf16 %v2688, %v2688
        %v2693 = vpack.c.bf16 %v2689, %v2689
        %v2694 = vpack.c.bf16 %v2690, %v2690
        %v2695 = vpack.c.bf16 %v2264, %v2261
        %v2696 = vpack.c.bf16 %v2317, %v2314
        %v2697 = vpack.c.bf16 %v2370, %v2367
        %v2698 = vpack.c.bf16 %v2423, %v2420
        %v2700 = vsel %vm1729, %v2691, 0
        %2702 = vmatprep.subr.bf16.mxu0 0
        %2703 = vmatpush1.bf16.msra.mxu0 %v2695
        %2704 = vmatprep.subr.bf16.mxu0 0
        %2705 = vmatpush1.bf16.msra.mxu0 0
        %2706 = vmatprep.subr.bf16.mxu0 0
        %2707 = vmatpush1.bf16.msra.mxu0 0
        %2708 = vmatprep.subr.bf16.mxu0 0
        %2709 = vmatpush1.bf16.msra.mxu0 0
        %2710 = vmatprep.subr.bf16.mxu0 0
        %2711 = vmatpush1.bf16.msra.mxu0 0
        %2712 = vmatprep.subr.bf16.mxu0 0
        %2713 = vmatpush1.bf16.msra.mxu0 0
        %2714 = vmatprep.subr.bf16.mxu0 0
        %2715 = vmatpush1.bf16.msra.mxu0 0
        %2716 = vmatprep.subr.bf16.mxu0 0
        %2717 = vmatpush1.bf16.msra.mxu0 0
        %2718 = vmatprep.subr.bf16.mxu0 0
        %2719 = vmatpush1.bf16.msra.mxu0 0
        %2720 = vmatprep.subr.bf16.mxu0 0
        %2721 = vmatpush1.bf16.msra.mxu0 0
        %2722 = vmatprep.subr.bf16.mxu0 0
        %2723 = vmatpush1.bf16.msra.mxu0 0
        %2724 = vmatprep.subr.bf16.mxu0 0
        %2725 = vmatpush1.bf16.msra.mxu0 0
        %2726 = vmatprep.subr.bf16.mxu0 0
        %2727 = vmatpush1.bf16.msra.mxu0 0
        %2728 = vmatprep.subr.bf16.mxu0 0
        %2729 = vmatpush1.bf16.msra.mxu0 0
        %2730 = vmatprep.subr.bf16.mxu0 0
        %2731 = vmatpush1.bf16.msra.mxu0 0
        %2732 = vmatprep.subr.bf16.mxu0 0
        %2733 = vmatpush1.bf16.msra.mxu0 0
        %2734 = vmatprep.mubr.bf16.mxu0 0
        %2735 = vmatmul.mubr.bf16.gmra.mrb[0].mxu0 %v2700
        %v2736 = vpop.f32.mrb[0].mxu0
        %v2737 = vadd.f32 0.0, %v2736
        %v2738 = vpop.f32.mrb[0].mxu0
        %v2739 = vpop.f32.mrb[0].mxu0
        %v2740 = vpop.f32.mrb[0].mxu0
        %2741 = vdwg.mxu0
        %v2743 = vsel %vm1729, %v2692, 0
        %2745 = vmatprep.subr.bf16.mxu0 0
        %2746 = vmatpush1.bf16.msra.mxu0 %v2696
        %2747 = vmatprep.subr.bf16.mxu0 0
        %2748 = vmatpush1.bf16.msra.mxu0 0
        %2749 = vmatprep.subr.bf16.mxu0 0
        %2750 = vmatpush1.bf16.msra.mxu0 0
        %2751 = vmatprep.subr.bf16.mxu0 0
        %2752 = vmatpush1.bf16.msra.mxu0 0
        %2753 = vmatprep.subr.bf16.mxu0 0
        %2754 = vmatpush1.bf16.msra.mxu0 0
        %2755 = vmatprep.subr.bf16.mxu0 0
        %2756 = vmatpush1.bf16.msra.mxu0 0
        %2757 = vmatprep.subr.bf16.mxu0 0
        %2758 = vmatpush1.bf16.msra.mxu0 0
        %2759 = vmatprep.subr.bf16.mxu0 0
        %2760 = vmatpush1.bf16.msra.mxu0 0
        %2761 = vmatprep.subr.bf16.mxu0 0
        %2762 = vmatpush1.bf16.msra.mxu0 0
        %2763 = vmatprep.subr.bf16.mxu0 0
        %2764 = vmatpush1.bf16.msra.mxu0 0
        %2765 = vmatprep.subr.bf16.mxu0 0
        %2766 = vmatpush1.bf16.msra.mxu0 0
        %2767 = vmatprep.subr.bf16.mxu0 0
        %2768 = vmatpush1.bf16.msra.mxu0 0
        %2769 = vmatprep.subr.bf16.mxu0 0
        %2770 = vmatpush1.bf16.msra.mxu0 0
        %2771 = vmatprep.subr.bf16.mxu0 0
        %2772 = vmatpush1.bf16.msra.mxu0 0
        %2773 = vmatprep.subr.bf16.mxu0 0
        %2774 = vmatpush1.bf16.msra.mxu0 0
        %2775 = vmatprep.subr.bf16.mxu0 0
        %2776 = vmatpush1.bf16.msra.mxu0 0
        %2777 = vmatprep.mubr.bf16.mxu0 0
        %2778 = vmatmul.mubr.bf16.gmra.mrb[0].mxu0 %v2743
        %v2779 = vpop.f32.mrb[0].mxu0
        %v2780 = vadd.f32 0.0, %v2779
        %v2781 = vpop.f32.mrb[0].mxu0
        %v2782 = vpop.f32.mrb[0].mxu0
        %v2783 = vpop.f32.mrb[0].mxu0
        %2784 = vdwg.mxu0
        %v2786 = vsel %vm1729, %v2693, 0
        %2788 = vmatprep.subr.bf16.mxu0 0
        %2789 = vmatpush1.bf16.msra.mxu0 %v2697
        %2790 = vmatprep.subr.bf16.mxu0 0
        %2791 = vmatpush1.bf16.msra.mxu0 0
        %2792 = vmatprep.subr.bf16.mxu0 0
        %2793 = vmatpush1.bf16.msra.mxu0 0
        %2794 = vmatprep.subr.bf16.mxu0 0
        %2795 = vmatpush1.bf16.msra.mxu0 0
        %2796 = vmatprep.subr.bf16.mxu0 0
        %2797 = vmatpush1.bf16.msra.mxu0 0
        %2798 = vmatprep.subr.bf16.mxu0 0
        %2799 = vmatpush1.bf16.msra.mxu0 0
        %2800 = vmatprep.subr.bf16.mxu0 0
        %2801 = vmatpush1.bf16.msra.mxu0 0
        %2802 = vmatprep.subr.bf16.mxu0 0
        %2803 = vmatpush1.bf16.msra.mxu0 0
        %2804 = vmatprep.subr.bf16.mxu0 0
        %2805 = vmatpush1.bf16.msra.mxu0 0
        %2806 = vmatprep.subr.bf16.mxu0 0
        %2807 = vmatpush1.bf16.msra.mxu0 0
        %2808 = vmatprep.subr.bf16.mxu0 0
        %2809 = vmatpush1.bf16.msra.mxu0 0
        %2810 = vmatprep.subr.bf16.mxu0 0
        %2811 = vmatpush1.bf16.msra.mxu0 0
        %2812 = vmatprep.subr.bf16.mxu0 0
        %2813 = vmatpush1.bf16.msra.mxu0 0
        %2814 = vmatprep.subr.bf16.mxu0 0
        %2815 = vmatpush1.bf16.msra.mxu0 0
        %2816 = vmatprep.subr.bf16.mxu0 0
        %2817 = vmatpush1.bf16.msra.mxu0 0
        %2818 = vmatprep.subr.bf16.mxu0 0
        %2819 = vmatpush1.bf16.msra.mxu0 0
        %2820 = vmatprep.mubr.bf16.mxu0 0
        %2821 = vmatmul.mubr.bf16.gmra.mrb[0].mxu0 %v2786
        %v2822 = vpop.f32.mrb[0].mxu0
        %v2823 = vadd.f32 0.0, %v2822
        %v2824 = vpop.f32.mrb[0].mxu0
        %v2825 = vpop.f32.mrb[0].mxu0
        %v2826 = vpop.f32.mrb[0].mxu0
        %2827 = vdwg.mxu0
        %v2829 = vsel %vm1729, %v2694, 0
        %2831 = vmatprep.subr.bf16.mxu0 0
        %2832 = vmatpush1.bf16.msra.mxu0 %v2698
        %2833 = vmatprep.subr.bf16.mxu0 0
        %2834 = vmatpush1.bf16.msra.mxu0 0
        %2835 = vmatprep.subr.bf16.mxu0 0
        %2836 = vmatpush1.bf16.msra.mxu0 0
        %2837 = vmatprep.subr.bf16.mxu0 0
        %2838 = vmatpush1.bf16.msra.mxu0 0
        %2839 = vmatprep.subr.bf16.mxu0 0
        %2840 = vmatpush1.bf16.msra.mxu0 0
        %2841 = vmatprep.subr.bf16.mxu0 0
        %2842 = vmatpush1.bf16.msra.mxu0 0
        %2843 = vmatprep.subr.bf16.mxu0 0
        %2844 = vmatpush1.bf16.msra.mxu0 0
        %2845 = vmatprep.subr.bf16.mxu0 0
        %2846 = vmatpush1.bf16.msra.mxu0 0
        %2847 = vmatprep.subr.bf16.mxu0 0
        %2848 = vmatpush1.bf16.msra.mxu0 0
        %2849 = vmatprep.subr.bf16.mxu0 0
        %2850 = vmatpush1.bf16.msra.mxu0 0
        %2851 = vmatprep.subr.bf16.mxu0 0
        %2852 = vmatpush1.bf16.msra.mxu0 0
        %2853 = vmatprep.subr.bf16.mxu0 0
        %2854 = vmatpush1.bf16.msra.mxu0 0
        %2855 = vmatprep.subr.bf16.mxu0 0
        %2856 = vmatpush1.bf16.msra.mxu0 0
        %2857 = vmatprep.subr.bf16.mxu0 0
        %2858 = vmatpush1.bf16.msra.mxu0 0
        %2859 = vmatprep.subr.bf16.mxu0 0
        %2860 = vmatpush1.bf16.msra.mxu0 0
        %2861 = vmatprep.subr.bf16.mxu0 0
        %2862 = vmatpush1.bf16.msra.mxu0 0
        %2863 = vmatprep.mubr.bf16.mxu0 0
        %2864 = vmatmul.mubr.bf16.gmra.mrb[0].mxu0 %v2829
        %v2865 = vpop.f32.mrb[0].mxu0
        %v2866 = vadd.f32 0.0, %v2865
        %v2867 = vpop.f32.mrb[0].mxu0
        %v2868 = vpop.f32.mrb[0].mxu0
        %v2869 = vpop.f32.mrb[0].mxu0
        %2870 = vdwg.mxu0
        %v2871 = vsel %vm1069, %v2737, 0.0
        %v2872 = vsel %vm1069, %v2780, 0.0
        %v2873 = vadd.f32 %v2871, %v2872
        %v2874 = vsel %vm1069, %v2823, 0.0
        %v2875 = vadd.f32 %v2873, %v2874
        %v2876 = vsel %vm1069, %v2866, 0.0
        %v2877 = vadd.f32 %v2875, %v2876
        %v2878 = vadd.f32 %v1961, %v2877
        %v2879 = vmul.f32 %v2878, 0.5
        %v2880 = vpack.c.bf16 %v2879, %v2879
        %v2881 = vld [vmem:[%s8] sm:$0xf]
        %v2882 = vld [vmem:[%s8 + $0x4] sm:$0xf]
        %v2883 = vld [vmem:[%s8 + $0x8] sm:$0xf]
        %v2884 = vld [vmem:[%s8 + $0xc] sm:$0xf]
        %v2885 = vld [vmem:[%s9] sm:$0x1]
        %v2887 = vlaneseq
        %v2888 = vshrl.u32 %v2887, 7
        %v2889 = vsub.s32 0, %v2888
        %v2890 = vrot.slane %v2885, %v2889
        %v2896 = vunpack.c.l.b16 %v2881
        %v2897 = vunpack.c.l.b16 %v2882
        %v2898 = vunpack.c.l.b16 %v2883
        %v2899 = vunpack.c.l.b16 %v2884
        %v2900 = vpack.c.b16 %v2897, %v2896
        %v2901 = vpack.c.b16 %v2899, %v2898
        %v2905 = vsel %vm1069, %v2880, 0
        %2907 = vmatprep.subr.bf16.mxu0 0
        %2908 = vmatpush1.bf16.msra.mxu0 %v2900
        %2909 = vmatprep.subr.bf16.mxu0 0
        %2910 = vmatpush1.bf16.msra.mxu0 %v2901
        %2911 = vmatprep.subr.bf16.mxu0 0
        %2912 = vmatpush1.bf16.msra.mxu0 0
        %2913 = vmatprep.subr.bf16.mxu0 0
        %2914 = vmatpush1.bf16.msra.mxu0 0
        %2915 = vmatprep.subr.bf16.mxu0 0
        %2916 = vmatpush1.bf16.msra.mxu0 0
        %2917 = vmatprep.subr.bf16.mxu0 0
        %2918 = vmatpush1.bf16.msra.mxu0 0
        %2919 = vmatprep.subr.bf16.mxu0 0
        %2920 = vmatpush1.bf16.msra.mxu0 0
        %2921 = vmatprep.subr.bf16.mxu0 0
        %2922 = vmatpush1.bf16.msra.mxu0 0
        %2923 = vmatprep.subr.bf16.mxu0 0
        %2924 = vmatpush1.bf16.msra.mxu0 0
        %2925 = vmatprep.subr.bf16.mxu0 0
        %2926 = vmatpush1.bf16.msra.mxu0 0
        %2927 = vmatprep.subr.bf16.mxu0 0
        %2928 = vmatpush1.bf16.msra.mxu0 0
        %2929 = vmatprep.subr.bf16.mxu0 0
        %2930 = vmatpush1.bf16.msra.mxu0 0
        %2931 = vmatprep.subr.bf16.mxu0 0
        %2932 = vmatpush1.bf16.msra.mxu0 0
        %2933 = vmatprep.subr.bf16.mxu0 0
        %2934 = vmatpush1.bf16.msra.mxu0 0
        %2935 = vmatprep.subr.bf16.mxu0 0
        %2936 = vmatpush1.bf16.msra.mxu0 0
        %2937 = vmatprep.subr.bf16.mxu0 0
        %2938 = vmatpush1.bf16.msra.mxu0 0
        %2939 = vmatprep.mubr.bf16.mxu0 0
        %2940 = vmatmul.mubr.bf16.gmra.mrb[0].mxu0 %v2905
        %v2941 = vpop.f32.mrb[0].mxu0
        %v2942 = vadd.f32 %v2890, %v2941
        %v2943 = vpop.f32.mrb[0].mxu0
        %v2944 = vpop.f32.mrb[0].mxu0
        %v2945 = vpop.f32.mrb[0].mxu0
        %2946 = vdwg.mxu0
        %s2947 = sld [smem:[#allocation2]]
        %v2948 = vstv %s2947
        %v2949 = vmul.f32 %v2942, %v2948
        %v2950 = vunpack.c.l.bf16 %v927
        %s2951 = ssub.f32 1.0, %s2947
        %v2952 = vstv %s2951
        %v2953 = vmul.f32 %v2950, %v2952
        %v2954 = vadd.f32 %v2949, %v2953
        %2955 = vst [vmem:[%s447] sm:$0xff] %v2954
        %s2956 = sadd.s32 %s923, 2
        %s2957 = smul.addr %s2956, 4
        %s2958 = scalar_lea.vmem [#allocation6], %s2957
        %v2959 = vld [vmem:[%s2958] sm:$0xf]
        %s2960 = scalar_lea.vmem %s2, 64
        %v2961 = vld [vmem:[%s2960] sm:$0xf]
        %v2962 = vld [vmem:[%s2960 + $0x4] sm:$0xf]
        %v2963 = vld [vmem:[%s2960 + $0x8] sm:$0xf]
        %v2964 = vld [vmem:[%s2960 + $0xc] sm:$0xf]
        %v2965 = vld [vmem:[%s2960 + $0x10] sm:$0xf]
        %v2966 = vld [vmem:[%s2960 + $0x14] sm:$0xf]
        %v2967 = vld [vmem:[%s2960 + $0x18] sm:$0xf]
        %v2968 = vld [vmem:[%s2960 + $0x1c] sm:$0xf]
        %v2969 = vld [vmem:[%s2960 + $0x20] sm:$0xf]
        %v2970 = vld [vmem:[%s2960 + $0x24] sm:$0xf]
        %v2971 = vld [vmem:[%s2960 + $0x28] sm:$0xf]
        %v2972 = vld [vmem:[%s2960 + $0x2c] sm:$0xf]
        %v2973 = vld [vmem:[%s2960 + $0x30] sm:$0xf]
        %v2974 = vld [vmem:[%s2960 + $0x34] sm:$0xf]
        %v2975 = vld [vmem:[%s2960 + $0x38] sm:$0xf]
        %v2976 = vld [vmem:[%s2960 + $0x3c] sm:$0xf]
        %s2977 = scalar_lea.vmem %s3, 1
        %v2978 = vld [vmem:[%s2977] sm:$0x1]
        %v2980 = vlaneseq
        %v2981 = vshrl.u32 %v2980, 7
        %v2982 = vsub.s32 0, %v2981
        %v2983 = vrot.slane %v2978, %v2982
        %v3001 = vunpack.c.l.b16 %v2961
        %v3002 = vunpack.c.l.b16 %v2962
        %v3003 = vunpack.c.l.b16 %v2963
        %v3004 = vunpack.c.l.b16 %v2964
        %v3005 = vunpack.c.l.b16 %v2965
        %v3006 = vunpack.c.l.b16 %v2966
        %v3007 = vunpack.c.l.b16 %v2967
        %v3008 = vunpack.c.l.b16 %v2968
        %v3009 = vunpack.c.l.b16 %v2969
        %v3010 = vunpack.c.l.b16 %v2970
        %v3011 = vunpack.c.l.b16 %v2971
        %v3012 = vunpack.c.l.b16 %v2972
        %v3013 = vunpack.c.l.b16 %v2973
        %v3014 = vunpack.c.l.b16 %v2974
        %v3015 = vunpack.c.l.b16 %v2975
        %v3016 = vunpack.c.l.b16 %v2976
        %v3017 = vpack.c.b16 %v3002, %v3001
        %v3018 = vpack.c.b16 %v3004, %v3003
        %v3019 = vpack.c.b16 %v3006, %v3005
        %v3020 = vpack.c.b16 %v3008, %v3007
        %v3021 = vpack.c.b16 %v3010, %v3009
        %v3022 = vpack.c.b16 %v3012, %v3011
        %v3023 = vpack.c.b16 %v3014, %v3013
        %v3024 = vpack.c.b16 %v3016, %v3015
        %3033 = vmatprep.subr.bf16.mxu0 0
        %3034 = vmatpush1.bf16.msra.mxu0 %v3017
        %3035 = vmatprep.subr.bf16.mxu0 0
        %3036 = vmatpush1.bf16.msra.mxu0 %v3018
        %3037 = vmatprep.subr.bf16.mxu0 0
        %3038 = vmatpush1.bf16.msra.mxu0 %v3019
        %3039 = vmatprep.subr.bf16.mxu0 0
        %3040 = vmatpush1.bf16.msra.mxu0 %v3020
        %3041 = vmatprep.subr.bf16.mxu0 0
        %3042 = vmatpush1.bf16.msra.mxu0 %v3021
        %3043 = vmatprep.subr.bf16.mxu0 0
        %3044 = vmatpush1.bf16.msra.mxu0 %v3022
        %3045 = vmatprep.subr.bf16.mxu0 0
        %3046 = vmatpush1.bf16.msra.mxu0 %v3023
        %3047 = vmatprep.subr.bf16.mxu0 0
        %3048 = vmatpush1.bf16.msra.mxu0 %v3024
        %3049 = vmatprep.subr.bf16.mxu0 0
        %3050 = vmatpush1.bf16.msra.mxu0 0
        %3051 = vmatprep.subr.bf16.mxu0 0
        %3052 = vmatpush1.bf16.msra.mxu0 0
        %3053 = vmatprep.subr.bf16.mxu0 0
        %3054 = vmatpush1.bf16.msra.mxu0 0
        %3055 = vmatprep.subr.bf16.mxu0 0
        %3056 = vmatpush1.bf16.msra.mxu0 0
        %3057 = vmatprep.subr.bf16.mxu0 0
        %3058 = vmatpush1.bf16.msra.mxu0 0
        %3059 = vmatprep.subr.bf16.mxu0 0
        %3060 = vmatpush1.bf16.msra.mxu0 0
        %3061 = vmatprep.subr.bf16.mxu0 0
        %3062 = vmatpush1.bf16.msra.mxu0 0
        %3063 = vmatprep.subr.bf16.mxu0 0
        %3064 = vmatpush1.bf16.msra.mxu0 0
        %3065 = vmatprep.mubr.bf16.mxu0 0
        %3066 = vmatmul.mubr.bf16.gmra.mrb[0].mxu0 %v2959
        %v3067 = vpop.f32.mrb[0].mxu0
        %v3068 = vadd.f32 %v2983, %v3067
        %v3069 = vpop.f32.mrb[0].mxu0
        %v3070 = vpop.f32.mrb[0].mxu0
        %v3071 = vpop.f32.mrb[0].mxu0
        %3072 = vdwg.mxu0
        %v3073 = vpack.c.bf16 %v3068, %v3068
        %v3074 = vld [vmem:[%s10] sm:$0xf]
        %v3075 = vld [vmem:[%s10 + $0x4] sm:$0xf]
        %v3076 = vld [vmem:[%s10 + $0x8] sm:$0xf]
        %v3077 = vld [vmem:[%s10 + $0xc] sm:$0xf]
        %v3078 = vld [vmem:[%s10 + $0x10] sm:$0xf]
        %v3079 = vld [vmem:[%s10 + $0x14] sm:$0xf]
        %v3080 = vld [vmem:[%s10 + $0x18] sm:$0xf]
        %v3081 = vld [vmem:[%s10 + $0x1c] sm:$0xf]
        %v3082 = vld [vmem:[%s10 + $0x20] sm:$0xf]
        %v3083 = vld [vmem:[%s10 + $0x24] sm:$0xf]
        %v3084 = vld [vmem:[%s10 + $0x28] sm:$0xf]
        %v3085 = vld [vmem:[%s10 + $0x2c] sm:$0xf]
        %v3086 = vld [vmem:[%s10 + $0x30] sm:$0xf]
        %v3087 = vld [vmem:[%s10 + $0x34] sm:$0xf]
        %v3088 = vld [vmem:[%s10 + $0x38] sm:$0xf]
        %v3089 = vld [vmem:[%s10 + $0x3c] sm:$0xf]
        %v3094 = vunpack.c.l.b16 %v3074
        %v3095 = vunpack.c.l.b16 %v3075
        %v3096 = vunpack.c.l.b16 %v3076
        %v3097 = vunpack.c.l.b16 %v3077
        %v3098 = vpack.c.b16 %v3095, %v3094
        %v3099 = vpack.c.b16 %v3097, %v3096
        %3102 = vmatprep.subr.bf16.mxu0 0
        %3103 = vmatpush1.bf16.msra.mxu0 %v3098
        %3104 = vmatprep.subr.bf16.mxu0 0
        %3105 = vmatpush1.bf16.msra.mxu0 %v3099
        %3106 = vmatprep.subr.bf16.mxu0 0
        %3107 = vmatpush1.bf16.msra.mxu0 0
        %3108 = vmatprep.subr.bf16.mxu0 0
        %3109 = vmatpush1.bf16.msra.mxu0 0
        %3110 = vmatprep.subr.bf16.mxu0 0
        %3111 = vmatpush1.bf16.msra.mxu0 0
        %3112 = vmatprep.subr.bf16.mxu0 0
        %3113 = vmatpush1.bf16.msra.mxu0 0
        %3114 = vmatprep.subr.bf16.mxu0 0
        %3115 = vmatpush1.bf16.msra.mxu0 0
        %3116 = vmatprep.subr.bf16.mxu0 0
        %3117 = vmatpush1.bf16.msra.mxu0 0
        %3118 = vmatprep.subr.bf16.mxu0 0
        %3119 = vmatpush1.bf16.msra.mxu0 0
        %3120 = vmatprep.subr.bf16.mxu0 0
        %3121 = vmatpush1.bf16.msra.mxu0 0
        %3122 = vmatprep.subr.bf16.mxu0 0
        %3123 = vmatpush1.bf16.msra.mxu0 0
        %3124 = vmatprep.subr.bf16.mxu0 0
        %3125 = vmatpush1.bf16.msra.mxu0 0
        %3126 = vmatprep.subr.bf16.mxu0 0
        %3127 = vmatpush1.bf16.msra.mxu0 0
        %3128 = vmatprep.subr.bf16.mxu0 0
        %3129 = vmatpush1.bf16.msra.mxu0 0
        %3130 = vmatprep.subr.bf16.mxu0 0
        %3131 = vmatpush1.bf16.msra.mxu0 0
        %3132 = vmatprep.subr.bf16.mxu0 0
        %3133 = vmatpush1.bf16.msra.mxu0 0
        %3134 = vmatprep.mubr.bf16.mxu0 0
        %3135 = vmatmul.mubr.bf16.gmra.mrb[0].mxu0 %v1992
        %v3136 = vpop.f32.mrb[0].mxu0
        %v3137 = vadd.f32 0.0, %v3136
        %v3138 = vpop.f32.mrb[0].mxu0
        %v3139 = vpop.f32.mrb[0].mxu0
        %v3140 = vadd.f32 0.0, %v3139
        %v3141 = vpop.f32.mrb[0].mxu0
        %3142 = vdwg.mxu0
        %v3147 = vunpack.c.l.b16 %v3078
        %v3148 = vunpack.c.l.b16 %v3079
        %v3149 = vunpack.c.l.b16 %v3080
        %v3150 = vunpack.c.l.b16 %v3081
        %v3151 = vpack.c.b16 %v3148, %v3147
        %v3152 = vpack.c.b16 %v3150, %v3149
        %3155 = vmatprep.subr.bf16.mxu0 0
        %3156 = vmatpush1.bf16.msra.mxu0 %v3151
        %3157 = vmatprep.subr.bf16.mxu0 0
        %3158 = vmatpush1.bf16.msra.mxu0 %v3152
        %3159 = vmatprep.subr.bf16.mxu0 0
        %3160 = vmatpush1.bf16.msra.mxu0 0
        %3161 = vmatprep.subr.bf16.mxu0 0
        %3162 = vmatpush1.bf16.msra.mxu0 0
        %3163 = vmatprep.subr.bf16.mxu0 0
        %3164 = vmatpush1.bf16.msra.mxu0 0
        %3165 = vmatprep.subr.bf16.mxu0 0
        %3166 = vmatpush1.bf16.msra.mxu0 0
        %3167 = vmatprep.subr.bf16.mxu0 0
        %3168 = vmatpush1.bf16.msra.mxu0 0
        %3169 = vmatprep.subr.bf16.mxu0 0
        %3170 = vmatpush1.bf16.msra.mxu0 0
        %3171 = vmatprep.subr.bf16.mxu0 0
        %3172 = vmatpush1.bf16.msra.mxu0 0
        %3173 = vmatprep.subr.bf16.mxu0 0
        %3174 = vmatpush1.bf16.msra.mxu0 0
        %3175 = vmatprep.subr.bf16.mxu0 0
        %3176 = vmatpush1.bf16.msra.mxu0 0
        %3177 = vmatprep.subr.bf16.mxu0 0
        %3178 = vmatpush1.bf16.msra.mxu0 0
        %3179 = vmatprep.subr.bf16.mxu0 0
        %3180 = vmatpush1.bf16.msra.mxu0 0
        %3181 = vmatprep.subr.bf16.mxu0 0
        %3182 = vmatpush1.bf16.msra.mxu0 0
        %3183 = vmatprep.subr.bf16.mxu0 0
        %3184 = vmatpush1.bf16.msra.mxu0 0
        %3185 = vmatprep.subr.bf16.mxu0 0
        %3186 = vmatpush1.bf16.msra.mxu0 0
        %3187 = vmatprep.mubr.bf16.mxu0 0
        %3188 = vmatmul.mubr.bf16.gmra.mrb[0].mxu0 %v1992
        %v3189 = vpop.f32.mrb[0].mxu0
        %v3190 = vadd.f32 0.0, %v3189
        %v3191 = vpop.f32.mrb[0].mxu0
        %v3192 = vpop.f32.mrb[0].mxu0
        %v3193 = vadd.f32 0.0, %v3192
        %v3194 = vpop.f32.mrb[0].mxu0
        %3195 = vdwg.mxu0
        %v3200 = vunpack.c.l.b16 %v3082
        %v3201 = vunpack.c.l.b16 %v3083
        %v3202 = vunpack.c.l.b16 %v3084
        %v3203 = vunpack.c.l.b16 %v3085
        %v3204 = vpack.c.b16 %v3201, %v3200
        %v3205 = vpack.c.b16 %v3203, %v3202
        %3208 = vmatprep.subr.bf16.mxu0 0
        %3209 = vmatpush1.bf16.msra.mxu0 %v3204
        %3210 = vmatprep.subr.bf16.mxu0 0
        %3211 = vmatpush1.bf16.msra.mxu0 %v3205
        %3212 = vmatprep.subr.bf16.mxu0 0
        %3213 = vmatpush1.bf16.msra.mxu0 0
        %3214 = vmatprep.subr.bf16.mxu0 0
        %3215 = vmatpush1.bf16.msra.mxu0 0
        %3216 = vmatprep.subr.bf16.mxu0 0
        %3217 = vmatpush1.bf16.msra.mxu0 0
        %3218 = vmatprep.subr.bf16.mxu0 0
        %3219 = vmatpush1.bf16.msra.mxu0 0
        %3220 = vmatprep.subr.bf16.mxu0 0
        %3221 = vmatpush1.bf16.msra.mxu0 0
        %3222 = vmatprep.subr.bf16.mxu0 0
        %3223 = vmatpush1.bf16.msra.mxu0 0
        %3224 = vmatprep.subr.bf16.mxu0 0
        %3225 = vmatpush1.bf16.msra.mxu0 0
        %3226 = vmatprep.subr.bf16.mxu0 0
        %3227 = vmatpush1.bf16.msra.mxu0 0
        %3228 = vmatprep.subr.bf16.mxu0 0
        %3229 = vmatpush1.bf16.msra.mxu0 0
        %3230 = vmatprep.subr.bf16.mxu0 0
        %3231 = vmatpush1.bf16.msra.mxu0 0
        %3232 = vmatprep.subr.bf16.mxu0 0
        %3233 = vmatpush1.bf16.msra.mxu0 0
        %3234 = vmatprep.subr.bf16.mxu0 0
        %3235 = vmatpush1.bf16.msra.mxu0 0
        %3236 = vmatprep.subr.bf16.mxu0 0
        %3237 = vmatpush1.bf16.msra.mxu0 0
        %3238 = vmatprep.subr.bf16.mxu0 0
        %3239 = vmatpush1.bf16.msra.mxu0 0
        %3240 = vmatprep.mubr.bf16.mxu0 0
        %3241 = vmatmul.mubr.bf16.gmra.mrb[0].mxu0 %v1992
        %v3242 = vpop.f32.mrb[0].mxu0
        %v3243 = vadd.f32 0.0, %v3242
        %v3244 = vpop.f32.mrb[0].mxu0
        %v3245 = vpop.f32.mrb[0].mxu0
        %v3246 = vadd.f32 0.0, %v3245
        %v3247 = vpop.f32.mrb[0].mxu0
        %3248 = vdwg.mxu0
        %v3253 = vunpack.c.l.b16 %v3086
        %v3254 = vunpack.c.l.b16 %v3087
        %v3255 = vunpack.c.l.b16 %v3088
        %v3256 = vunpack.c.l.b16 %v3089
        %v3257 = vpack.c.b16 %v3254, %v3253
        %v3258 = vpack.c.b16 %v3256, %v3255
        %3261 = vmatprep.subr.bf16.mxu0 0
        %3262 = vmatpush1.bf16.msra.mxu0 %v3257
        %3263 = vmatprep.subr.bf16.mxu0 0
        %3264 = vmatpush1.bf16.msra.mxu0 %v3258
        %3265 = vmatprep.subr.bf16.mxu0 0
        %3266 = vmatpush1.bf16.msra.mxu0 0
        %3267 = vmatprep.subr.bf16.mxu0 0
        %3268 = vmatpush1.bf16.msra.mxu0 0
        %3269 = vmatprep.subr.bf16.mxu0 0
        %3270 = vmatpush1.bf16.msra.mxu0 0
        %3271 = vmatprep.subr.bf16.mxu0 0
        %3272 = vmatpush1.bf16.msra.mxu0 0
        %3273 = vmatprep.subr.bf16.mxu0 0
        %3274 = vmatpush1.bf16.msra.mxu0 0
        %3275 = vmatprep.subr.bf16.mxu0 0
        %3276 = vmatpush1.bf16.msra.mxu0 0
        %3277 = vmatprep.subr.bf16.mxu0 0
        %3278 = vmatpush1.bf16.msra.mxu0 0
        %3279 = vmatprep.subr.bf16.mxu0 0
        %3280 = vmatpush1.bf16.msra.mxu0 0
        %3281 = vmatprep.subr.bf16.mxu0 0
        %3282 = vmatpush1.bf16.msra.mxu0 0
        %3283 = vmatprep.subr.bf16.mxu0 0
        %3284 = vmatpush1.bf16.msra.mxu0 0
        %3285 = vmatprep.subr.bf16.mxu0 0
        %3286 = vmatpush1.bf16.msra.mxu0 0
        %3287 = vmatprep.subr.bf16.mxu0 0
        %3288 = vmatpush1.bf16.msra.mxu0 0
        %3289 = vmatprep.subr.bf16.mxu0 0
        %3290 = vmatpush1.bf16.msra.mxu0 0
        %3291 = vmatprep.subr.bf16.mxu0 0
        %3292 = vmatpush1.bf16.msra.mxu0 0
        %3293 = vmatprep.mubr.bf16.mxu0 0
        %3294 = vmatmul.mubr.bf16.gmra.mrb[0].mxu0 %v1992
        %v3295 = vpop.f32.mrb[0].mxu0
        %v3296 = vadd.f32 0.0, %v3295
        %v3297 = vpop.f32.mrb[0].mxu0
        %v3298 = vpop.f32.mrb[0].mxu0
        %v3299 = vadd.f32 0.0, %v3298
        %v3300 = vpop.f32.mrb[0].mxu0
        %3301 = vdwg.mxu0
        %v3302 = vld [vmem:[%s11] sm:$0xf]
        %v3303 = vld [vmem:[%s11 + $0x4] sm:$0xf]
        %v3304 = vld [vmem:[%s11 + $0x8] sm:$0xf]
        %v3305 = vld [vmem:[%s11 + $0xc] sm:$0xf]
        %v3306 = vld [vmem:[%s11 + $0x10] sm:$0xf]
        %v3307 = vld [vmem:[%s11 + $0x14] sm:$0xf]
        %v3308 = vld [vmem:[%s11 + $0x18] sm:$0xf]
        %v3309 = vld [vmem:[%s11 + $0x1c] sm:$0xf]
        %v3310 = vld [vmem:[%s11 + $0x20] sm:$0xf]
        %v3311 = vld [vmem:[%s11 + $0x24] sm:$0xf]
        %v3312 = vld [vmem:[%s11 + $0x28] sm:$0xf]
        %v3313 = vld [vmem:[%s11 + $0x2c] sm:$0xf]
        %v3314 = vld [vmem:[%s11 + $0x30] sm:$0xf]
        %v3315 = vld [vmem:[%s11 + $0x34] sm:$0xf]
        %v3316 = vld [vmem:[%s11 + $0x38] sm:$0xf]
        %v3317 = vld [vmem:[%s11 + $0x3c] sm:$0xf]
        %v3322 = vunpack.c.l.b16 %v3302
        %v3323 = vunpack.c.l.b16 %v3303
        %v3324 = vunpack.c.l.b16 %v3304
        %v3325 = vunpack.c.l.b16 %v3305
        %v3326 = vpack.c.b16 %v3323, %v3322
        %v3327 = vpack.c.b16 %v3325, %v3324
        %3330 = vmatprep.subr.bf16.mxu0 0
        %3331 = vmatpush1.bf16.msra.mxu0 %v3326
        %3332 = vmatprep.subr.bf16.mxu0 0
        %3333 = vmatpush1.bf16.msra.mxu0 %v3327
        %3334 = vmatprep.subr.bf16.mxu0 0
        %3335 = vmatpush1.bf16.msra.mxu0 0
        %3336 = vmatprep.subr.bf16.mxu0 0
        %3337 = vmatpush1.bf16.msra.mxu0 0
        %3338 = vmatprep.subr.bf16.mxu0 0
        %3339 = vmatpush1.bf16.msra.mxu0 0
        %3340 = vmatprep.subr.bf16.mxu0 0
        %3341 = vmatpush1.bf16.msra.mxu0 0
        %3342 = vmatprep.subr.bf16.mxu0 0
        %3343 = vmatpush1.bf16.msra.mxu0 0
        %3344 = vmatprep.subr.bf16.mxu0 0
        %3345 = vmatpush1.bf16.msra.mxu0 0
        %3346 = vmatprep.subr.bf16.mxu0 0
        %3347 = vmatpush1.bf16.msra.mxu0 0
        %3348 = vmatprep.subr.bf16.mxu0 0
        %3349 = vmatpush1.bf16.msra.mxu0 0
        %3350 = vmatprep.subr.bf16.mxu0 0
        %3351 = vmatpush1.bf16.msra.mxu0 0
        %3352 = vmatprep.subr.bf16.mxu0 0
        %3353 = vmatpush1.bf16.msra.mxu0 0
        %3354 = vmatprep.subr.bf16.mxu0 0
        %3355 = vmatpush1.bf16.msra.mxu0 0
        %3356 = vmatprep.subr.bf16.mxu0 0
        %3357 = vmatpush1.bf16.msra.mxu0 0
        %3358 = vmatprep.subr.bf16.mxu0 0
        %3359 = vmatpush1.bf16.msra.mxu0 0
        %3360 = vmatprep.subr.bf16.mxu0 0
        %3361 = vmatpush1.bf16.msra.mxu0 0
        %3362 = vmatprep.mubr.bf16.mxu0 0
        %3363 = vmatmul.mubr.bf16.gmra.mrb[0].mxu0 %v2224
        %v3364 = vpop.f32.mrb[0].mxu0
        %v3365 = vadd.f32 0.0, %v3364
        %v3366 = vpop.f32.mrb[0].mxu0
        %v3367 = vpop.f32.mrb[0].mxu0
        %v3368 = vadd.f32 0.0, %v3367
        %v3369 = vpop.f32.mrb[0].mxu0
        %3370 = vdwg.mxu0
        %v3375 = vunpack.c.l.b16 %v3306
        %v3376 = vunpack.c.l.b16 %v3307
        %v3377 = vunpack.c.l.b16 %v3308
        %v3378 = vunpack.c.l.b16 %v3309
        %v3379 = vpack.c.b16 %v3376, %v3375
        %v3380 = vpack.c.b16 %v3378, %v3377
        %3383 = vmatprep.subr.bf16.mxu0 0
        %3384 = vmatpush1.bf16.msra.mxu0 %v3379
        %3385 = vmatprep.subr.bf16.mxu0 0
        %3386 = vmatpush1.bf16.msra.mxu0 %v3380
        %3387 = vmatprep.subr.bf16.mxu0 0
        %3388 = vmatpush1.bf16.msra.mxu0 0
        %3389 = vmatprep.subr.bf16.mxu0 0
        %3390 = vmatpush1.bf16.msra.mxu0 0
        %3391 = vmatprep.subr.bf16.mxu0 0
        %3392 = vmatpush1.bf16.msra.mxu0 0
        %3393 = vmatprep.subr.bf16.mxu0 0
        %3394 = vmatpush1.bf16.msra.mxu0 0
        %3395 = vmatprep.subr.bf16.mxu0 0
        %3396 = vmatpush1.bf16.msra.mxu0 0
        %3397 = vmatprep.subr.bf16.mxu0 0
        %3398 = vmatpush1.bf16.msra.mxu0 0
        %3399 = vmatprep.subr.bf16.mxu0 0
        %3400 = vmatpush1.bf16.msra.mxu0 0
        %3401 = vmatprep.subr.bf16.mxu0 0
        %3402 = vmatpush1.bf16.msra.mxu0 0
        %3403 = vmatprep.subr.bf16.mxu0 0
        %3404 = vmatpush1.bf16.msra.mxu0 0
        %3405 = vmatprep.subr.bf16.mxu0 0
        %3406 = vmatpush1.bf16.msra.mxu0 0
        %3407 = vmatprep.subr.bf16.mxu0 0
        %3408 = vmatpush1.bf16.msra.mxu0 0
        %3409 = vmatprep.subr.bf16.mxu0 0
        %3410 = vmatpush1.bf16.msra.mxu0 0
        %3411 = vmatprep.subr.bf16.mxu0 0
        %3412 = vmatpush1.bf16.msra.mxu0 0
        %3413 = vmatprep.subr.bf16.mxu0 0
        %3414 = vmatpush1.bf16.msra.mxu0 0
        %3415 = vmatprep.mubr.bf16.mxu0 0
        %3416 = vmatmul.mubr.bf16.gmra.mrb[0].mxu0 %v2224
        %v3417 = vpop.f32.mrb[0].mxu0
        %v3418 = vadd.f32 0.0, %v3417
        %v3419 = vpop.f32.mrb[0].mxu0
        %v3420 = vpop.f32.mrb[0].mxu0
        %v3421 = vadd.f32 0.0, %v3420
        %v3422 = vpop.f32.mrb[0].mxu0
        %3423 = vdwg.mxu0
        %v3428 = vunpack.c.l.b16 %v3310
        %v3429 = vunpack.c.l.b16 %v3311
        %v3430 = vunpack.c.l.b16 %v3312
        %v3431 = vunpack.c.l.b16 %v3313
        %v3432 = vpack.c.b16 %v3429, %v3428
        %v3433 = vpack.c.b16 %v3431, %v3430
        %3436 = vmatprep.subr.bf16.mxu0 0
        %3437 = vmatpush1.bf16.msra.mxu0 %v3432
        %3438 = vmatprep.subr.bf16.mxu0 0
        %3439 = vmatpush1.bf16.msra.mxu0 %v3433
        %3440 = vmatprep.subr.bf16.mxu0 0
        %3441 = vmatpush1.bf16.msra.mxu0 0
        %3442 = vmatprep.subr.bf16.mxu0 0
        %3443 = vmatpush1.bf16.msra.mxu0 0
        %3444 = vmatprep.subr.bf16.mxu0 0
        %3445 = vmatpush1.bf16.msra.mxu0 0
        %3446 = vmatprep.subr.bf16.mxu0 0
        %3447 = vmatpush1.bf16.msra.mxu0 0
        %3448 = vmatprep.subr.bf16.mxu0 0
        %3449 = vmatpush1.bf16.msra.mxu0 0
        %3450 = vmatprep.subr.bf16.mxu0 0
        %3451 = vmatpush1.bf16.msra.mxu0 0
        %3452 = vmatprep.subr.bf16.mxu0 0
        %3453 = vmatpush1.bf16.msra.mxu0 0
        %3454 = vmatprep.subr.bf16.mxu0 0
        %3455 = vmatpush1.bf16.msra.mxu0 0
        %3456 = vmatprep.subr.bf16.mxu0 0
        %3457 = vmatpush1.bf16.msra.mxu0 0
        %3458 = vmatprep.subr.bf16.mxu0 0
        %3459 = vmatpush1.bf16.msra.mxu0 0
        %3460 = vmatprep.subr.bf16.mxu0 0
        %3461 = vmatpush1.bf16.msra.mxu0 0
        %3462 = vmatprep.subr.bf16.mxu0 0
        %3463 = vmatpush1.bf16.msra.mxu0 0
        %3464 = vmatprep.subr.bf16.mxu0 0
        %3465 = vmatpush1.bf16.msra.mxu0 0
        %3466 = vmatprep.subr.bf16.mxu0 0
        %3467 = vmatpush1.bf16.msra.mxu0 0
        %3468 = vmatprep.mubr.bf16.mxu0 0
        %3469 = vmatmul.mubr.bf16.gmra.mrb[0].mxu0 %v2224
        %v3470 = vpop.f32.mrb[0].mxu0
        %v3471 = vadd.f32 0.0, %v3470
        %v3472 = vpop.f32.mrb[0].mxu0
        %v3473 = vpop.f32.mrb[0].mxu0
        %v3474 = vadd.f32 0.0, %v3473
        %v3475 = vpop.f32.mrb[0].mxu0
        %3476 = vdwg.mxu0
        %v3481 = vunpack.c.l.b16 %v3314
        %v3482 = vunpack.c.l.b16 %v3315
        %v3483 = vunpack.c.l.b16 %v3316
        %v3484 = vunpack.c.l.b16 %v3317
        %v3485 = vpack.c.b16 %v3482, %v3481
        %v3486 = vpack.c.b16 %v3484, %v3483
        %3489 = vmatprep.subr.bf16.mxu0 0
        %3490 = vmatpush1.bf16.msra.mxu0 %v3485
        %3491 = vmatprep.subr.bf16.mxu0 0
        %3492 = vmatpush1.bf16.msra.mxu0 %v3486
        %3493 = vmatprep.subr.bf16.mxu0 0
        %3494 = vmatpush1.bf16.msra.mxu0 0
        %3495 = vmatprep.subr.bf16.mxu0 0
        %3496 = vmatpush1.bf16.msra.mxu0 0
        %3497 = vmatprep.subr.bf16.mxu0 0
        %3498 = vmatpush1.bf16.msra.mxu0 0
        %3499 = vmatprep.subr.bf16.mxu0 0
        %3500 = vmatpush1.bf16.msra.mxu0 0
        %3501 = vmatprep.subr.bf16.mxu0 0
        %3502 = vmatpush1.bf16.msra.mxu0 0
        %3503 = vmatprep.subr.bf16.mxu0 0
        %3504 = vmatpush1.bf16.msra.mxu0 0
        %3505 = vmatprep.subr.bf16.mxu0 0
        %3506 = vmatpush1.bf16.msra.mxu0 0
        %3507 = vmatprep.subr.bf16.mxu0 0
        %3508 = vmatpush1.bf16.msra.mxu0 0
        %3509 = vmatprep.subr.bf16.mxu0 0
        %3510 = vmatpush1.bf16.msra.mxu0 0
        %3511 = vmatprep.subr.bf16.mxu0 0
        %3512 = vmatpush1.bf16.msra.mxu0 0
        %3513 = vmatprep.subr.bf16.mxu0 0
        %3514 = vmatpush1.bf16.msra.mxu0 0
        %3515 = vmatprep.subr.bf16.mxu0 0
        %3516 = vmatpush1.bf16.msra.mxu0 0
        %3517 = vmatprep.subr.bf16.mxu0 0
        %3518 = vmatpush1.bf16.msra.mxu0 0
        %3519 = vmatprep.subr.bf16.mxu0 0
        %3520 = vmatpush1.bf16.msra.mxu0 0
        %3521 = vmatprep.mubr.bf16.mxu0 0
        %3522 = vmatmul.mubr.bf16.gmra.mrb[0].mxu0 %v2224
        %v3523 = vpop.f32.mrb[0].mxu0
        %v3524 = vadd.f32 0.0, %v3523
        %v3525 = vpop.f32.mrb[0].mxu0
        %v3526 = vpop.f32.mrb[0].mxu0
        %v3527 = vadd.f32 0.0, %v3526
        %v3528 = vpop.f32.mrb[0].mxu0
        %3529 = vdwg.mxu0
        %v3530 = vpack.c.bf16 %v3140, %v3137
        %v3531 = vpack.c.bf16 %v3193, %v3190
        %v3532 = vpack.c.bf16 %v3246, %v3243
        %v3533 = vpack.c.bf16 %v3299, %v3296
        %v3535 = vsel %vm1069, %v3073, 0
        %v3538 = vsel %vm1069, %v3530, 0
        %3540 = vmatprep.subr.bf16.mxu0 0
        %3541 = vmatpush1.bf16.xpose.msra.mxu0 %v3538
        %3542 = vmatprep.subr.bf16.mxu0 0
        %3543 = vmatpush1.bf16.xpose.msra.mxu0 0
        %3544 = vmatprep.subr.bf16.mxu0 0
        %3545 = vmatpush1.bf16.xpose.msra.mxu0 0
        %3546 = vmatprep.subr.bf16.mxu0 0
        %3547 = vmatpush1.bf16.xpose.msra.mxu0 0
        %3548 = vmatprep.subr.bf16.mxu0 0
        %3549 = vmatpush1.bf16.xpose.msra.mxu0 0
        %3550 = vmatprep.subr.bf16.mxu0 0
        %3551 = vmatpush1.bf16.xpose.msra.mxu0 0
        %3552 = vmatprep.subr.bf16.mxu0 0
        %3553 = vmatpush1.bf16.xpose.msra.mxu0 0
        %3554 = vmatprep.subr.bf16.mxu0 0
        %3555 = vmatpush1.bf16.xpose.msra.mxu0 0
        %3556 = vmatprep.subr.bf16.mxu0 0
        %3557 = vmatpush1.bf16.xpose.msra.mxu0 0
        %3558 = vmatprep.subr.bf16.mxu0 0
        %3559 = vmatpush1.bf16.xpose.msra.mxu0 0
        %3560 = vmatprep.subr.bf16.mxu0 0
        %3561 = vmatpush1.bf16.xpose.msra.mxu0 0
        %3562 = vmatprep.subr.bf16.mxu0 0
        %3563 = vmatpush1.bf16.xpose.msra.mxu0 0
        %3564 = vmatprep.subr.bf16.mxu0 0
        %3565 = vmatpush1.bf16.xpose.msra.mxu0 0
        %3566 = vmatprep.subr.bf16.mxu0 0
        %3567 = vmatpush1.bf16.xpose.msra.mxu0 0
        %3568 = vmatprep.subr.bf16.mxu0 0
        %3569 = vmatpush1.bf16.xpose.msra.mxu0 0
        %3570 = vmatprep.subr.bf16.mxu0 0
        %3571 = vmatpush1.bf16.xpose.msra.mxu0 0
        %3572 = vmatprep.mubr.bf16.mxu0 0
        %3573 = vmatmul.mubr.bf16.gmra.mrb[0].mxu0 %v3535
        %v3574 = vpop.f32.mrb[0].mxu0
        %v3575 = vadd.f32 0.0, %v3574
        %v3576 = vpop.f32.mrb[0].mxu0
        %v3577 = vpop.f32.mrb[0].mxu0
        %v3578 = vpop.f32.mrb[0].mxu0
        %3579 = vdwg.mxu0
        %v3581 = vsel %vm1069, %v3531, 0
        %3583 = vmatprep.subr.bf16.mxu0 0
        %3584 = vmatpush1.bf16.xpose.msra.mxu0 %v3581
        %3585 = vmatprep.subr.bf16.mxu0 0
        %3586 = vmatpush1.bf16.xpose.msra.mxu0 0
        %3587 = vmatprep.subr.bf16.mxu0 0
        %3588 = vmatpush1.bf16.xpose.msra.mxu0 0
        %3589 = vmatprep.subr.bf16.mxu0 0
        %3590 = vmatpush1.bf16.xpose.msra.mxu0 0
        %3591 = vmatprep.subr.bf16.mxu0 0
        %3592 = vmatpush1.bf16.xpose.msra.mxu0 0
        %3593 = vmatprep.subr.bf16.mxu0 0
        %3594 = vmatpush1.bf16.xpose.msra.mxu0 0
        %3595 = vmatprep.subr.bf16.mxu0 0
        %3596 = vmatpush1.bf16.xpose.msra.mxu0 0
        %3597 = vmatprep.subr.bf16.mxu0 0
        %3598 = vmatpush1.bf16.xpose.msra.mxu0 0
        %3599 = vmatprep.subr.bf16.mxu0 0
        %3600 = vmatpush1.bf16.xpose.msra.mxu0 0
        %3601 = vmatprep.subr.bf16.mxu0 0
        %3602 = vmatpush1.bf16.xpose.msra.mxu0 0
        %3603 = vmatprep.subr.bf16.mxu0 0
        %3604 = vmatpush1.bf16.xpose.msra.mxu0 0
        %3605 = vmatprep.subr.bf16.mxu0 0
        %3606 = vmatpush1.bf16.xpose.msra.mxu0 0
        %3607 = vmatprep.subr.bf16.mxu0 0
        %3608 = vmatpush1.bf16.xpose.msra.mxu0 0
        %3609 = vmatprep.subr.bf16.mxu0 0
        %3610 = vmatpush1.bf16.xpose.msra.mxu0 0
        %3611 = vmatprep.subr.bf16.mxu0 0
        %3612 = vmatpush1.bf16.xpose.msra.mxu0 0
        %3613 = vmatprep.subr.bf16.mxu0 0
        %3614 = vmatpush1.bf16.xpose.msra.mxu0 0
        %3615 = vmatprep.mubr.bf16.mxu0 0
        %3616 = vmatmul.mubr.bf16.gmra.mrb[0].mxu0 %v3535
        %v3617 = vpop.f32.mrb[0].mxu0
        %v3618 = vadd.f32 0.0, %v3617
        %v3619 = vpop.f32.mrb[0].mxu0
        %v3620 = vpop.f32.mrb[0].mxu0
        %v3621 = vpop.f32.mrb[0].mxu0
        %3622 = vdwg.mxu0
        %v3624 = vsel %vm1069, %v3532, 0
        %3626 = vmatprep.subr.bf16.mxu0 0
        %3627 = vmatpush1.bf16.xpose.msra.mxu0 %v3624
        %3628 = vmatprep.subr.bf16.mxu0 0
        %3629 = vmatpush1.bf16.xpose.msra.mxu0 0
        %3630 = vmatprep.subr.bf16.mxu0 0
        %3631 = vmatpush1.bf16.xpose.msra.mxu0 0
        %3632 = vmatprep.subr.bf16.mxu0 0
        %3633 = vmatpush1.bf16.xpose.msra.mxu0 0
        %3634 = vmatprep.subr.bf16.mxu0 0
        %3635 = vmatpush1.bf16.xpose.msra.mxu0 0
        %3636 = vmatprep.subr.bf16.mxu0 0
        %3637 = vmatpush1.bf16.xpose.msra.mxu0 0
        %3638 = vmatprep.subr.bf16.mxu0 0
        %3639 = vmatpush1.bf16.xpose.msra.mxu0 0
        %3640 = vmatprep.subr.bf16.mxu0 0
        %3641 = vmatpush1.bf16.xpose.msra.mxu0 0
        %3642 = vmatprep.subr.bf16.mxu0 0
        %3643 = vmatpush1.bf16.xpose.msra.mxu0 0
        %3644 = vmatprep.subr.bf16.mxu0 0
        %3645 = vmatpush1.bf16.xpose.msra.mxu0 0
        %3646 = vmatprep.subr.bf16.mxu0 0
        %3647 = vmatpush1.bf16.xpose.msra.mxu0 0
        %3648 = vmatprep.subr.bf16.mxu0 0
        %3649 = vmatpush1.bf16.xpose.msra.mxu0 0
        %3650 = vmatprep.subr.bf16.mxu0 0
        %3651 = vmatpush1.bf16.xpose.msra.mxu0 0
        %3652 = vmatprep.subr.bf16.mxu0 0
        %3653 = vmatpush1.bf16.xpose.msra.mxu0 0
        %3654 = vmatprep.subr.bf16.mxu0 0
        %3655 = vmatpush1.bf16.xpose.msra.mxu0 0
        %3656 = vmatprep.subr.bf16.mxu0 0
        %3657 = vmatpush1.bf16.xpose.msra.mxu0 0
        %3658 = vmatprep.mubr.bf16.mxu0 0
        %3659 = vmatmul.mubr.bf16.gmra.mrb[0].mxu0 %v3535
        %v3660 = vpop.f32.mrb[0].mxu0
        %v3661 = vadd.f32 0.0, %v3660
        %v3662 = vpop.f32.mrb[0].mxu0
        %v3663 = vpop.f32.mrb[0].mxu0
        %v3664 = vpop.f32.mrb[0].mxu0
        %3665 = vdwg.mxu0
        %v3667 = vsel %vm1069, %v3533, 0
        %3669 = vmatprep.subr.bf16.mxu0 0
        %3670 = vmatpush1.bf16.xpose.msra.mxu0 %v3667
        %3671 = vmatprep.subr.bf16.mxu0 0
        %3672 = vmatpush1.bf16.xpose.msra.mxu0 0
        %3673 = vmatprep.subr.bf16.mxu0 0
        %3674 = vmatpush1.bf16.xpose.msra.mxu0 0
        %3675 = vmatprep.subr.bf16.mxu0 0
        %3676 = vmatpush1.bf16.xpose.msra.mxu0 0
        %3677 = vmatprep.subr.bf16.mxu0 0
        %3678 = vmatpush1.bf16.xpose.msra.mxu0 0
        %3679 = vmatprep.subr.bf16.mxu0 0
        %3680 = vmatpush1.bf16.xpose.msra.mxu0 0
        %3681 = vmatprep.subr.bf16.mxu0 0
        %3682 = vmatpush1.bf16.xpose.msra.mxu0 0
        %3683 = vmatprep.subr.bf16.mxu0 0
        %3684 = vmatpush1.bf16.xpose.msra.mxu0 0
        %3685 = vmatprep.subr.bf16.mxu0 0
        %3686 = vmatpush1.bf16.xpose.msra.mxu0 0
        %3687 = vmatprep.subr.bf16.mxu0 0
        %3688 = vmatpush1.bf16.xpose.msra.mxu0 0
        %3689 = vmatprep.subr.bf16.mxu0 0
        %3690 = vmatpush1.bf16.xpose.msra.mxu0 0
        %3691 = vmatprep.subr.bf16.mxu0 0
        %3692 = vmatpush1.bf16.xpose.msra.mxu0 0
        %3693 = vmatprep.subr.bf16.mxu0 0
        %3694 = vmatpush1.bf16.xpose.msra.mxu0 0
        %3695 = vmatprep.subr.bf16.mxu0 0
        %3696 = vmatpush1.bf16.xpose.msra.mxu0 0
        %3697 = vmatprep.subr.bf16.mxu0 0
        %3698 = vmatpush1.bf16.xpose.msra.mxu0 0
        %3699 = vmatprep.subr.bf16.mxu0 0
        %3700 = vmatpush1.bf16.xpose.msra.mxu0 0
        %3701 = vmatprep.mubr.bf16.mxu0 0
        %3702 = vmatmul.mubr.bf16.gmra.mrb[0].mxu0 %v3535
        %v3703 = vpop.f32.mrb[0].mxu0
        %v3704 = vadd.f32 0.0, %v3703
        %v3705 = vpop.f32.mrb[0].mxu0
        %v3706 = vpop.f32.mrb[0].mxu0
        %v3707 = vpop.f32.mrb[0].mxu0
        %3708 = vdwg.mxu0
        %v3709 = vld [vmem:[%s12] sm:$0x1]
        %v3710 = vld [vmem:[%s12 + $0x1] sm:$0x1]
        %v3711 = vld [vmem:[%s12 + $0x2] sm:$0x1]
        %v3712 = vld [vmem:[%s12 + $0x3] sm:$0x1]
        %v3717 = vlaneseq
        %v3718 = vshrl.u32 %v3717, 7
        %v3719 = vsub.s32 0, %v3718
        %v3720 = vrot.slane %v3709, %v3719
        %v3721 = vlaneseq
        %v3722 = vshrl.u32 %v3721, 7
        %v3723 = vsub.s32 0, %v3722
        %v3724 = vrot.slane %v3710, %v3723
        %v3725 = vlaneseq
        %v3726 = vshrl.u32 %v3725, 7
        %v3727 = vsub.s32 0, %v3726
        %v3728 = vrot.slane %v3711, %v3727
        %v3729 = vlaneseq
        %v3730 = vshrl.u32 %v3729, 7
        %v3731 = vsub.s32 0, %v3730
        %v3732 = vrot.slane %v3712, %v3731
        %3733 = vset.pattern.permute.xlu0 0
        %3734 = vperm.xlu0 %3733, %v3720
        %v3735 = vpop.permute.xlu0 %3734
        %3737 = vset.pattern.permute.xlu0 0
        %3738 = vperm.xlu0 %3737, %v3724
        %v3739 = vpop.permute.xlu0 %3738
        %3741 = vset.pattern.permute.xlu0 0
        %3742 = vperm.xlu0 %3741, %v3728
        %v3743 = vpop.permute.xlu0 %3742
        %3745 = vset.pattern.permute.xlu0 0
        %3746 = vperm.xlu0 %3745, %v3732
        %v3747 = vpop.permute.xlu0 %3746
        %v3749 = vmul.f32 %v3575, %v3735
        %v3750 = vmul.f32 %v3618, %v3739
        %v3751 = vmul.f32 %v3661, %v3743
        %v3752 = vmul.f32 %v3704, %v3747
        %v3753 = vsel %vm1729, %v3749, -inf
        %3754 = vmax.xlane.f32.xlu0 %v3753
        %v3755 = vpop.xlane.xlu0 %3754
        %v3756 = vsel %vm1729, %v3750, -inf
        %3757 = vmax.xlane.f32.xlu0 %v3756
        %v3758 = vpop.xlane.xlu0 %3757
        %v3759 = vsel %vm1729, %v3751, -inf
        %3760 = vmax.xlane.f32.xlu0 %v3759
        %v3761 = vpop.xlane.xlu0 %3760
        %v3762 = vsel %vm1729, %v3752, -inf
        %3763 = vmax.xlane.f32.xlu0 %v3762
        %v3764 = vpop.xlane.xlu0 %3763
        %v3765 = vsub.f32 %v3749, %v3755
        %v3766 = vsub.f32 %v3750, %v3758
        %v3767 = vsub.f32 %v3751, %v3761
        %v3768 = vsub.f32 %v3752, %v3764
        %v3769 = vmul.f32 %v3765, 1.442695
        %v3770 = vpow.pop %v3769
        %v3771 = vmul.f32 %v3766, 1.442695
        %v3772 = vpow.pop %v3771
        %v3773 = vmul.f32 %v3767, 1.442695
        %v3774 = vpow.pop %v3773
        %v3775 = vmul.f32 %v3768, 1.442695
        %v3776 = vpow.pop %v3775
        %v3777 = vsel %vm1729, %v3770, 0.0
        %3778 = vadd.xlane.f32.xlu0 %v3777
        %v3779 = vpop.xlane.xlu0 %3778
        %v3780 = vsel %vm1729, %v3772, 0.0
        %3781 = vadd.xlane.f32.xlu0 %v3780
        %v3782 = vpop.xlane.xlu0 %3781
        %v3783 = vsel %vm1729, %v3774, 0.0
        %3784 = vadd.xlane.f32.xlu0 %v3783
        %v3785 = vpop.xlane.xlu0 %3784
        %v3786 = vsel %vm1729, %v3776, 0.0
        %3787 = vadd.xlane.f32.xlu0 %v3786
        %v3788 = vpop.xlane.xlu0 %3787
        %v3789 = vrcp.pop %v3779
        %v3790 = vrcp.pop %v3782
        %v3791 = vrcp.pop %v3785
        %v3792 = vrcp.pop %v3788
        %v3793 = vmul.f32 %v3770, %v3789
        %v3794 = vmul.f32 %v3772, %v3790
        %v3795 = vmul.f32 %v3774, %v3791
        %v3796 = vmul.f32 %v3776, %v3792
        %v3797 = vpack.c.bf16 %v3793, %v3793
        %v3798 = vpack.c.bf16 %v3794, %v3794
        %v3799 = vpack.c.bf16 %v3795, %v3795
        %v3800 = vpack.c.bf16 %v3796, %v3796
        %v3801 = vpack.c.bf16 %v3368, %v3365
        %v3802 = vpack.c.bf16 %v3421, %v3418
        %v3803 = vpack.c.bf16 %v3474, %v3471
        %v3804 = vpack.c.bf16 %v3527, %v3524
        %v3806 = vsel %vm1729, %v3797, 0
        %3808 = vmatprep.subr.bf16.mxu0 0
        %3809 = vmatpush1.bf16.msra.mxu0 %v3801
        %3810 = vmatprep.subr.bf16.mxu0 0
        %3811 = vmatpush1.bf16.msra.mxu0 0
        %3812 = vmatprep.subr.bf16.mxu0 0
        %3813 = vmatpush1.bf16.msra.mxu0 0
        %3814 = vmatprep.subr.bf16.mxu0 0
        %3815 = vmatpush1.bf16.msra.mxu0 0
        %3816 = vmatprep.subr.bf16.mxu0 0
        %3817 = vmatpush1.bf16.msra.mxu0 0
        %3818 = vmatprep.subr.bf16.mxu0 0
        %3819 = vmatpush1.bf16.msra.mxu0 0
        %3820 = vmatprep.subr.bf16.mxu0 0
        %3821 = vmatpush1.bf16.msra.mxu0 0
        %3822 = vmatprep.subr.bf16.mxu0 0
        %3823 = vmatpush1.bf16.msra.mxu0 0
        %3824 = vmatprep.subr.bf16.mxu0 0
        %3825 = vmatpush1.bf16.msra.mxu0 0
        %3826 = vmatprep.subr.bf16.mxu0 0
        %3827 = vmatpush1.bf16.msra.mxu0 0
        %3828 = vmatprep.subr.bf16.mxu0 0
        %3829 = vmatpush1.bf16.msra.mxu0 0
        %3830 = vmatprep.subr.bf16.mxu0 0
        %3831 = vmatpush1.bf16.msra.mxu0 0
        %3832 = vmatprep.subr.bf16.mxu0 0
        %3833 = vmatpush1.bf16.msra.mxu0 0
        %3834 = vmatprep.subr.bf16.mxu0 0
        %3835 = vmatpush1.bf16.msra.mxu0 0
        %3836 = vmatprep.subr.bf16.mxu0 0
        %3837 = vmatpush1.bf16.msra.mxu0 0
        %3838 = vmatprep.subr.bf16.mxu0 0
        %3839 = vmatpush1.bf16.msra.mxu0 0
        %3840 = vmatprep.mubr.bf16.mxu0 0
        %3841 = vmatmul.mubr.bf16.gmra.mrb[0].mxu0 %v3806
        %v3842 = vpop.f32.mrb[0].mxu0
        %v3843 = vadd.f32 0.0, %v3842
        %v3844 = vpop.f32.mrb[0].mxu0
        %v3845 = vpop.f32.mrb[0].mxu0
        %v3846 = vpop.f32.mrb[0].mxu0
        %3847 = vdwg.mxu0
        %v3849 = vsel %vm1729, %v3798, 0
        %3851 = vmatprep.subr.bf16.mxu0 0
        %3852 = vmatpush1.bf16.msra.mxu0 %v3802
        %3853 = vmatprep.subr.bf16.mxu0 0
        %3854 = vmatpush1.bf16.msra.mxu0 0
        %3855 = vmatprep.subr.bf16.mxu0 0
        %3856 = vmatpush1.bf16.msra.mxu0 0
        %3857 = vmatprep.subr.bf16.mxu0 0
        %3858 = vmatpush1.bf16.msra.mxu0 0
        %3859 = vmatprep.subr.bf16.mxu0 0
        %3860 = vmatpush1.bf16.msra.mxu0 0
        %3861 = vmatprep.subr.bf16.mxu0 0
        %3862 = vmatpush1.bf16.msra.mxu0 0
        %3863 = vmatprep.subr.bf16.mxu0 0
        %3864 = vmatpush1.bf16.msra.mxu0 0
        %3865 = vmatprep.subr.bf16.mxu0 0
        %3866 = vmatpush1.bf16.msra.mxu0 0
        %3867 = vmatprep.subr.bf16.mxu0 0
        %3868 = vmatpush1.bf16.msra.mxu0 0
        %3869 = vmatprep.subr.bf16.mxu0 0
        %3870 = vmatpush1.bf16.msra.mxu0 0
        %3871 = vmatprep.subr.bf16.mxu0 0
        %3872 = vmatpush1.bf16.msra.mxu0 0
        %3873 = vmatprep.subr.bf16.mxu0 0
        %3874 = vmatpush1.bf16.msra.mxu0 0
        %3875 = vmatprep.subr.bf16.mxu0 0
        %3876 = vmatpush1.bf16.msra.mxu0 0
        %3877 = vmatprep.subr.bf16.mxu0 0
        %3878 = vmatpush1.bf16.msra.mxu0 0
        %3879 = vmatprep.subr.bf16.mxu0 0
        %3880 = vmatpush1.bf16.msra.mxu0 0
        %3881 = vmatprep.subr.bf16.mxu0 0
        %3882 = vmatpush1.bf16.msra.mxu0 0
        %3883 = vmatprep.mubr.bf16.mxu0 0
        %3884 = vmatmul.mubr.bf16.gmra.mrb[0].mxu0 %v3849
        %v3885 = vpop.f32.mrb[0].mxu0
        %v3886 = vadd.f32 0.0, %v3885
        %v3887 = vpop.f32.mrb[0].mxu0
        %v3888 = vpop.f32.mrb[0].mxu0
        %v3889 = vpop.f32.mrb[0].mxu0
        %3890 = vdwg.mxu0
        %v3892 = vsel %vm1729, %v3799, 0
        %3894 = vmatprep.subr.bf16.mxu0 0
        %3895 = vmatpush1.bf16.msra.mxu0 %v3803
        %3896 = vmatprep.subr.bf16.mxu0 0
        %3897 = vmatpush1.bf16.msra.mxu0 0
        %3898 = vmatprep.subr.bf16.mxu0 0
        %3899 = vmatpush1.bf16.msra.mxu0 0
        %3900 = vmatprep.subr.bf16.mxu0 0
        %3901 = vmatpush1.bf16.msra.mxu0 0
        %3902 = vmatprep.subr.bf16.mxu0 0
        %3903 = vmatpush1.bf16.msra.mxu0 0
        %3904 = vmatprep.subr.bf16.mxu0 0
        %3905 = vmatpush1.bf16.msra.mxu0 0
        %3906 = vmatprep.subr.bf16.mxu0 0
        %3907 = vmatpush1.bf16.msra.mxu0 0
        %3908 = vmatprep.subr.bf16.mxu0 0
        %3909 = vmatpush1.bf16.msra.mxu0 0
        %3910 = vmatprep.subr.bf16.mxu0 0
        %3911 = vmatpush1.bf16.msra.mxu0 0
        %3912 = vmatprep.subr.bf16.mxu0 0
        %3913 = vmatpush1.bf16.msra.mxu0 0
        %3914 = vmatprep.subr.bf16.mxu0 0
        %3915 = vmatpush1.bf16.msra.mxu0 0
        %3916 = vmatprep.subr.bf16.mxu0 0
        %3917 = vmatpush1.bf16.msra.mxu0 0
        %3918 = vmatprep.subr.bf16.mxu0 0
        %3919 = vmatpush1.bf16.msra.mxu0 0
        %3920 = vmatprep.subr.bf16.mxu0 0
        %3921 = vmatpush1.bf16.msra.mxu0 0
        %3922 = vmatprep.subr.bf16.mxu0 0
        %3923 = vmatpush1.bf16.msra.mxu0 0
        %3924 = vmatprep.subr.bf16.mxu0 0
        %3925 = vmatpush1.bf16.msra.mxu0 0
        %3926 = vmatprep.mubr.bf16.mxu0 0
        %3927 = vmatmul.mubr.bf16.gmra.mrb[0].mxu0 %v3892
        %v3928 = vpop.f32.mrb[0].mxu0
        %v3929 = vadd.f32 0.0, %v3928
        %v3930 = vpop.f32.mrb[0].mxu0
        %v3931 = vpop.f32.mrb[0].mxu0
        %v3932 = vpop.f32.mrb[0].mxu0
        %3933 = vdwg.mxu0
        %v3935 = vsel %vm1729, %v3800, 0
        %3937 = vmatprep.subr.bf16.mxu0 0
        %3938 = vmatpush1.bf16.msra.mxu0 %v3804
        %3939 = vmatprep.subr.bf16.mxu0 0
        %3940 = vmatpush1.bf16.msra.mxu0 0
        %3941 = vmatprep.subr.bf16.mxu0 0
        %3942 = vmatpush1.bf16.msra.mxu0 0
        %3943 = vmatprep.subr.bf16.mxu0 0
        %3944 = vmatpush1.bf16.msra.mxu0 0
        %3945 = vmatprep.subr.bf16.mxu0 0
        %3946 = vmatpush1.bf16.msra.mxu0 0
        %3947 = vmatprep.subr.bf16.mxu0 0
        %3948 = vmatpush1.bf16.msra.mxu0 0
        %3949 = vmatprep.subr.bf16.mxu0 0
        %3950 = vmatpush1.bf16.msra.mxu0 0
        %3951 = vmatprep.subr.bf16.mxu0 0
        %3952 = vmatpush1.bf16.msra.mxu0 0
        %3953 = vmatprep.subr.bf16.mxu0 0
        %3954 = vmatpush1.bf16.msra.mxu0 0
        %3955 = vmatprep.subr.bf16.mxu0 0
        %3956 = vmatpush1.bf16.msra.mxu0 0
        %3957 = vmatprep.subr.bf16.mxu0 0
        %3958 = vmatpush1.bf16.msra.mxu0 0
        %3959 = vmatprep.subr.bf16.mxu0 0
        %3960 = vmatpush1.bf16.msra.mxu0 0
        %3961 = vmatprep.subr.bf16.mxu0 0
        %3962 = vmatpush1.bf16.msra.mxu0 0
        %3963 = vmatprep.subr.bf16.mxu0 0
        %3964 = vmatpush1.bf16.msra.mxu0 0
        %3965 = vmatprep.subr.bf16.mxu0 0
        %3966 = vmatpush1.bf16.msra.mxu0 0
        %3967 = vmatprep.subr.bf16.mxu0 0
        %3968 = vmatpush1.bf16.msra.mxu0 0
        %3969 = vmatprep.mubr.bf16.mxu0 0
        %3970 = vmatmul.mubr.bf16.gmra.mrb[0].mxu0 %v3935
        %v3971 = vpop.f32.mrb[0].mxu0
        %v3972 = vadd.f32 0.0, %v3971
        %v3973 = vpop.f32.mrb[0].mxu0
        %v3974 = vpop.f32.mrb[0].mxu0
        %v3975 = vpop.f32.mrb[0].mxu0
        %3976 = vdwg.mxu0
        %v3977 = vsel %vm1069, %v3843, 0.0
        %v3978 = vsel %vm1069, %v3886, 0.0
        %v3979 = vadd.f32 %v3977, %v3978
        %v3980 = vsel %vm1069, %v3929, 0.0
        %v3981 = vadd.f32 %v3979, %v3980
        %v3982 = vsel %vm1069, %v3972, 0.0
        %v3983 = vadd.f32 %v3981, %v3982
        %v3984 = vadd.f32 %v3983, 0.0
        %v3985 = vpack.c.bf16 %v3984, %v3984
        %s3986 = scalar_lea.vmem %s8, 16
        %v3987 = vld [vmem:[%s3986] sm:$0xf]
        %v3988 = vld [vmem:[%s3986 + $0x4] sm:$0xf]
        %v3989 = vld [vmem:[%s3986 + $0x8] sm:$0xf]
        %v3990 = vld [vmem:[%s3986 + $0xc] sm:$0xf]
        %s3991 = scalar_lea.vmem %s9, 1
        %v3992 = vld [vmem:[%s3991] sm:$0x1]
        %v3994 = vlaneseq
        %v3995 = vshrl.u32 %v3994, 7
        %v3996 = vsub.s32 0, %v3995
        %v3997 = vrot.slane %v3992, %v3996
        %v4003 = vunpack.c.l.b16 %v3987
        %v4004 = vunpack.c.l.b16 %v3988
        %v4005 = vunpack.c.l.b16 %v3989
        %v4006 = vunpack.c.l.b16 %v3990
        %v4007 = vpack.c.b16 %v4004, %v4003
        %v4008 = vpack.c.b16 %v4006, %v4005
        %v4012 = vsel %vm1069, %v3985, 0
        %4014 = vmatprep.subr.bf16.mxu0 0
        %4015 = vmatpush1.bf16.msra.mxu0 %v4007
        %4016 = vmatprep.subr.bf16.mxu0 0
        %4017 = vmatpush1.bf16.msra.mxu0 %v4008
        %4018 = vmatprep.subr.bf16.mxu0 0
        %4019 = vmatpush1.bf16.msra.mxu0 0
        %4020 = vmatprep.subr.bf16.mxu0 0
        %4021 = vmatpush1.bf16.msra.mxu0 0
        %4022 = vmatprep.subr.bf16.mxu0 0
        %4023 = vmatpush1.bf16.msra.mxu0 0
        %4024 = vmatprep.subr.bf16.mxu0 0
        %4025 = vmatpush1.bf16.msra.mxu0 0
        %4026 = vmatprep.subr.bf16.mxu0 0
        %4027 = vmatpush1.bf16.msra.mxu0 0
        %4028 = vmatprep.subr.bf16.mxu0 0
        %4029 = vmatpush1.bf16.msra.mxu0 0
        %4030 = vmatprep.subr.bf16.mxu0 0
        %4031 = vmatpush1.bf16.msra.mxu0 0
        %4032 = vmatprep.subr.bf16.mxu0 0
        %4033 = vmatpush1.bf16.msra.mxu0 0
        %4034 = vmatprep.subr.bf16.mxu0 0
        %4035 = vmatpush1.bf16.msra.mxu0 0
        %4036 = vmatprep.subr.bf16.mxu0 0
        %4037 = vmatpush1.bf16.msra.mxu0 0
        %4038 = vmatprep.subr.bf16.mxu0 0
        %4039 = vmatpush1.bf16.msra.mxu0 0
        %4040 = vmatprep.subr.bf16.mxu0 0
        %4041 = vmatpush1.bf16.msra.mxu0 0
        %4042 = vmatprep.subr.bf16.mxu0 0
        %4043 = vmatpush1.bf16.msra.mxu0 0
        %4044 = vmatprep.subr.bf16.mxu0 0
        %4045 = vmatpush1.bf16.msra.mxu0 0
        %4046 = vmatprep.mubr.bf16.mxu0 0
        %4047 = vmatmul.mubr.bf16.gmra.mrb[0].mxu0 %v4012
        %v4048 = vpop.f32.mrb[0].mxu0
        %v4049 = vadd.f32 %v3997, %v4048
        %v4050 = vpop.f32.mrb[0].mxu0
        %v4051 = vpop.f32.mrb[0].mxu0
        %v4052 = vpop.f32.mrb[0].mxu0
        %4053 = vdwg.mxu0
        %s4054 = sld [smem:[#allocation2 + $0x1]]
        %v4055 = vstv %s4054
        %v4056 = vmul.f32 %v4049, %v4055
        %v4057 = vunpack.c.l.bf16 %v2959
        %s4058 = ssub.f32 1.0, %s4054
        %v4059 = vstv %s4058
        %v4060 = vmul.f32 %v4057, %v4059
        %v4061 = vadd.f32 %v4056, %v4060
        %s4062 = scalar_lea.vmem %s447, 8 [#allocation7]
        %4063 = vst [vmem:[%s4062] sm:$0xff] %v4061
        %s4064 = sand.u32 %s310, 1
        %s4065 = scalar_lea.sflag [#allocation4], %s4064
        %s4066 = sand.u32 %s310, 1
        %s4067 = smul.addr %s4066, 16
        %s4068 = scalar_lea.vmem [#allocation7], %s4067
        // Predicated region
        $region81: #{tpu_custom_call.1} parent=71 // pred_check
          %p4069 = pneg %p320
        $region82: #{tpu_custom_call.1} parent=71 // pred_check_branch
          %4071 = sbr.rel (%p4069) target = $region84
        $region83: #{tpu_custom_call.1} parent=71 // pred_region
          %s4073 = ssub.s32 256, 256
          %4074 = vsyncadd %s4065, %s4073
          %s4075 = smul.addr %s29, 128
          %s4076 = scalar_lea.hbm %s13, %s4075
          %s4077 = sshll.u32 %s4068, 4
          %s4078 = int_to_ptr.vmem [resolvable:$true] %s4077
          %4083 = dma.vmem_to_hbm [thread:$0]  %s4078, 256, %s4076, %s4065, 128, 256, 8
        $region84: #{tpu_custom_call.1} parent=71 // pred_fallthru
          _
      $region72: #{tpu_custom_call.1} parent=5 // pred_fallthru
        _
      %p4084 = scmp.le.s32.totalorder 2, %s24
      // Predicated region
      $region85: #{tpu_custom_call.1} parent=5 // pred_check
        %p4085 = pneg %p4084
      $region86: #{tpu_custom_call.1} parent=5 // pred_check_branch
        %4087 = sbr.rel (%p4085) target = $region88
      $region87: #{tpu_custom_call.1} parent=5 // pred_region
        %s4088 = ssub.s32 %s24, 2
        // Predicated region
        $region89: #{tpu_custom_call.1} parent=87 // pred_check
          %p4089 = pneg %p326
        $region90: #{tpu_custom_call.1} parent=87 // pred_check_branch
          %4091 = sbr.rel (%p4089) target = $region92
        $region91: #{tpu_custom_call.1} parent=87 // pred_region
          %s4092 = sand.u32 %s311, 1
          %s4093 = scalar_lea.sflag [#allocation4], %s4092
          %s4094 = sand.u32 %s311, 1
          %s4095 = smul.addr %s4094, 16
          %s4096 = scalar_lea.vmem [#allocation7], %s4095
          %4097 = dma.done %s4093, 256
        $region92: #{tpu_custom_call.1} parent=87 // pred_fallthru
          _
      $region88: #{tpu_custom_call.1} parent=5 // pred_fallthru
        _
    $region6: #{tpu_custom_call.1} parent=1 // loop_footer
      %s28 = sadd.s32 1, %s24
    $region7: #{tpu_custom_call.1} parent=1 // loop_footer_branch
      %23 = sbr.rel target = $region3
    $region8: #{tpu_custom_call.1} parent=1 // loop_exit
      _
    %4098 = vsyncpa [#allocation3], 1
    %s4099 = scalar_lea.sflag [#allocation3], 1
    %4100 = vsyncpa %s4099, 1
    %4101 = vsyncpa [#allocation4], 1
    %s4102 = scalar_lea.sflag [#allocation4], 1
    %4103 = vsyncpa %s4102, 1
    %4104 = vsyncpa [#allocation5], 1
    %s4105 = scalar_lea.sflag [#allocation5], 1
    %4106 = vsyncpa %s4105, 1

</llo_original>
